<compile_context>
chip_gen: v7x
topology: tpu7x:2x2x1
jax: 0.10.0
libtpu: 0.0.40
codegen_flags: <defaults>
</compile_context>

<pallas_src>
import functools
import numpy as np
import jax
import jax.numpy as jnp
from jax import lax
from jax.experimental import pallas as pl
from jax.experimental.pallas import tpu as pltpu


def _relative_position_index(ws):
    """Replicates the PyTorch relative_position_index buffer (numpy, static)."""
    coords_h = np.arange(ws[0])
    coords_w = np.arange(ws[1])
    coords = np.stack(np.meshgrid(coords_h, coords_w, indexing="ij"))   # (2, wh, ww)
    coords_flatten = coords.reshape(2, -1)                              # (2, N)
    rel = coords_flatten[:, :, None] - coords_flatten[:, None, :]       # (2, N, N)
    rel = rel.transpose(1, 2, 0).copy()                                 # (N, N, 2)
    rel[..., 0] += ws[0] - 1
    rel[..., 1] += ws[1] - 1
    rel[..., 0] *= 2 * ws[1] - 1
    return rel.sum(-1)                                                  # (N, N)


# --------------------------------------------------------------------------
# Fused kernel: BP batch elements, all heads, in one grid step.
# --------------------------------------------------------------------------
def _make_fused_kernel(num_heads, head_dim, N, batch_pack, has_qkv_bias):
    nhN = num_heads * N
    bf16 = jnp.bfloat16

    def kernel(*refs):
        if has_qkv_bias:
            xet_ref, w_ref, brow_ref, rpb_ref, bns_ref, bnb_ref, o_ref = refs
        else:
            xet_ref, w_ref, rpb_ref, bns_ref, bnb_ref, o_ref = refs
            brow_ref = None

        # xet: (BP*hd, K) bf16   activations, head-dim on sublanes, K on lanes
        # w:   (3*nh*N, K) bf16  expanded qkv weight (scale folded into q rows)
        # brow:(1, 3*nh*N) f32   optional expanded conv bias
        # rpb: (nh, N, N)  f32   relative position bias
        # bns/bnb: (C, 1)  f32   eval-mode BatchNorm2d affine
        # o:   (BP, C, N)  f32   output block

        # q/k/v for all packed batch elems + all heads in ONE lane-dense dot:
        # qkvt[(bp,d), (t,h,n)] = {q,k,v}[t][bp][h][n, d]
        qkvt = lax.dot_general(
            xet_ref[...], w_ref[...], (((1,), (1,)), ((), ())),
            preferred_element_type=jnp.float32)                        # (BP*hd, 3*nh*N)
        if brow_ref is not None:
            qkvt = qkvt + brow_ref[...]                                # broadcast add

        # num_heads / batch_pack are small; a static loop keeps slices static.
        # (Switch to lax.fori_loop(..., unroll=True) if num_heads grows large.)
        for bp in range(batch_pack):
            r0 = bp * head_dim
            for h in range(num_heads):
                qt = qkvt[r0:r0 + head_dim, h * N:(h + 1) * N].astype(bf16)
                kt = qkvt[r0:r0 + head_dim,
                          nhN + h * N:nhN + (h + 1) * N].astype(bf16)
                vt = qkvt[r0:r0 + head_dim,
                          2 * nhN + h * N:2 * nhN + (h + 1) * N].astype(bf16)

                # scores[n, m] = sum_d q[n,d] k[m,d]   (scale already folded)
                s = lax.dot_general(qt, kt, (((0,), (0,)), ((), ())),
                                    preferred_element_type=jnp.float32)  # (N, N)
                s = s + rpb_ref[h]

                # softmax(dim=-1); exact reciprocal (EUP slot, essentially free)
                m = jnp.max(s, axis=-1, keepdims=True)
                e = jnp.exp(s - m)
                p = e * pl.reciprocal(jnp.sum(e, axis=-1, keepdims=True))

                # out^T = v^T @ p^T -> (hd, N), BN affine fused on store.
                out_t = lax.dot_general(vt, p.astype(bf16),
                                        (((1,), (1,)), ((), ())),
                                        preferred_element_type=jnp.float32)
                c0 = h * head_dim
                o_ref[bp, c0:c0 + head_dim, :] = (
                    out_t * bns_ref[c0:c0 + head_dim, :]
                    + bnb_ref[c0:c0 + head_dim, :])

    return kernel


def window_attention_conv2qkv(x, params, *, num_heads, window_size, conv_size=1,
                              pos_emb=True, qkv_bias=False, bn_eps=1e-5):
    # TODO(synk): conv_size==3 branch (3x3 stride-2 conv + nn.Upsample(x2)) not
    #             implemented; this covers the conv_size==1 / identity-up path.
    assert conv_size == 1, "only conv_size == 1 implemented"
    B, C, H, W = x.shape
    ws = (window_size, window_size)
    N = ws[0] * ws[1]
    assert H * W == N, "forward assumes H*W == window_size**2 (as the PyTorch code does)"
    head_dim = C // num_heads
    assert num_heads * head_dim == C
    assert N % head_dim == 0, "head_dim must divide window_size**2 for this fused kernel"
    assert head_dim % 8 == 0, "head_dim must be a multiple of 8 for this fused kernel"
    L = N // head_dim
    K = C * L
    nhN = num_heads * N
    R = 3 * nhN
    scale = float(head_dim) ** (-0.5)
    f32 = jnp.float32
    bf16 = jnp.bfloat16

    # ---- batch packing: BP batch elems per grid step (>= 2 grid steps if B >= 2,
    #      so both TensorCores stay busy on v7x).
    BP = max(1, min(B, 128 // N)) if N < 128 else 1
    BP = min(BP, max(1, B // 2))
    while B % BP:
        BP -= 1
    G = B // BP

    # ---- static indices replicating the PyTorch channel/spatial-mixing reshape
    #      (B, 3C, H, W) -> (B, N, 3, nh, hd) -> permute(2, 0, 3, 1, 4) exactly.
    r = np.arange(R)
    t_idx = r // nhN                         # 0: q, 1: k, 2: v
    h_idx = (r % nhN) // N
    n_idx = r % N
    f_base = n_idx * (3 * C) + t_idx * C + h_idx * head_dim
    crow = f_base // N                       # which conv output channel
    cblk = (f_base % N) // head_dim          # which hd-wide spatial block of x
    row_scale = np.where(t_idx == 0, scale, 1.0).astype(np.float32)     # fold q*scale

    w3 = params["qkv_w"].reshape(3 * C, C).astype(f32)                           # (3C, C)
    onehot = jnp.asarray(cblk[:, None] == np.arange(L)[None, :], dtype=f32)      # (R, L)
    w_rows = w3[crow] * jnp.asarray(row_scale)[:, None]                          # (R, C)
    w_all = (w_rows[:, :, None] * onehot[:, None, :]).reshape(R, K).astype(bf16) # (R, K)

    # activations: (B,C,H,W)->(B, C*L, hd)->(B, hd, K)->(B*hd, K), bf16, single copy
    xe = x.reshape(B, K, head_dim)
    xet = jnp.swapaxes(xe, 1, 2).reshape(B * head_dim, K).astype(bf16)

    args = [xet, w_all]
    in_specs = [
        pl.BlockSpec((BP * head_dim, K), lambda b: (b, 0)),            # activations
        pl.BlockSpec((R, K), lambda b: (0, 0)),                        # weights (once)
    ]

    if qkv_bias:
        # per-row additive bias (K stays 128-aligned; scale folded for q rows)
        b_exp = (params["qkv_b"].reshape(3 * C).astype(f32)[crow]
                 * jnp.asarray(row_scale)).reshape(1, R)
        args.append(b_exp)
        in_specs.append(pl.BlockSpec((1, R), lambda b: (0, 0)))

    # ---- relative position bias (static gather indices; parameter prep) ----
    if pos_emb:
        rel_idx = _relative_position_index(ws).reshape(-1)
        rpb = params["rel_pos_table"][rel_idx].reshape(N, N, num_heads)
        rpb = jnp.transpose(rpb, (2, 0, 1)).astype(f32)                # (nh, N, N)
    else:
        rpb = jnp.zeros((num_heads, N, N), f32)
    args.append(rpb)
    in_specs.append(pl.BlockSpec((num_heads, N, N), lambda b: (0, 0, 0)))

    # ---- eval-mode BatchNorm2d folded into a per-channel affine (C, 1) ----
    bn_scale = (params["bn_gamma"] / jnp.sqrt(params["bn_var"] + bn_eps)).astype(f32)
    bn_shift = params["bn_beta"].astype(f32) - params["bn_mean"].astype(f32) * bn_scale
    args += [bn_scale.reshape(C, 1), bn_shift.reshape(C, 1)]
    in_specs += [pl.BlockSpec((C, 1), lambda b: (0, 0)),
                 pl.BlockSpec((C, 1), lambda b: (0, 0))]

    kernel = _make_fused_kernel(num_heads, head_dim, N, BP, qkv_bias)
    out = pl.pallas_call(
        kernel,
        out_shape=jax.ShapeDtypeStruct((B, C, N), f32),
        grid=(G,),
        in_specs=in_specs,
        out_specs=pl.BlockSpec((BP, C, N), lambda b: (b, 0, 0)),
        compiler_params=pltpu.CompilerParams(
            dimension_semantics=("parallel",),
            vmem_limit_bytes=32 * 1024 * 1024),
    )(*args)                                                            # (B, C, N)

    # self.up is identity for conv_size == 1.
    # NOTE: self.proj (nn.Linear) is defined but never applied in forward();
    #       dropouts are p=0.0 (no-ops); BatchNorm2d uses running stats (fused).
    return out.reshape(B, C, ws[0], ws[1])


# --------------------------------------------------------------------------
# Pure-JAX reference (bug-for-bug replica of the PyTorch forward)
# --------------------------------------------------------------------------
def _reference(x, params, *, num_heads, window_size, pos_emb=True,
               qkv_bias=False, bn_eps=1e-5):
    B, C, H, W = x.shape
    N = window_size * window_size
    hd = C // num_heads
    w3 = params["qkv_w"].reshape(3 * C, C).astype(jnp.float32)
    qkv = jnp.einsum("oc,bcn->bon", w3, x.reshape(B, C, N).astype(jnp.float32))
    if qkv_bias:
        qkv = qkv + params["qkv_b"].reshape(1, 3 * C, 1)
    qkv = qkv.reshape(B, N, 3, num_heads, hd).transpose(2, 0, 3, 1, 4)
    q, k, v = qkv[0], qkv[1], qkv[2]
    q = q * (hd ** (-0.5))
    attn = jnp.einsum("bhnd,bhmd->bhnm", q, k)
    if pos_emb:
        rel_idx = _relative_position_index((window_size, window_size)).reshape(-1)
        rpb = params["rel_pos_table"][rel_idx].reshape(N, N, num_heads)
        attn = attn + jnp.transpose(rpb, (2, 0, 1))[None]
    attn = jax.nn.softmax(attn, axis=-1)
    out = jnp.einsum("bhnm,bhmd->bhnd", attn, v)
    out = out.transpose(0, 2, 1, 3).reshape(B, N, C).transpose(0, 2, 1)   # (B, C, N)
    g = params["bn_gamma"] / jnp.sqrt(params["bn_var"] + bn_eps)
    b = params["bn_beta"] - params["bn_mean"] * g
    out = out * g[None, :, None] + b[None, :, None]
    return out.reshape(B, C, window_size, window_size)


if __name__ == "__main__":
    key = jax.random.PRNGKey(0)
    B, dim, window_size, num_heads, conv_size = 4, 32, 8, 4, 1
    H = W = window_size
    k1, k2, k3, k4 = jax.random.split(key, 4)

    x = jax.random.normal(k1, (B, dim, H, W), dtype=jnp.float32)
    params = {
        # nn.Conv2d(dim, 3*dim, 1, bias=False) weight
        "qkv_w": jax.random.normal(k2, (3 * dim, dim, 1, 1), jnp.float32) * 0.05,
        # relative_position_bias_table, trunc_normal_(std=0.02) ~ normal*0.02
        "rel_pos_table": jax.random.normal(
            k3, ((2 * window_size - 1) * (2 * window_size - 1), num_heads),
            jnp.float32) * 0.02,
        # nn.BatchNorm2d(dim) as initialized (eval mode)
        "bn_gamma": jnp.ones((dim,), jnp.float32),
        "bn_beta": jnp.zeros((dim,), jnp.float32),
        "bn_mean": jnp.zeros((dim,), jnp.float32),
        "bn_var": jnp.ones((dim,), jnp.float32),
    }

    # bf16 operands on the MXU (f32 accumulation) => deliberate loose tolerance.
    TOL = 2e-2

    # ---- main path: qkv_bias=False ----
    fn = jax.jit(functools.partial(
        window_attention_conv2qkv,
        num_heads=num_heads, window_size=window_size, conv_size=conv_size))
    y = fn(x, params)
    jax.block_until_ready(y)
    assert y.shape == (B, dim, window_size, window_size), y.shape
    assert bool(jnp.all(jnp.isfinite(y)))
    y_ref = _reference(x, params, num_heads=num_heads, window_size=window_size)
    err = float(jnp.max(jnp.abs(y - y_ref)))
    assert err < TOL, f"max abs err vs reference: {err}"

    # ---- qkv_bias=True path (per-row bias vector, K stays aligned) ----
    params_b = dict(params)
    params_b["qkv_b"] = jax.random.normal(k4, (3 * dim,), jnp.float32) * 0.1
    fn_b = jax.jit(functools.partial(
        window_attention_conv2qkv,
        num_heads=num_heads, window_size=window_size, conv_size=conv_size,
        qkv_bias=True))
    yb = fn_b(x, params_b)
    jax.block_until_ready(yb)
    yb_ref = _reference(x, params_b, num_heads=num_heads, window_size=window_size,
                        qkv_bias=True)
    err_b = float(jnp.max(jnp.abs(yb - yb_ref)))
    assert err_b < TOL, f"max abs err vs reference (qkv_bias): {err_b}"

    print("KERNEL_OK")
</pallas_src>

<mosaic_0001>
module attributes {stable_mosaic.version = 11 : i64} {
  func.func @kernel(%arg0: i32, %arg1: memref<16x256xbf16, #tpu.memory_space<vmem>>, %arg2: memref<768x256xbf16, #tpu.memory_space<vmem>>, %arg3: memref<4x64x64xf32, #tpu.memory_space<vmem>>, %arg4: memref<32x1xf32, #tpu.memory_space<vmem>>, %arg5: memref<32x1xf32, #tpu.memory_space<vmem>>, %arg6: memref<2x32x64xf32, #tpu.memory_space<vmem>>) attributes {dimension_semantics = [#tpu.dimension_semantics<parallel>], iteration_bounds = array<i64: 2>, scalar_prefetch = 0 : i64, scratch_operands = 0 : i64, tpu.core_type = #tpu.core_type<tc>, window_params = [{transform_indices = @transform_0, window_bounds = array<i64: 16, 256>}, {pipeline_mode = #tpu.pipeline_mode<synchronous>, transform_indices = @transform_1, window_bounds = array<i64: 768, 256>}, {pipeline_mode = #tpu.pipeline_mode<synchronous>, transform_indices = @transform_2, window_bounds = array<i64: 4, 64, 64>}, {pipeline_mode = #tpu.pipeline_mode<synchronous>, transform_indices = @transform_3, window_bounds = array<i64: 32, 1>}, {pipeline_mode = #tpu.pipeline_mode<synchronous>, transform_indices = @transform_4, window_bounds = array<i64: 32, 1>}, {transform_indices = @transform_5, window_bounds = array<i64: 2, 32, 64>}]} {
    %c0 = arith.constant 0 : index
    %c0_0 = arith.constant 0 : index
    %0 = vector.load %arg1[%c0, %c0_0] : memref<16x256xbf16, #tpu.memory_space<vmem>>, vector<16x256xbf16>
    %c0_1 = arith.constant 0 : index
    %c0_2 = arith.constant 0 : index
    %1 = vector.load %arg2[%c0_1, %c0_2] : memref<768x256xbf16, #tpu.memory_space<vmem>>, vector<768x256xbf16>
    %cst = arith.constant dense<0.000000e+00> : vector<16x768xf32>
    %2 = tpu.matmul %0, %1, %cst {dimension_numbers = #tpu.dot_dimension_numbers<[1], [1], [0], [0], [0, 0, 1, 0], [], []>} : vector<16x256xbf16>, vector<768x256xbf16>, vector<16x768xf32> -> vector<16x768xf32>
    %3 = vector.extract_strided_slice %2 {offsets = [0, 0], sizes = [8, 64], strides = [1, 1]} : vector<16x768xf32> to vector<8x64xf32>
    %4 = arith.truncf %3 : vector<8x64xf32> to vector<8x64xbf16>
    %5 = vector.extract_strided_slice %2 {offsets = [0, 256], sizes = [8, 64], strides = [1, 1]} : vector<16x768xf32> to vector<8x64xf32>
    %6 = arith.truncf %5 : vector<8x64xf32> to vector<8x64xbf16>
    %7 = vector.extract_strided_slice %2 {offsets = [0, 512], sizes = [8, 64], strides = [1, 1]} : vector<16x768xf32> to vector<8x64xf32>
    %8 = arith.truncf %7 : vector<8x64xf32> to vector<8x64xbf16>
    %cst_3 = arith.constant dense<0.000000e+00> : vector<64x64xf32>
    %9 = tpu.matmul %4, %6, %cst_3 {dimension_numbers = #tpu.dot_dimension_numbers<[0], [0], [1], [1], [0, 1, 1, 1], [], []>} : vector<8x64xbf16>, vector<8x64xbf16>, vector<64x64xf32> -> vector<64x64xf32>
    %c0_4 = arith.constant 0 : index
    %c0_5 = arith.constant 0 : index
    %c0_6 = arith.constant 0 : index
    %10 = vector.load %arg3[%c0_4, %c0_5, %c0_6] : memref<4x64x64xf32, #tpu.memory_space<vmem>>, vector<1x64x64xf32>
    %11 = vector.shape_cast %10 : vector<1x64x64xf32> to vector<64x64xf32>
    %12 = arith.addf %9, %11 : vector<64x64xf32>
    %cst_7 = arith.constant dense<0xFF800000> : vector<64xf32>
    %13 = vector.multi_reduction <maximumf>, %12, %cst_7 [1] : vector<64x64xf32> to vector<64xf32>
    %14 = vector.shape_cast %13 : vector<64xf32> to vector<64x1xf32>
    %15 = vector.broadcast %14 : vector<64x1xf32> to vector<64x64xf32>
    %16 = arith.subf %12, %15 : vector<64x64xf32>
    %17 = math.exp %16 : vector<64x64xf32>
    %cst_8 = arith.constant dense<0.000000e+00> : vector<64xf32>
    %18 = vector.multi_reduction <add>, %17, %cst_8 [1] : vector<64x64xf32> to vector<64xf32>
    %19 = vector.shape_cast %18 : vector<64xf32> to vector<64x1xf32>
    %20 = tpu.reciprocal %19 : vector<64x1xf32> -> vector<64x1xf32>
    %21 = vector.broadcast %20 : vector<64x1xf32> to vector<64x64xf32>
    %22 = arith.mulf %17, %21 : vector<64x64xf32>
    %23 = arith.truncf %22 : vector<64x64xf32> to vector<64x64xbf16>
    %cst_9 = arith.constant dense<0.000000e+00> : vector<8x64xf32>
    %24 = tpu.matmul %8, %23, %cst_9 {dimension_numbers = #tpu.dot_dimension_numbers<[1], [1], [0], [0], [0, 0, 1, 0], [], []>} : vector<8x64xbf16>, vector<64x64xbf16>, vector<8x64xf32> -> vector<8x64xf32>
    %c0_10 = arith.constant 0 : index
    %c0_11 = arith.constant 0 : index
    %25 = vector.load %arg4[%c0_10, %c0_11] : memref<32x1xf32, #tpu.memory_space<vmem>>, vector<8x1xf32>
    %26 = vector.broadcast %25 : vector<8x1xf32> to vector<8x64xf32>
    %27 = arith.mulf %24, %26 : vector<8x64xf32>
    %c0_12 = arith.constant 0 : index
    %c0_13 = arith.constant 0 : index
    %28 = vector.load %arg5[%c0_12, %c0_13] : memref<32x1xf32, #tpu.memory_space<vmem>>, vector<8x1xf32>
    %29 = vector.broadcast %28 : vector<8x1xf32> to vector<8x64xf32>
    %30 = arith.addf %27, %29 : vector<8x64xf32>
    %c0_14 = arith.constant 0 : index
    %c0_15 = arith.constant 0 : index
    %c0_16 = arith.constant 0 : index
    %31 = vector.load %arg6[%c0_14, %c0_15, %c0_16] : memref<2x32x64xf32, #tpu.memory_space<vmem>>, vector<1x8x64xf32>
    %32 = vector.shape_cast %31 : vector<1x8x64xf32> to vector<8x64xf32>
    %33 = vector.shape_cast %30 : vector<8x64xf32> to vector<1x8x64xf32>
    tpu.vector_store %arg6[%c0_14, %c0_15, %c0_16], %33 {strides = array<i32>} : memref<2x32x64xf32, #tpu.memory_space<vmem>>, vector<1x8x64xf32>,
    %34 = vector.extract_strided_slice %2 {offsets = [0, 64], sizes = [8, 64], strides = [1, 1]} : vector<16x768xf32> to vector<8x64xf32>
    %35 = arith.truncf %34 : vector<8x64xf32> to vector<8x64xbf16>
    %36 = vector.extract_strided_slice %2 {offsets = [0, 320], sizes = [8, 64], strides = [1, 1]} : vector<16x768xf32> to vector<8x64xf32>
    %37 = arith.truncf %36 : vector<8x64xf32> to vector<8x64xbf16>
    %38 = vector.extract_strided_slice %2 {offsets = [0, 576], sizes = [8, 64], strides = [1, 1]} : vector<16x768xf32> to vector<8x64xf32>
    %39 = arith.truncf %38 : vector<8x64xf32> to vector<8x64xbf16>
    %cst_17 = arith.constant dense<0.000000e+00> : vector<64x64xf32>
    %40 = tpu.matmul %35, %37, %cst_17 {dimension_numbers = #tpu.dot_dimension_numbers<[0], [0], [1], [1], [0, 1, 1, 1], [], []>} : vector<8x64xbf16>, vector<8x64xbf16>, vector<64x64xf32> -> vector<64x64xf32>
    %c1 = arith.constant 1 : index
    %c0_18 = arith.constant 0 : index
    %c0_19 = arith.constant 0 : index
    %41 = vector.load %arg3[%c1, %c0_18, %c0_19] : memref<4x64x64xf32, #tpu.memory_space<vmem>>, vector<1x64x64xf32>
    %42 = vector.shape_cast %41 : vector<1x64x64xf32> to vector<64x64xf32>
    %43 = arith.addf %40, %42 : vector<64x64xf32>
    %cst_20 = arith.constant dense<0xFF800000> : vector<64xf32>
    %44 = vector.multi_reduction <maximumf>, %43, %cst_20 [1] : vector<64x64xf32> to vector<64xf32>
    %45 = vector.shape_cast %44 : vector<64xf32> to vector<64x1xf32>
    %46 = vector.broadcast %45 : vector<64x1xf32> to vector<64x64xf32>
    %47 = arith.subf %43, %46 : vector<64x64xf32>
    %48 = math.exp %47 : vector<64x64xf32>
    %cst_21 = arith.constant dense<0.000000e+00> : vector<64xf32>
    %49 = vector.multi_reduction <add>, %48, %cst_21 [1] : vector<64x64xf32> to vector<64xf32>
    %50 = vector.shape_cast %49 : vector<64xf32> to vector<64x1xf32>
    %51 = tpu.reciprocal %50 : vector<64x1xf32> -> vector<64x1xf32>
    %52 = vector.broadcast %51 : vector<64x1xf32> to vector<64x64xf32>
    %53 = arith.mulf %48, %52 : vector<64x64xf32>
    %54 = arith.truncf %53 : vector<64x64xf32> to vector<64x64xbf16>
    %cst_22 = arith.constant dense<0.000000e+00> : vector<8x64xf32>
    %55 = tpu.matmul %39, %54, %cst_22 {dimension_numbers = #tpu.dot_dimension_numbers<[1], [1], [0], [0], [0, 0, 1, 0], [], []>} : vector<8x64xbf16>, vector<64x64xbf16>, vector<8x64xf32> -> vector<8x64xf32>
    %c8 = arith.constant 8 : index
    %c0_23 = arith.constant 0 : index
    %56 = vector.load %arg4[%c8, %c0_23] : memref<32x1xf32, #tpu.memory_space<vmem>>, vector<8x1xf32>
    %57 = vector.broadcast %56 : vector<8x1xf32> to vector<8x64xf32>
    %58 = arith.mulf %55, %57 : vector<8x64xf32>
    %c8_24 = arith.constant 8 : index
    %c0_25 = arith.constant 0 : index
    %59 = vector.load %arg5[%c8_24, %c0_25] : memref<32x1xf32, #tpu.memory_space<vmem>>, vector<8x1xf32>
    %60 = vector.broadcast %59 : vector<8x1xf32> to vector<8x64xf32>
    %61 = arith.addf %58, %60 : vector<8x64xf32>
    %c0_26 = arith.constant 0 : index
    %c8_27 = arith.constant 8 : index
    %c0_28 = arith.constant 0 : index
    %62 = vector.load %arg6[%c0_26, %c8_27, %c0_28] : memref<2x32x64xf32, #tpu.memory_space<vmem>>, vector<1x8x64xf32>
    %63 = vector.shape_cast %62 : vector<1x8x64xf32> to vector<8x64xf32>
    %64 = vector.shape_cast %61 : vector<8x64xf32> to vector<1x8x64xf32>
    tpu.vector_store %arg6[%c0_26, %c8_27, %c0_28], %64 {strides = array<i32>} : memref<2x32x64xf32, #tpu.memory_space<vmem>>, vector<1x8x64xf32>,
    %65 = vector.extract_strided_slice %2 {offsets = [0, 128], sizes = [8, 64], strides = [1, 1]} : vector<16x768xf32> to vector<8x64xf32>
    %66 = arith.truncf %65 : vector<8x64xf32> to vector<8x64xbf16>
    %67 = vector.extract_strided_slice %2 {offsets = [0, 384], sizes = [8, 64], strides = [1, 1]} : vector<16x768xf32> to vector<8x64xf32>
    %68 = arith.truncf %67 : vector<8x64xf32> to vector<8x64xbf16>
    %69 = vector.extract_strided_slice %2 {offsets = [0, 640], sizes = [8, 64], strides = [1, 1]} : vector<16x768xf32> to vector<8x64xf32>
    %70 = arith.truncf %69 : vector<8x64xf32> to vector<8x64xbf16>
    %cst_29 = arith.constant dense<0.000000e+00> : vector<64x64xf32>
    %71 = tpu.matmul %66, %68, %cst_29 {dimension_numbers = #tpu.dot_dimension_numbers<[0], [0], [1], [1], [0, 1, 1, 1], [], []>} : vector<8x64xbf16>, vector<8x64xbf16>, vector<64x64xf32> -> vector<64x64xf32>
    %c2 = arith.constant 2 : index
    %c0_30 = arith.constant 0 : index
    %c0_31 = arith.constant 0 : index
    %72 = vector.load %arg3[%c2, %c0_30, %c0_31] : memref<4x64x64xf32, #tpu.memory_space<vmem>>, vector<1x64x64xf32>
    %73 = vector.shape_cast %72 : vector<1x64x64xf32> to vector<64x64xf32>
    %74 = arith.addf %71, %73 : vector<64x64xf32>
    %cst_32 = arith.constant dense<0xFF800000> : vector<64xf32>
    %75 = vector.multi_reduction <maximumf>, %74, %cst_32 [1] : vector<64x64xf32> to vector<64xf32>
    %76 = vector.shape_cast %75 : vector<64xf32> to vector<64x1xf32>
    %77 = vector.broadcast %76 : vector<64x1xf32> to vector<64x64xf32>
    %78 = arith.subf %74, %77 : vector<64x64xf32>
    %79 = math.exp %78 : vector<64x64xf32>
    %cst_33 = arith.constant dense<0.000000e+00> : vector<64xf32>
    %80 = vector.multi_reduction <add>, %79, %cst_33 [1] : vector<64x64xf32> to vector<64xf32>
    %81 = vector.shape_cast %80 : vector<64xf32> to vector<64x1xf32>
    %82 = tpu.reciprocal %81 : vector<64x1xf32> -> vector<64x1xf32>
    %83 = vector.broadcast %82 : vector<64x1xf32> to vector<64x64xf32>
    %84 = arith.mulf %79, %83 : vector<64x64xf32>
    %85 = arith.truncf %84 : vector<64x64xf32> to vector<64x64xbf16>
    %cst_34 = arith.constant dense<0.000000e+00> : vector<8x64xf32>
    %86 = tpu.matmul %70, %85, %cst_34 {dimension_numbers = #tpu.dot_dimension_numbers<[1], [1], [0], [0], [0, 0, 1, 0], [], []>} : vector<8x64xbf16>, vector<64x64xbf16>, vector<8x64xf32> -> vector<8x64xf32>
    %c16 = arith.constant 16 : index
    %c0_35 = arith.constant 0 : index
    %87 = vector.load %arg4[%c16, %c0_35] : memref<32x1xf32, #tpu.memory_space<vmem>>, vector<8x1xf32>
    %88 = vector.broadcast %87 : vector<8x1xf32> to vector<8x64xf32>
    %89 = arith.mulf %86, %88 : vector<8x64xf32>
    %c16_36 = arith.constant 16 : index
    %c0_37 = arith.constant 0 : index
    %90 = vector.load %arg5[%c16_36, %c0_37] : memref<32x1xf32, #tpu.memory_space<vmem>>, vector<8x1xf32>
    %91 = vector.broadcast %90 : vector<8x1xf32> to vector<8x64xf32>
    %92 = arith.addf %89, %91 : vector<8x64xf32>
    %c0_38 = arith.constant 0 : index
    %c16_39 = arith.constant 16 : index
    %c0_40 = arith.constant 0 : index
    %93 = vector.load %arg6[%c0_38, %c16_39, %c0_40] : memref<2x32x64xf32, #tpu.memory_space<vmem>>, vector<1x8x64xf32>
    %94 = vector.shape_cast %93 : vector<1x8x64xf32> to vector<8x64xf32>
    %95 = vector.shape_cast %92 : vector<8x64xf32> to vector<1x8x64xf32>
    tpu.vector_store %arg6[%c0_38, %c16_39, %c0_40], %95 {strides = array<i32>} : memref<2x32x64xf32, #tpu.memory_space<vmem>>, vector<1x8x64xf32>,
    %96 = vector.extract_strided_slice %2 {offsets = [0, 192], sizes = [8, 64], strides = [1, 1]} : vector<16x768xf32> to vector<8x64xf32>
    %97 = arith.truncf %96 : vector<8x64xf32> to vector<8x64xbf16>
    %98 = vector.extract_strided_slice %2 {offsets = [0, 448], sizes = [8, 64], strides = [1, 1]} : vector<16x768xf32> to vector<8x64xf32>
    %99 = arith.truncf %98 : vector<8x64xf32> to vector<8x64xbf16>
    %100 = vector.extract_strided_slice %2 {offsets = [0, 704], sizes = [8, 64], strides = [1, 1]} : vector<16x768xf32> to vector<8x64xf32>
    %101 = arith.truncf %100 : vector<8x64xf32> to vector<8x64xbf16>
    %cst_41 = arith.constant dense<0.000000e+00> : vector<64x64xf32>
    %102 = tpu.matmul %97, %99, %cst_41 {dimension_numbers = #tpu.dot_dimension_numbers<[0], [0], [1], [1], [0, 1, 1, 1], [], []>} : vector<8x64xbf16>, vector<8x64xbf16>, vector<64x64xf32> -> vector<64x64xf32>
    %c3 = arith.constant 3 : index
    %c0_42 = arith.constant 0 : index
    %c0_43 = arith.constant 0 : index
    %103 = vector.load %arg3[%c3, %c0_42, %c0_43] : memref<4x64x64xf32, #tpu.memory_space<vmem>>, vector<1x64x64xf32>
    %104 = vector.shape_cast %103 : vector<1x64x64xf32> to vector<64x64xf32>
    %105 = arith.addf %102, %104 : vector<64x64xf32>
    %cst_44 = arith.constant dense<0xFF800000> : vector<64xf32>
    %106 = vector.multi_reduction <maximumf>, %105, %cst_44 [1] : vector<64x64xf32> to vector<64xf32>
    %107 = vector.shape_cast %106 : vector<64xf32> to vector<64x1xf32>
    %108 = vector.broadcast %107 : vector<64x1xf32> to vector<64x64xf32>
    %109 = arith.subf %105, %108 : vector<64x64xf32>
    %110 = math.exp %109 : vector<64x64xf32>
    %cst_45 = arith.constant dense<0.000000e+00> : vector<64xf32>
    %111 = vector.multi_reduction <add>, %110, %cst_45 [1] : vector<64x64xf32> to vector<64xf32>
    %112 = vector.shape_cast %111 : vector<64xf32> to vector<64x1xf32>
    %113 = tpu.reciprocal %112 : vector<64x1xf32> -> vector<64x1xf32>
    %114 = vector.broadcast %113 : vector<64x1xf32> to vector<64x64xf32>
    %115 = arith.mulf %110, %114 : vector<64x64xf32>
    %116 = arith.truncf %115 : vector<64x64xf32> to vector<64x64xbf16>
    %cst_46 = arith.constant dense<0.000000e+00> : vector<8x64xf32>
    %117 = tpu.matmul %101, %116, %cst_46 {dimension_numbers = #tpu.dot_dimension_numbers<[1], [1], [0], [0], [0, 0, 1, 0], [], []>} : vector<8x64xbf16>, vector<64x64xbf16>, vector<8x64xf32> -> vector<8x64xf32>
    %c24 = arith.constant 24 : index
    %c0_47 = arith.constant 0 : index
    %118 = vector.load %arg4[%c24, %c0_47] : memref<32x1xf32, #tpu.memory_space<vmem>>, vector<8x1xf32>
    %119 = vector.broadcast %118 : vector<8x1xf32> to vector<8x64xf32>
    %120 = arith.mulf %117, %119 : vector<8x64xf32>
    %c24_48 = arith.constant 24 : index
    %c0_49 = arith.constant 0 : index
    %121 = vector.load %arg5[%c24_48, %c0_49] : memref<32x1xf32, #tpu.memory_space<vmem>>, vector<8x1xf32>
    %122 = vector.broadcast %121 : vector<8x1xf32> to vector<8x64xf32>
    %123 = arith.addf %120, %122 : vector<8x64xf32>
    %c0_50 = arith.constant 0 : index
    %c24_51 = arith.constant 24 : index
    %c0_52 = arith.constant 0 : index
    %124 = vector.load %arg6[%c0_50, %c24_51, %c0_52] : memref<2x32x64xf32, #tpu.memory_space<vmem>>, vector<1x8x64xf32>
    %125 = vector.shape_cast %124 : vector<1x8x64xf32> to vector<8x64xf32>
    %126 = vector.shape_cast %123 : vector<8x64xf32> to vector<1x8x64xf32>
    tpu.vector_store %arg6[%c0_50, %c24_51, %c0_52], %126 {strides = array<i32>} : memref<2x32x64xf32, #tpu.memory_space<vmem>>, vector<1x8x64xf32>,
    %127 = vector.extract_strided_slice %2 {offsets = [8, 0], sizes = [8, 64], strides = [1, 1]} : vector<16x768xf32> to vector<8x64xf32>
    %128 = arith.truncf %127 : vector<8x64xf32> to vector<8x64xbf16>
    %129 = vector.extract_strided_slice %2 {offsets = [8, 256], sizes = [8, 64], strides = [1, 1]} : vector<16x768xf32> to vector<8x64xf32>
    %130 = arith.truncf %129 : vector<8x64xf32> to vector<8x64xbf16>
    %131 = vector.extract_strided_slice %2 {offsets = [8, 512], sizes = [8, 64], strides = [1, 1]} : vector<16x768xf32> to vector<8x64xf32>
    %132 = arith.truncf %131 : vector<8x64xf32> to vector<8x64xbf16>
    %cst_53 = arith.constant dense<0.000000e+00> : vector<64x64xf32>
    %133 = tpu.matmul %128, %130, %cst_53 {dimension_numbers = #tpu.dot_dimension_numbers<[0], [0], [1], [1], [0, 1, 1, 1], [], []>} : vector<8x64xbf16>, vector<8x64xbf16>, vector<64x64xf32> -> vector<64x64xf32>
    %c0_54 = arith.constant 0 : index
    %c0_55 = arith.constant 0 : index
    %c0_56 = arith.constant 0 : index
    %134 = vector.load %arg3[%c0_54, %c0_55, %c0_56] : memref<4x64x64xf32, #tpu.memory_space<vmem>>, vector<1x64x64xf32>
    %135 = vector.shape_cast %134 : vector<1x64x64xf32> to vector<64x64xf32>
    %136 = arith.addf %133, %135 : vector<64x64xf32>
    %cst_57 = arith.constant dense<0xFF800000> : vector<64xf32>
    %137 = vector.multi_reduction <maximumf>, %136, %cst_57 [1] : vector<64x64xf32> to vector<64xf32>
    %138 = vector.shape_cast %137 : vector<64xf32> to vector<64x1xf32>
    %139 = vector.broadcast %138 : vector<64x1xf32> to vector<64x64xf32>
    %140 = arith.subf %136, %139 : vector<64x64xf32>
    %141 = math.exp %140 : vector<64x64xf32>
    %cst_58 = arith.constant dense<0.000000e+00> : vector<64xf32>
    %142 = vector.multi_reduction <add>, %141, %cst_58 [1] : vector<64x64xf32> to vector<64xf32>
    %143 = vector.shape_cast %142 : vector<64xf32> to vector<64x1xf32>
    %144 = tpu.reciprocal %143 : vector<64x1xf32> -> vector<64x1xf32>
    %145 = vector.broadcast %144 : vector<64x1xf32> to vector<64x64xf32>
    %146 = arith.mulf %141, %145 : vector<64x64xf32>
    %147 = arith.truncf %146 : vector<64x64xf32> to vector<64x64xbf16>
    %cst_59 = arith.constant dense<0.000000e+00> : vector<8x64xf32>
    %148 = tpu.matmul %132, %147, %cst_59 {dimension_numbers = #tpu.dot_dimension_numbers<[1], [1], [0], [0], [0, 0, 1, 0], [], []>} : vector<8x64xbf16>, vector<64x64xbf16>, vector<8x64xf32> -> vector<8x64xf32>
    %c0_60 = arith.constant 0 : index
    %c0_61 = arith.constant 0 : index
    %149 = vector.load %arg4[%c0_60, %c0_61] : memref<32x1xf32, #tpu.memory_space<vmem>>, vector<8x1xf32>
    %150 = vector.broadcast %149 : vector<8x1xf32> to vector<8x64xf32>
    %151 = arith.mulf %148, %150 : vector<8x64xf32>
    %c0_62 = arith.constant 0 : index
    %c0_63 = arith.constant 0 : index
    %152 = vector.load %arg5[%c0_62, %c0_63] : memref<32x1xf32, #tpu.memory_space<vmem>>, vector<8x1xf32>
    %153 = vector.broadcast %152 : vector<8x1xf32> to vector<8x64xf32>
    %154 = arith.addf %151, %153 : vector<8x64xf32>
    %c1_64 = arith.constant 1 : index
    %c0_65 = arith.constant 0 : index
    %c0_66 = arith.constant 0 : index
    %155 = vector.load %arg6[%c1_64, %c0_65, %c0_66] : memref<2x32x64xf32, #tpu.memory_space<vmem>>, vector<1x8x64xf32>
    %156 = vector.shape_cast %155 : vector<1x8x64xf32> to vector<8x64xf32>
    %157 = vector.shape_cast %154 : vector<8x64xf32> to vector<1x8x64xf32>
    tpu.vector_store %arg6[%c1_64, %c0_65, %c0_66], %157 {strides = array<i32>} : memref<2x32x64xf32, #tpu.memory_space<vmem>>, vector<1x8x64xf32>,
    %158 = vector.extract_strided_slice %2 {offsets = [8, 64], sizes = [8, 64], strides = [1, 1]} : vector<16x768xf32> to vector<8x64xf32>
    %159 = arith.truncf %158 : vector<8x64xf32> to vector<8x64xbf16>
    %160 = vector.extract_strided_slice %2 {offsets = [8, 320], sizes = [8, 64], strides = [1, 1]} : vector<16x768xf32> to vector<8x64xf32>
    %161 = arith.truncf %160 : vector<8x64xf32> to vector<8x64xbf16>
    %162 = vector.extract_strided_slice %2 {offsets = [8, 576], sizes = [8, 64], strides = [1, 1]} : vector<16x768xf32> to vector<8x64xf32>
    %163 = arith.truncf %162 : vector<8x64xf32> to vector<8x64xbf16>
    %cst_67 = arith.constant dense<0.000000e+00> : vector<64x64xf32>
    %164 = tpu.matmul %159, %161, %cst_67 {dimension_numbers = #tpu.dot_dimension_numbers<[0], [0], [1], [1], [0, 1, 1, 1], [], []>} : vector<8x64xbf16>, vector<8x64xbf16>, vector<64x64xf32> -> vector<64x64xf32>
    %c1_68 = arith.constant 1 : index
    %c0_69 = arith.constant 0 : index
    %c0_70 = arith.constant 0 : index
    %165 = vector.load %arg3[%c1_68, %c0_69, %c0_70] : memref<4x64x64xf32, #tpu.memory_space<vmem>>, vector<1x64x64xf32>
    %166 = vector.shape_cast %165 : vector<1x64x64xf32> to vector<64x64xf32>
    %167 = arith.addf %164, %166 : vector<64x64xf32>
    %cst_71 = arith.constant dense<0xFF800000> : vector<64xf32>
    %168 = vector.multi_reduction <maximumf>, %167, %cst_71 [1] : vector<64x64xf32> to vector<64xf32>
    %169 = vector.shape_cast %168 : vector<64xf32> to vector<64x1xf32>
    %170 = vector.broadcast %169 : vector<64x1xf32> to vector<64x64xf32>
    %171 = arith.subf %167, %170 : vector<64x64xf32>
    %172 = math.exp %171 : vector<64x64xf32>
    %cst_72 = arith.constant dense<0.000000e+00> : vector<64xf32>
    %173 = vector.multi_reduction <add>, %172, %cst_72 [1] : vector<64x64xf32> to vector<64xf32>
    %174 = vector.shape_cast %173 : vector<64xf32> to vector<64x1xf32>
    %175 = tpu.reciprocal %174 : vector<64x1xf32> -> vector<64x1xf32>
    %176 = vector.broadcast %175 : vector<64x1xf32> to vector<64x64xf32>
    %177 = arith.mulf %172, %176 : vector<64x64xf32>
    %178 = arith.truncf %177 : vector<64x64xf32> to vector<64x64xbf16>
    %cst_73 = arith.constant dense<0.000000e+00> : vector<8x64xf32>
    %179 = tpu.matmul %163, %178, %cst_73 {dimension_numbers = #tpu.dot_dimension_numbers<[1], [1], [0], [0], [0, 0, 1, 0], [], []>} : vector<8x64xbf16>, vector<64x64xbf16>, vector<8x64xf32> -> vector<8x64xf32>
    %c8_74 = arith.constant 8 : index
    %c0_75 = arith.constant 0 : index
    %180 = vector.load %arg4[%c8_74, %c0_75] : memref<32x1xf32, #tpu.memory_space<vmem>>, vector<8x1xf32>
    %181 = vector.broadcast %180 : vector<8x1xf32> to vector<8x64xf32>
    %182 = arith.mulf %179, %181 : vector<8x64xf32>
    %c8_76 = arith.constant 8 : index
    %c0_77 = arith.constant 0 : index
    %183 = vector.load %arg5[%c8_76, %c0_77] : memref<32x1xf32, #tpu.memory_space<vmem>>, vector<8x1xf32>
    %184 = vector.broadcast %183 : vector<8x1xf32> to vector<8x64xf32>
    %185 = arith.addf %182, %184 : vector<8x64xf32>
    %c1_78 = arith.constant 1 : index
    %c8_79 = arith.constant 8 : index
    %c0_80 = arith.constant 0 : index
    %186 = vector.load %arg6[%c1_78, %c8_79, %c0_80] : memref<2x32x64xf32, #tpu.memory_space<vmem>>, vector<1x8x64xf32>
    %187 = vector.shape_cast %186 : vector<1x8x64xf32> to vector<8x64xf32>
    %188 = vector.shape_cast %185 : vector<8x64xf32> to vector<1x8x64xf32>
    tpu.vector_store %arg6[%c1_78, %c8_79, %c0_80], %188 {strides = array<i32>} : memref<2x32x64xf32, #tpu.memory_space<vmem>>, vector<1x8x64xf32>,
    %189 = vector.extract_strided_slice %2 {offsets = [8, 128], sizes = [8, 64], strides = [1, 1]} : vector<16x768xf32> to vector<8x64xf32>
    %190 = arith.truncf %189 : vector<8x64xf32> to vector<8x64xbf16>
    %191 = vector.extract_strided_slice %2 {offsets = [8, 384], sizes = [8, 64], strides = [1, 1]} : vector<16x768xf32> to vector<8x64xf32>
    %192 = arith.truncf %191 : vector<8x64xf32> to vector<8x64xbf16>
    %193 = vector.extract_strided_slice %2 {offsets = [8, 640], sizes = [8, 64], strides = [1, 1]} : vector<16x768xf32> to vector<8x64xf32>
    %194 = arith.truncf %193 : vector<8x64xf32> to vector<8x64xbf16>
    %cst_81 = arith.constant dense<0.000000e+00> : vector<64x64xf32>
    %195 = tpu.matmul %190, %192, %cst_81 {dimension_numbers = #tpu.dot_dimension_numbers<[0], [0], [1], [1], [0, 1, 1, 1], [], []>} : vector<8x64xbf16>, vector<8x64xbf16>, vector<64x64xf32> -> vector<64x64xf32>
    %c2_82 = arith.constant 2 : index
    %c0_83 = arith.constant 0 : index
    %c0_84 = arith.constant 0 : index
    %196 = vector.load %arg3[%c2_82, %c0_83, %c0_84] : memref<4x64x64xf32, #tpu.memory_space<vmem>>, vector<1x64x64xf32>
    %197 = vector.shape_cast %196 : vector<1x64x64xf32> to vector<64x64xf32>
    %198 = arith.addf %195, %197 : vector<64x64xf32>
    %cst_85 = arith.constant dense<0xFF800000> : vector<64xf32>
    %199 = vector.multi_reduction <maximumf>, %198, %cst_85 [1] : vector<64x64xf32> to vector<64xf32>
    %200 = vector.shape_cast %199 : vector<64xf32> to vector<64x1xf32>
    %201 = vector.broadcast %200 : vector<64x1xf32> to vector<64x64xf32>
    %202 = arith.subf %198, %201 : vector<64x64xf32>
    %203 = math.exp %202 : vector<64x64xf32>
    %cst_86 = arith.constant dense<0.000000e+00> : vector<64xf32>
    %204 = vector.multi_reduction <add>, %203, %cst_86 [1] : vector<64x64xf32> to vector<64xf32>
    %205 = vector.shape_cast %204 : vector<64xf32> to vector<64x1xf32>
    %206 = tpu.reciprocal %205 : vector<64x1xf32> -> vector<64x1xf32>
    %207 = vector.broadcast %206 : vector<64x1xf32> to vector<64x64xf32>
    %208 = arith.mulf %203, %207 : vector<64x64xf32>
    %209 = arith.truncf %208 : vector<64x64xf32> to vector<64x64xbf16>
    %cst_87 = arith.constant dense<0.000000e+00> : vector<8x64xf32>
    %210 = tpu.matmul %194, %209, %cst_87 {dimension_numbers = #tpu.dot_dimension_numbers<[1], [1], [0], [0], [0, 0, 1, 0], [], []>} : vector<8x64xbf16>, vector<64x64xbf16>, vector<8x64xf32> -> vector<8x64xf32>
    %c16_88 = arith.constant 16 : index
    %c0_89 = arith.constant 0 : index
    %211 = vector.load %arg4[%c16_88, %c0_89] : memref<32x1xf32, #tpu.memory_space<vmem>>, vector<8x1xf32>
    %212 = vector.broadcast %211 : vector<8x1xf32> to vector<8x64xf32>
    %213 = arith.mulf %210, %212 : vector<8x64xf32>
    %c16_90 = arith.constant 16 : index
    %c0_91 = arith.constant 0 : index
    %214 = vector.load %arg5[%c16_90, %c0_91] : memref<32x1xf32, #tpu.memory_space<vmem>>, vector<8x1xf32>
    %215 = vector.broadcast %214 : vector<8x1xf32> to vector<8x64xf32>
    %216 = arith.addf %213, %215 : vector<8x64xf32>
    %c1_92 = arith.constant 1 : index
    %c16_93 = arith.constant 16 : index
    %c0_94 = arith.constant 0 : index
    %217 = vector.load %arg6[%c1_92, %c16_93, %c0_94] : memref<2x32x64xf32, #tpu.memory_space<vmem>>, vector<1x8x64xf32>
    %218 = vector.shape_cast %217 : vector<1x8x64xf32> to vector<8x64xf32>
    %219 = vector.shape_cast %216 : vector<8x64xf32> to vector<1x8x64xf32>
    tpu.vector_store %arg6[%c1_92, %c16_93, %c0_94], %219 {strides = array<i32>} : memref<2x32x64xf32, #tpu.memory_space<vmem>>, vector<1x8x64xf32>,
    %220 = vector.extract_strided_slice %2 {offsets = [8, 192], sizes = [8, 64], strides = [1, 1]} : vector<16x768xf32> to vector<8x64xf32>
    %221 = arith.truncf %220 : vector<8x64xf32> to vector<8x64xbf16>
    %222 = vector.extract_strided_slice %2 {offsets = [8, 448], sizes = [8, 64], strides = [1, 1]} : vector<16x768xf32> to vector<8x64xf32>
    %223 = arith.truncf %222 : vector<8x64xf32> to vector<8x64xbf16>
    %224 = vector.extract_strided_slice %2 {offsets = [8, 704], sizes = [8, 64], strides = [1, 1]} : vector<16x768xf32> to vector<8x64xf32>
    %225 = arith.truncf %224 : vector<8x64xf32> to vector<8x64xbf16>
    %cst_95 = arith.constant dense<0.000000e+00> : vector<64x64xf32>
    %226 = tpu.matmul %221, %223, %cst_95 {dimension_numbers = #tpu.dot_dimension_numbers<[0], [0], [1], [1], [0, 1, 1, 1], [], []>} : vector<8x64xbf16>, vector<8x64xbf16>, vector<64x64xf32> -> vector<64x64xf32>
    %c3_96 = arith.constant 3 : index
    %c0_97 = arith.constant 0 : index
    %c0_98 = arith.constant 0 : index
    %227 = vector.load %arg3[%c3_96, %c0_97, %c0_98] : memref<4x64x64xf32, #tpu.memory_space<vmem>>, vector<1x64x64xf32>
    %228 = vector.shape_cast %227 : vector<1x64x64xf32> to vector<64x64xf32>
    %229 = arith.addf %226, %228 : vector<64x64xf32>
    %cst_99 = arith.constant dense<0xFF800000> : vector<64xf32>
    %230 = vector.multi_reduction <maximumf>, %229, %cst_99 [1] : vector<64x64xf32> to vector<64xf32>
    %231 = vector.shape_cast %230 : vector<64xf32> to vector<64x1xf32>
    %232 = vector.broadcast %231 : vector<64x1xf32> to vector<64x64xf32>
    %233 = arith.subf %229, %232 : vector<64x64xf32>
    %234 = math.exp %233 : vector<64x64xf32>
    %cst_100 = arith.constant dense<0.000000e+00> : vector<64xf32>
    %235 = vector.multi_reduction <add>, %234, %cst_100 [1] : vector<64x64xf32> to vector<64xf32>
    %236 = vector.shape_cast %235 : vector<64xf32> to vector<64x1xf32>
    %237 = tpu.reciprocal %236 : vector<64x1xf32> -> vector<64x1xf32>
    %238 = vector.broadcast %237 : vector<64x1xf32> to vector<64x64xf32>
    %239 = arith.mulf %234, %238 : vector<64x64xf32>
    %240 = arith.truncf %239 : vector<64x64xf32> to vector<64x64xbf16>
    %cst_101 = arith.constant dense<0.000000e+00> : vector<8x64xf32>
    %241 = tpu.matmul %225, %240, %cst_101 {dimension_numbers = #tpu.dot_dimension_numbers<[1], [1], [0], [0], [0, 0, 1, 0], [], []>} : vector<8x64xbf16>, vector<64x64xbf16>, vector<8x64xf32> -> vector<8x64xf32>
    %c24_102 = arith.constant 24 : index
    %c0_103 = arith.constant 0 : index
    %242 = vector.load %arg4[%c24_102, %c0_103] : memref<32x1xf32, #tpu.memory_space<vmem>>, vector<8x1xf32>
    %243 = vector.broadcast %242 : vector<8x1xf32> to vector<8x64xf32>
    %244 = arith.mulf %241, %243 : vector<8x64xf32>
    %c24_104 = arith.constant 24 : index
    %c0_105 = arith.constant 0 : index
    %245 = vector.load %arg5[%c24_104, %c0_105] : memref<32x1xf32, #tpu.memory_space<vmem>>, vector<8x1xf32>
    %246 = vector.broadcast %245 : vector<8x1xf32> to vector<8x64xf32>
    %247 = arith.addf %244, %246 : vector<8x64xf32>
    %c1_106 = arith.constant 1 : index
    %c24_107 = arith.constant 24 : index
    %c0_108 = arith.constant 0 : index
    %248 = vector.load %arg6[%c1_106, %c24_107, %c0_108] : memref<2x32x64xf32, #tpu.memory_space<vmem>>, vector<1x8x64xf32>
    %249 = vector.shape_cast %248 : vector<1x8x64xf32> to vector<8x64xf32>
    %250 = vector.shape_cast %247 : vector<8x64xf32> to vector<1x8x64xf32>
    tpu.vector_store %arg6[%c1_106, %c24_107, %c0_108], %250 {strides = array<i32>} : memref<2x32x64xf32, #tpu.memory_space<vmem>>, vector<1x8x64xf32>,
    return
  }
  func.func @transform_0(%arg0: i32) -> (i32, i32) {
    %c0_i32 = arith.constant 0 : i32
    %c0_i32_0 = arith.constant 0 : i32
    return %arg0, %c0_i32 : i32, i32
  }
  func.func @transform_1(%arg0: i32) -> (i32, i32) {
    %c0_i32 = arith.constant 0 : i32
    %c0_i32_0 = arith.constant 0 : i32
    %c0_i32_1 = arith.constant 0 : i32
    return %c0_i32, %c0_i32_0 : i32, i32
  }
  func.func @transform_2(%arg0: i32) -> (i32, i32, i32) {
    %c0_i32 = arith.constant 0 : i32
    %c0_i32_0 = arith.constant 0 : i32
    %c0_i32_1 = arith.constant 0 : i32
    %c0_i32_2 = arith.constant 0 : i32
    return %c0_i32, %c0_i32_0, %c0_i32_1 : i32, i32, i32
  }
  func.func @transform_3(%arg0: i32) -> (i32, i32) {
    %c0_i32 = arith.constant 0 : i32
    %c0_i32_0 = arith.constant 0 : i32
    %c0_i32_1 = arith.constant 0 : i32
    return %c0_i32, %c0_i32_0 : i32, i32
  }
  func.func @transform_4(%arg0: i32) -> (i32, i32) {
    %c0_i32 = arith.constant 0 : i32
    %c0_i32_0 = arith.constant 0 : i32
    %c0_i32_1 = arith.constant 0 : i32
    return %c0_i32, %c0_i32_0 : i32, i32
  }
  func.func @transform_5(%arg0: i32) -> (i32, i32, i32) {
    %c0_i32 = arith.constant 0 : i32
    %c0_i32_0 = arith.constant 0 : i32
    %c0_i32_1 = arith.constant 0 : i32
    return %arg0, %c0_i32, %c0_i32_0 : i32, i32, i32
  }
}

</mosaic_0001>

<llo_original>
// kernel: window_attention_conv2qkv.1
$region0: #{window_attention_conv2qkv.1}
  #allocation0 [shape = 'u32[]', space=smem, size = 0x4, offset = 0x4, fixed_abs, tag = 'smem constant byte address 0x4 - core index']
  #allocation1 [shape = 'u32[144,128]{1,0:T(1,128)}', space=vmem, size = 0x12000, scoped, tag = 'internal scratch']
  %s0 = inlined_call_operand.vmem [shape: bf16[32,256], index: 0, kind: input, shape index: {}]
  %s1 = inlined_call_operand.vmem [shape: bf16[768,256], index: 1, kind: input, shape index: {}]
  %s2 = inlined_call_operand.vmem [shape: f32[4,64,64], index: 2, kind: input, shape index: {}]
  %s3 = inlined_call_operand.vmem [shape: f32[32,1], index: 3, kind: input, shape index: {}]
  %s4 = inlined_call_operand.vmem [shape: f32[32,1], index: 4, kind: input, shape index: {}]
  %s5 = inlined_call_operand.vmem [shape: f32[4,32,64], index: 5, kind: output, shape index: {}]
  %s6 = sld [smem:[#allocation0]]
  $region53: #{window_attention_conv2qkv.1} parent=0
    _
  %s8 = ssub.s32 1, %s6
  %s9 = scalar_select 0, %s8, %s6
  loop: start=0, step=1, limit=4
  $region2: #{window_attention_conv2qkv.1} parent=0 // loop_pre_header
    _
  $region3: #{window_attention_conv2qkv.1} parent=0 // loop_header
    %s11 = sphi 0, %s15
    %p12 = scmp.ge.s32.totalorder %s11, 4
    %s21 = sphi 0, %s23
    %s24 = sphi 0, %s21
    %s25 = sphi 0, %s24
    %s41 = sphi 0, %s25
    %s45 = sphi 0, %s45
    %s47 = sphi 0, %s45
    %s48 = sphi 0, %s47
    %s62 = sphi 0, %s48
    %s66 = sphi 0, %s66
    %s68 = sphi 0, %s66
    %s69 = sphi 0, %s68
    %s83 = sphi 0, %s69
    %s87 = sphi 0, %s87
    %s89 = sphi 0, %s87
    %s90 = sphi 0, %s89
    %s104 = sphi 0, %s90
    %s108 = sphi 0, %s108
    %s110 = sphi 0, %s108
    %s111 = sphi 0, %s110
    %s125 = sphi 0, %s111
    %s131 = sphi 0, %s133
    %s134 = sphi 0, %s131
    %s135 = sphi 0, %s134
    %s151 = sphi 0, %s135
  $region4: #{window_attention_conv2qkv.1} parent=0 // loop_header_branch
    %14 = sbr.rel (%p12) target = $region8
  $region5: #{window_attention_conv2qkv.1} parent=0 // loop_body
    %s16 = ssub.s32 %s11, 1
    %s17 = ssub.s32 %s11, 2
    %s18 = sadd.s32 %s11, 1
    %s19 = ssub.s32 %s11, %s18
    %p20 = scmp.eq.s32.totalorder %s19, 0
    %s22 = sadd.s32 %s21, 1
    %s23 = scalar_select %p20, %s21, %s22
    %p26 = pneg %p20
    %p27 = scmp.eq.s32.totalorder %s11, 1
    %p28 = por %p26, %p27
    %p29 = scmp.ne.s32.totalorder %s21, %s24
    %p30 = scmp.eq.s32.totalorder %s11, 0
    %p31 = por %p29, %p30
    %p32 = scmp.ne.s32.totalorder %s21, %s24
    %p33 = scmp.eq.s32.totalorder %s16, 1
    %p34 = por %p32, %p33
    %p35 = scmp.ne.s32.totalorder %s24, %s25
    %p36 = scmp.eq.s32.totalorder %s16, 0
    %p37 = por %p35, %p36
    %p38 = scmp.ne.s32.totalorder %s24, %s25
    %p39 = scmp.eq.s32.totalorder %s17, 1
    %p40 = por %p38, %p39
    %p42 = scmp.ne.s32.totalorder %s25, %s41
    %p43 = scmp.eq.s32.totalorder %s17, 0
    %p44 = por %p42, %p43
    %s46 = sadd.s32 %s45, 1
    %p49 = scmp.eq.s32.totalorder %s11, 1
    %p50 = scmp.ne.s32.totalorder %s45, %s47
    %p51 = scmp.eq.s32.totalorder %s11, 0
    %p52 = por %p50, %p51
    %p53 = scmp.ne.s32.totalorder %s45, %s47
    %p54 = scmp.eq.s32.totalorder %s16, 1
    %p55 = por %p53, %p54
    %p56 = scmp.ne.s32.totalorder %s47, %s48
    %p57 = scmp.eq.s32.totalorder %s16, 0
    %p58 = por %p56, %p57
    %p59 = scmp.ne.s32.totalorder %s47, %s48
    %p60 = scmp.eq.s32.totalorder %s17, 1
    %p61 = por %p59, %p60
    %p63 = scmp.ne.s32.totalorder %s48, %s62
    %p64 = scmp.eq.s32.totalorder %s17, 0
    %p65 = por %p63, %p64
    %s67 = sadd.s32 %s66, 1
    %p70 = scmp.eq.s32.totalorder %s11, 1
    %p71 = scmp.ne.s32.totalorder %s66, %s68
    %p72 = scmp.eq.s32.totalorder %s11, 0
    %p73 = por %p71, %p72
    %p74 = scmp.ne.s32.totalorder %s66, %s68
    %p75 = scmp.eq.s32.totalorder %s16, 1
    %p76 = por %p74, %p75
    %p77 = scmp.ne.s32.totalorder %s68, %s69
    %p78 = scmp.eq.s32.totalorder %s16, 0
    %p79 = por %p77, %p78
    %p80 = scmp.ne.s32.totalorder %s68, %s69
    %p81 = scmp.eq.s32.totalorder %s17, 1
    %p82 = por %p80, %p81
    %p84 = scmp.ne.s32.totalorder %s69, %s83
    %p85 = scmp.eq.s32.totalorder %s17, 0
    %p86 = por %p84, %p85
    %s88 = sadd.s32 %s87, 1
    %p91 = scmp.eq.s32.totalorder %s11, 1
    %p92 = scmp.ne.s32.totalorder %s87, %s89
    %p93 = scmp.eq.s32.totalorder %s11, 0
    %p94 = por %p92, %p93
    %p95 = scmp.ne.s32.totalorder %s87, %s89
    %p96 = scmp.eq.s32.totalorder %s16, 1
    %p97 = por %p95, %p96
    %p98 = scmp.ne.s32.totalorder %s89, %s90
    %p99 = scmp.eq.s32.totalorder %s16, 0
    %p100 = por %p98, %p99
    %p101 = scmp.ne.s32.totalorder %s89, %s90
    %p102 = scmp.eq.s32.totalorder %s17, 1
    %p103 = por %p101, %p102
    %p105 = scmp.ne.s32.totalorder %s90, %s104
    %p106 = scmp.eq.s32.totalorder %s17, 0
    %p107 = por %p105, %p106
    %s109 = sadd.s32 %s108, 1
    %p112 = scmp.eq.s32.totalorder %s11, 1
    %p113 = scmp.ne.s32.totalorder %s108, %s110
    %p114 = scmp.eq.s32.totalorder %s11, 0
    %p115 = por %p113, %p114
    %p116 = scmp.ne.s32.totalorder %s108, %s110
    %p117 = scmp.eq.s32.totalorder %s16, 1
    %p118 = por %p116, %p117
    %p119 = scmp.ne.s32.totalorder %s110, %s111
    %p120 = scmp.eq.s32.totalorder %s16, 0
    %p121 = por %p119, %p120
    %p122 = scmp.ne.s32.totalorder %s110, %s111
    %p123 = scmp.eq.s32.totalorder %s17, 1
    %p124 = por %p122, %p123
    %p126 = scmp.ne.s32.totalorder %s111, %s125
    %p127 = scmp.eq.s32.totalorder %s17, 0
    %p128 = por %p126, %p127
    %s129 = ssub.s32 %s11, %s18
    %p130 = scmp.eq.s32.totalorder %s129, 0
    %s132 = sadd.s32 %s131, 1
    %s133 = scalar_select %p130, %s131, %s132
    %p136 = pneg %p130
    %p137 = scmp.eq.s32.totalorder %s11, 1
    %p138 = por %p136, %p137
    %p139 = scmp.ne.s32.totalorder %s131, %s134
    %p140 = scmp.eq.s32.totalorder %s11, 0
    %p141 = por %p139, %p140
    %p142 = scmp.ne.s32.totalorder %s131, %s134
    %p143 = scmp.eq.s32.totalorder %s16, 1
    %p144 = por %p142, %p143
    %p145 = scmp.ne.s32.totalorder %s134, %s135
    %p146 = scmp.eq.s32.totalorder %s16, 0
    %p147 = por %p145, %p146
    %p148 = scmp.ne.s32.totalorder %s134, %s135
    %p149 = scmp.eq.s32.totalorder %s17, 1
    %p150 = por %p148, %p149
    %p152 = scmp.ne.s32.totalorder %s135, %s151
    %p153 = scmp.eq.s32.totalorder %s17, 0
    %p154 = por %p152, %p153
    %p155 = scmp.le.s32.totalorder 1, %s11
    %p156 = scmp.lt.s32.totalorder %s11, 3
    %p157 = pnand %p155, %p156
    %p158 = pneg %p157
    // Predicated region
    $region9: #{window_attention_conv2qkv.1} parent=5 // pred_check
      _
    $region10: #{window_attention_conv2qkv.1} parent=5 // pred_check_branch
      %160 = sbr.rel (%p157) target = $region12
    $region11: #{window_attention_conv2qkv.1} parent=5 // pred_region
      %s161 = ssub.s32 %s11, 1
      // Predicated region
      $region13: #{window_attention_conv2qkv.1} parent=11 // pred_check
        %p162 = pneg %p58
      $region14: #{window_attention_conv2qkv.1} parent=11 // pred_check_branch
        %164 = sbr.rel (%p162) target = $region16
      $region15: #{window_attention_conv2qkv.1} parent=11 // pred_region
        _
      $region16: #{window_attention_conv2qkv.1} parent=11 // pred_fallthru
        _
      // Predicated region
      $region17: #{window_attention_conv2qkv.1} parent=11 // pred_check
        %p165 = pneg %p79
      $region18: #{window_attention_conv2qkv.1} parent=11 // pred_check_branch
        %167 = sbr.rel (%p165) target = $region20
      $region19: #{window_attention_conv2qkv.1} parent=11 // pred_region
        _
      $region20: #{window_attention_conv2qkv.1} parent=11 // pred_fallthru
        _
      // Predicated region
      $region21: #{window_attention_conv2qkv.1} parent=11 // pred_check
        %p168 = pneg %p100
      $region22: #{window_attention_conv2qkv.1} parent=11 // pred_check_branch
        %170 = sbr.rel (%p168) target = $region24
      $region23: #{window_attention_conv2qkv.1} parent=11 // pred_region
        _
      $region24: #{window_attention_conv2qkv.1} parent=11 // pred_fallthru
        _
      // Predicated region
      $region25: #{window_attention_conv2qkv.1} parent=11 // pred_check
        %p171 = pneg %p121
      $region26: #{window_attention_conv2qkv.1} parent=11 // pred_check_branch
        %173 = sbr.rel (%p171) target = $region28
      $region27: #{window_attention_conv2qkv.1} parent=11 // pred_region
        _
      $region28: #{window_attention_conv2qkv.1} parent=11 // pred_fallthru
        _
    $region12: #{window_attention_conv2qkv.1} parent=5 // pred_fallthru
      _
    %p174 = scmp.lt.s32.totalorder %s11, 2
    // Predicated region
    $region29: #{window_attention_conv2qkv.1} parent=5 // pred_check
      %p175 = pneg %p174
    $region30: #{window_attention_conv2qkv.1} parent=5 // pred_check_branch
      %177 = sbr.rel (%p175) target = $region32
    $region31: #{window_attention_conv2qkv.1} parent=5 // pred_region
      // Predicated region
      $region33: #{window_attention_conv2qkv.1} parent=31 // pred_check
        %p178 = pneg %p31
      $region34: #{window_attention_conv2qkv.1} parent=31 // pred_check_branch
        %180 = sbr.rel (%p178) target = $region36
      $region35: #{window_attention_conv2qkv.1} parent=31 // pred_region
        %s181 = smul.u32 2, %s11
        %p182 = scmp.lt.s32.totalorder %s181, 3
        %s183 = scalar_select %p182, %s181, 3
        %s184 = smul.addr %s183, 2
        %s185 = smul.addr %s184, 4
        %s186 = scalar_lea.vmem %s0, %s185
        %s187 = smul.u32 2, %s11
      $region36: #{window_attention_conv2qkv.1} parent=31 // pred_fallthru
        _
    $region32: #{window_attention_conv2qkv.1} parent=5 // pred_fallthru
      _
    %p188 = scmp.le.s32.totalorder 1, %s11
    %p189 = scmp.lt.s32.totalorder %s11, 3
    %p190 = pnand %p188, %p189
    %p191 = pneg %p190
    // Predicated region
    $region37: #{window_attention_conv2qkv.1} parent=5 // pred_check
      _
    $region38: #{window_attention_conv2qkv.1} parent=5 // pred_check_branch
      %193 = sbr.rel (%p190) target = $region40
    $region39: #{window_attention_conv2qkv.1} parent=5 // pred_region
      %s194 = ssub.s32 %s11, 1
      %s195 = smul.u32 2, %s16
      %p196 = scmp.lt.s32.totalorder %s195, 3
      %s197 = scalar_select %p196, %s195, 3
      %s198 = smul.addr %s197, 2
      %s199 = smul.addr %s198, 4
      %s200 = scalar_lea.vmem %s0, %s199
      %p201 = pneg %p37
      %p202 = pneg %p34
      %p203 = pneg %p58
      %p204 = pneg %p55
      %p205 = pneg %p79
      %p206 = pneg %p76
      %p207 = pneg %p100
      %p208 = pneg %p97
      %p209 = pneg %p121
      %p210 = pneg %p118
      %p211 = pneg %p147
      %p212 = pneg %p144
      %s213 = smul.u32 2, %s16
      %p214 = scmp.lt.s32.totalorder %s213, 3
      %s215 = scalar_select %p214, %s213, 3
      %s216 = smul.addr %s215, 4
      %s217 = smul.addr %s216, 8
      %s218 = scalar_lea.vmem %s5, %s217
      %s219 = smul.u32 2, %s16
      %p220 = scmp.lt.s32.totalorder %s219, 3
      %s221 = scalar_select %p220, %s219, 3
      %s222 = smul.addr %s221, 2
      %s223 = smul.addr %s222, 4
      %s224 = scalar_lea.vmem %s0, %s223
      %s225 = smul.u32 2, %s16
      %s226 = smul.u32 2, %s16
      %p227 = scmp.lt.s32.totalorder %s226, 3
      %s228 = scalar_select %p227, %s226, 3
      %s229 = smul.addr %s228, 4
      %s230 = smul.addr %s229, 8
      %s231 = scalar_lea.vmem %s5, %s230
      %s232 = smul.u32 2, %s16
      %v234 = vld [vmem:[%s224] sm:$0xff]
      %v235 = vld [vmem:[%s224 + $0x8] sm:$0xff]
      %v236 = vld [vmem:[%s1] sm:$0xff]
      %v237 = vld [vmem:[%s1 + $0x8] sm:$0xff]
      %v238 = vld [vmem:[%s1 + $0x10] sm:$0xff]
      %v239 = vld [vmem:[%s1 + $0x18] sm:$0xff]
      %v240 = vld [vmem:[%s1 + $0x20] sm:$0xff]
      %v241 = vld [vmem:[%s1 + $0x28] sm:$0xff]
      %v242 = vld [vmem:[%s1 + $0x30] sm:$0xff]
      %v243 = vld [vmem:[%s1 + $0x38] sm:$0xff]
      %v244 = vld [vmem:[%s1 + $0x40] sm:$0xff]
      %v245 = vld [vmem:[%s1 + $0x48] sm:$0xff]
      %v246 = vld [vmem:[%s1 + $0x50] sm:$0xff]
      %v247 = vld [vmem:[%s1 + $0x58] sm:$0xff]
      %v248 = vld [vmem:[%s1 + $0x60] sm:$0xff]
      %v249 = vld [vmem:[%s1 + $0x68] sm:$0xff]
      %v250 = vld [vmem:[%s1 + $0x70] sm:$0xff]
      %v251 = vld [vmem:[%s1 + $0x78] sm:$0xff]
      %v252 = vld [vmem:[%s1 + $0x80] sm:$0xff]
      %v253 = vld [vmem:[%s1 + $0x88] sm:$0xff]
      %v254 = vld [vmem:[%s1 + $0x90] sm:$0xff]
      %v255 = vld [vmem:[%s1 + $0x98] sm:$0xff]
      %v256 = vld [vmem:[%s1 + $0xa0] sm:$0xff]
      %v257 = vld [vmem:[%s1 + $0xa8] sm:$0xff]
      %v258 = vld [vmem:[%s1 + $0xb0] sm:$0xff]
      %v259 = vld [vmem:[%s1 + $0xb8] sm:$0xff]
      %v260 = vld [vmem:[%s1 + $0xc0] sm:$0xff]
      %v261 = vld [vmem:[%s1 + $0xc8] sm:$0xff]
      %v262 = vld [vmem:[%s1 + $0xd0] sm:$0xff]
      %v263 = vld [vmem:[%s1 + $0xd8] sm:$0xff]
      %v264 = vld [vmem:[%s1 + $0xe0] sm:$0xff]
      %v265 = vld [vmem:[%s1 + $0xe8] sm:$0xff]
      %v266 = vld [vmem:[%s1 + $0xf0] sm:$0xff]
      %v267 = vld [vmem:[%s1 + $0xf8] sm:$0xff]
      %v268 = vld [vmem:[%s1 + $0x100] sm:$0xff]
      %v269 = vld [vmem:[%s1 + $0x108] sm:$0xff]
      %v270 = vld [vmem:[%s1 + $0x110] sm:$0xff]
      %v271 = vld [vmem:[%s1 + $0x118] sm:$0xff]
      %v272 = vld [vmem:[%s1 + $0x120] sm:$0xff]
      %v273 = vld [vmem:[%s1 + $0x128] sm:$0xff]
      %v274 = vld [vmem:[%s1 + $0x130] sm:$0xff]
      %v275 = vld [vmem:[%s1 + $0x138] sm:$0xff]
      %v276 = vld [vmem:[%s1 + $0x140] sm:$0xff]
      %v277 = vld [vmem:[%s1 + $0x148] sm:$0xff]
      %v278 = vld [vmem:[%s1 + $0x150] sm:$0xff]
      %v279 = vld [vmem:[%s1 + $0x158] sm:$0xff]
      %v280 = vld [vmem:[%s1 + $0x160] sm:$0xff]
      %v281 = vld [vmem:[%s1 + $0x168] sm:$0xff]
      %v282 = vld [vmem:[%s1 + $0x170] sm:$0xff]
      %v283 = vld [vmem:[%s1 + $0x178] sm:$0xff]
      %v284 = vld [vmem:[%s1 + $0x180] sm:$0xff]
      %v285 = vld [vmem:[%s1 + $0x188] sm:$0xff]
      %v286 = vld [vmem:[%s1 + $0x190] sm:$0xff]
      %v287 = vld [vmem:[%s1 + $0x198] sm:$0xff]
      %v288 = vld [vmem:[%s1 + $0x1a0] sm:$0xff]
      %v289 = vld [vmem:[%s1 + $0x1a8] sm:$0xff]
      %v290 = vld [vmem:[%s1 + $0x1b0] sm:$0xff]
      %v291 = vld [vmem:[%s1 + $0x1b8] sm:$0xff]
      %v292 = vld [vmem:[%s1 + $0x1c0] sm:$0xff]
      %v293 = vld [vmem:[%s1 + $0x1c8] sm:$0xff]
      %v294 = vld [vmem:[%s1 + $0x1d0] sm:$0xff]
      %v295 = vld [vmem:[%s1 + $0x1d8] sm:$0xff]
      %v296 = vld [vmem:[%s1 + $0x1e0] sm:$0xff]
      %v297 = vld [vmem:[%s1 + $0x1e8] sm:$0xff]
      %v298 = vld [vmem:[%s1 + $0x1f0] sm:$0xff]
      %v299 = vld [vmem:[%s1 + $0x1f8] sm:$0xff]
      %v300 = vld [vmem:[%s1 + $0x200] sm:$0xff]
      %v301 = vld [vmem:[%s1 + $0x208] sm:$0xff]
      %v302 = vld [vmem:[%s1 + $0x210] sm:$0xff]
      %v303 = vld [vmem:[%s1 + $0x218] sm:$0xff]
      %v304 = vld [vmem:[%s1 + $0x220] sm:$0xff]
      %v305 = vld [vmem:[%s1 + $0x228] sm:$0xff]
      %v306 = vld [vmem:[%s1 + $0x230] sm:$0xff]
      %v307 = vld [vmem:[%s1 + $0x238] sm:$0xff]
      %v308 = vld [vmem:[%s1 + $0x240] sm:$0xff]
      %v309 = vld [vmem:[%s1 + $0x248] sm:$0xff]
      %v310 = vld [vmem:[%s1 + $0x250] sm:$0xff]
      %v311 = vld [vmem:[%s1 + $0x258] sm:$0xff]
      %v312 = vld [vmem:[%s1 + $0x260] sm:$0xff]
      %v313 = vld [vmem:[%s1 + $0x268] sm:$0xff]
      %v314 = vld [vmem:[%s1 + $0x270] sm:$0xff]
      %v315 = vld [vmem:[%s1 + $0x278] sm:$0xff]
      %v316 = vld [vmem:[%s1 + $0x280] sm:$0xff]
      %v317 = vld [vmem:[%s1 + $0x288] sm:$0xff]
      %v318 = vld [vmem:[%s1 + $0x290] sm:$0xff]
      %v319 = vld [vmem:[%s1 + $0x298] sm:$0xff]
      %v320 = vld [vmem:[%s1 + $0x2a0] sm:$0xff]
      %v321 = vld [vmem:[%s1 + $0x2a8] sm:$0xff]
      %v322 = vld [vmem:[%s1 + $0x2b0] sm:$0xff]
      %v323 = vld [vmem:[%s1 + $0x2b8] sm:$0xff]
      %v324 = vld [vmem:[%s1 + $0x2c0] sm:$0xff]
      %v325 = vld [vmem:[%s1 + $0x2c8] sm:$0xff]
      %v326 = vld [vmem:[%s1 + $0x2d0] sm:$0xff]
      %v327 = vld [vmem:[%s1 + $0x2d8] sm:$0xff]
      %v328 = vld [vmem:[%s1 + $0x2e0] sm:$0xff]
      %v329 = vld [vmem:[%s1 + $0x2e8] sm:$0xff]
      %v330 = vld [vmem:[%s1 + $0x2f0] sm:$0xff]
      %v331 = vld [vmem:[%s1 + $0x2f8] sm:$0xff]
      %v334 = vunpack.c.l.b16 %v234
      %v335 = vunpack.c.h.b16 %v234
      %v336 = vunpack.c.l.b16 %v235
      %v337 = vunpack.c.h.b16 %v235
      %v338 = vpack.c.b16 %v336, %v334
      %v339 = vpack.c.b16 %v337, %v335
      %v438 = vunpack.c.l.b16 %v236
      %v439 = vunpack.c.h.b16 %v236
      %v440 = vunpack.c.l.b16 %v237
      %v441 = vunpack.c.h.b16 %v237
      %v442 = vunpack.c.l.b16 %v238
      %v443 = vunpack.c.h.b16 %v238
      %v444 = vunpack.c.l.b16 %v239
      %v445 = vunpack.c.h.b16 %v239
      %v446 = vunpack.c.l.b16 %v240
      %v447 = vunpack.c.h.b16 %v240
      %v448 = vunpack.c.l.b16 %v241
      %v449 = vunpack.c.h.b16 %v241
      %v450 = vunpack.c.l.b16 %v242
      %v451 = vunpack.c.h.b16 %v242
      %v452 = vunpack.c.l.b16 %v243
      %v453 = vunpack.c.h.b16 %v243
      %v454 = vunpack.c.l.b16 %v244
      %v455 = vunpack.c.h.b16 %v244
      %v456 = vunpack.c.l.b16 %v245
      %v457 = vunpack.c.h.b16 %v245
      %v458 = vunpack.c.l.b16 %v246
      %v459 = vunpack.c.h.b16 %v246
      %v460 = vunpack.c.l.b16 %v247
      %v461 = vunpack.c.h.b16 %v247
      %v462 = vunpack.c.l.b16 %v248
      %v463 = vunpack.c.h.b16 %v248
      %v464 = vunpack.c.l.b16 %v249
      %v465 = vunpack.c.h.b16 %v249
      %v466 = vunpack.c.l.b16 %v250
      %v467 = vunpack.c.h.b16 %v250
      %v468 = vunpack.c.l.b16 %v251
      %v469 = vunpack.c.h.b16 %v251
      %v470 = vunpack.c.l.b16 %v252
      %v471 = vunpack.c.h.b16 %v252
      %v472 = vunpack.c.l.b16 %v253
      %v473 = vunpack.c.h.b16 %v253
      %v474 = vunpack.c.l.b16 %v254
      %v475 = vunpack.c.h.b16 %v254
      %v476 = vunpack.c.l.b16 %v255
      %v477 = vunpack.c.h.b16 %v255
      %v478 = vunpack.c.l.b16 %v256
      %v479 = vunpack.c.h.b16 %v256
      %v480 = vunpack.c.l.b16 %v257
      %v481 = vunpack.c.h.b16 %v257
      %v482 = vunpack.c.l.b16 %v258
      %v483 = vunpack.c.h.b16 %v258
      %v484 = vunpack.c.l.b16 %v259
      %v485 = vunpack.c.h.b16 %v259
      %v486 = vunpack.c.l.b16 %v260
      %v487 = vunpack.c.h.b16 %v260
      %v488 = vunpack.c.l.b16 %v261
      %v489 = vunpack.c.h.b16 %v261
      %v490 = vunpack.c.l.b16 %v262
      %v491 = vunpack.c.h.b16 %v262
      %v492 = vunpack.c.l.b16 %v263
      %v493 = vunpack.c.h.b16 %v263
      %v494 = vunpack.c.l.b16 %v264
      %v495 = vunpack.c.h.b16 %v264
      %v496 = vunpack.c.l.b16 %v265
      %v497 = vunpack.c.h.b16 %v265
      %v498 = vunpack.c.l.b16 %v266
      %v499 = vunpack.c.h.b16 %v266
      %v500 = vunpack.c.l.b16 %v267
      %v501 = vunpack.c.h.b16 %v267
      %v502 = vunpack.c.l.b16 %v268
      %v503 = vunpack.c.h.b16 %v268
      %v504 = vunpack.c.l.b16 %v269
      %v505 = vunpack.c.h.b16 %v269
      %v506 = vunpack.c.l.b16 %v270
      %v507 = vunpack.c.h.b16 %v270
      %v508 = vunpack.c.l.b16 %v271
      %v509 = vunpack.c.h.b16 %v271
      %v510 = vunpack.c.l.b16 %v272
      %v511 = vunpack.c.h.b16 %v272
      %v512 = vunpack.c.l.b16 %v273
      %v513 = vunpack.c.h.b16 %v273
      %v514 = vunpack.c.l.b16 %v274
      %v515 = vunpack.c.h.b16 %v274
      %v516 = vunpack.c.l.b16 %v275
      %v517 = vunpack.c.h.b16 %v275
      %v518 = vunpack.c.l.b16 %v276
      %v519 = vunpack.c.h.b16 %v276
      %v520 = vunpack.c.l.b16 %v277
      %v521 = vunpack.c.h.b16 %v277
      %v522 = vunpack.c.l.b16 %v278
      %v523 = vunpack.c.h.b16 %v278
      %v524 = vunpack.c.l.b16 %v279
      %v525 = vunpack.c.h.b16 %v279
      %v526 = vunpack.c.l.b16 %v280
      %v527 = vunpack.c.h.b16 %v280
      %v528 = vunpack.c.l.b16 %v281
      %v529 = vunpack.c.h.b16 %v281
      %v530 = vunpack.c.l.b16 %v282
      %v531 = vunpack.c.h.b16 %v282
      %v532 = vunpack.c.l.b16 %v283
      %v533 = vunpack.c.h.b16 %v283
      %v534 = vunpack.c.l.b16 %v284
      %v535 = vunpack.c.h.b16 %v284
      %v536 = vunpack.c.l.b16 %v285
      %v537 = vunpack.c.h.b16 %v285
      %v538 = vunpack.c.l.b16 %v286
      %v539 = vunpack.c.h.b16 %v286
      %v540 = vunpack.c.l.b16 %v287
      %v541 = vunpack.c.h.b16 %v287
      %v542 = vunpack.c.l.b16 %v288
      %v543 = vunpack.c.h.b16 %v288
      %v544 = vunpack.c.l.b16 %v289
      %v545 = vunpack.c.h.b16 %v289
      %v546 = vunpack.c.l.b16 %v290
      %v547 = vunpack.c.h.b16 %v290
      %v548 = vunpack.c.l.b16 %v291
      %v549 = vunpack.c.h.b16 %v291
      %v550 = vunpack.c.l.b16 %v292
      %v551 = vunpack.c.h.b16 %v292
      %v552 = vunpack.c.l.b16 %v293
      %v553 = vunpack.c.h.b16 %v293
      %v554 = vunpack.c.l.b16 %v294
      %v555 = vunpack.c.h.b16 %v294
      %v556 = vunpack.c.l.b16 %v295
      %v557 = vunpack.c.h.b16 %v295
      %v558 = vunpack.c.l.b16 %v296
      %v559 = vunpack.c.h.b16 %v296
      %v560 = vunpack.c.l.b16 %v297
      %v561 = vunpack.c.h.b16 %v297
      %v562 = vunpack.c.l.b16 %v298
      %v563 = vunpack.c.h.b16 %v298
      %v564 = vunpack.c.l.b16 %v299
      %v565 = vunpack.c.h.b16 %v299
      %v566 = vunpack.c.l.b16 %v300
      %v567 = vunpack.c.h.b16 %v300
      %v568 = vunpack.c.l.b16 %v301
      %v569 = vunpack.c.h.b16 %v301
      %v570 = vunpack.c.l.b16 %v302
      %v571 = vunpack.c.h.b16 %v302
      %v572 = vunpack.c.l.b16 %v303
      %v573 = vunpack.c.h.b16 %v303
      %v574 = vunpack.c.l.b16 %v304
      %v575 = vunpack.c.h.b16 %v304
      %v576 = vunpack.c.l.b16 %v305
      %v577 = vunpack.c.h.b16 %v305
      %v578 = vunpack.c.l.b16 %v306
      %v579 = vunpack.c.h.b16 %v306
      %v580 = vunpack.c.l.b16 %v307
      %v581 = vunpack.c.h.b16 %v307
      %v582 = vunpack.c.l.b16 %v308
      %v583 = vunpack.c.h.b16 %v308
      %v584 = vunpack.c.l.b16 %v309
      %v585 = vunpack.c.h.b16 %v309
      %v586 = vunpack.c.l.b16 %v310
      %v587 = vunpack.c.h.b16 %v310
      %v588 = vunpack.c.l.b16 %v311
      %v589 = vunpack.c.h.b16 %v311
      %v590 = vunpack.c.l.b16 %v312
      %v591 = vunpack.c.h.b16 %v312
      %v592 = vunpack.c.l.b16 %v313
      %v593 = vunpack.c.h.b16 %v313
      %v594 = vunpack.c.l.b16 %v314
      %v595 = vunpack.c.h.b16 %v314
      %v596 = vunpack.c.l.b16 %v315
      %v597 = vunpack.c.h.b16 %v315
      %v598 = vunpack.c.l.b16 %v316
      %v599 = vunpack.c.h.b16 %v316
      %v600 = vunpack.c.l.b16 %v317
      %v601 = vunpack.c.h.b16 %v317
      %v602 = vunpack.c.l.b16 %v318
      %v603 = vunpack.c.h.b16 %v318
      %v604 = vunpack.c.l.b16 %v319
      %v605 = vunpack.c.h.b16 %v319
      %v606 = vunpack.c.l.b16 %v320
      %v607 = vunpack.c.h.b16 %v320
      %v608 = vunpack.c.l.b16 %v321
      %v609 = vunpack.c.h.b16 %v321
      %v610 = vunpack.c.l.b16 %v322
      %v611 = vunpack.c.h.b16 %v322
      %v612 = vunpack.c.l.b16 %v323
      %v613 = vunpack.c.h.b16 %v323
      %v614 = vunpack.c.l.b16 %v324
      %v615 = vunpack.c.h.b16 %v324
      %v616 = vunpack.c.l.b16 %v325
      %v617 = vunpack.c.h.b16 %v325
      %v618 = vunpack.c.l.b16 %v326
      %v619 = vunpack.c.h.b16 %v326
      %v620 = vunpack.c.l.b16 %v327
      %v621 = vunpack.c.h.b16 %v327
      %v622 = vunpack.c.l.b16 %v328
      %v623 = vunpack.c.h.b16 %v328
      %v624 = vunpack.c.l.b16 %v329
      %v625 = vunpack.c.h.b16 %v329
      %v626 = vunpack.c.l.b16 %v330
      %v627 = vunpack.c.h.b16 %v330
      %v628 = vunpack.c.l.b16 %v331
      %v629 = vunpack.c.h.b16 %v331
      %v630 = vpack.c.b16 %v440, %v438
      %v631 = vpack.c.b16 %v441, %v439
      %v632 = vpack.c.b16 %v444, %v442
      %v633 = vpack.c.b16 %v445, %v443
      %v634 = vpack.c.b16 %v448, %v446
      %v635 = vpack.c.b16 %v449, %v447
      %v636 = vpack.c.b16 %v452, %v450
      %v637 = vpack.c.b16 %v453, %v451
      %v638 = vpack.c.b16 %v456, %v454
      %v639 = vpack.c.b16 %v457, %v455
      %v640 = vpack.c.b16 %v460, %v458
      %v641 = vpack.c.b16 %v461, %v459
      %v642 = vpack.c.b16 %v464, %v462
      %v643 = vpack.c.b16 %v465, %v463
      %v644 = vpack.c.b16 %v468, %v466
      %v645 = vpack.c.b16 %v469, %v467
      %v646 = vpack.c.b16 %v472, %v470
      %v647 = vpack.c.b16 %v473, %v471
      %v648 = vpack.c.b16 %v476, %v474
      %v649 = vpack.c.b16 %v477, %v475
      %v650 = vpack.c.b16 %v480, %v478
      %v651 = vpack.c.b16 %v481, %v479
      %v652 = vpack.c.b16 %v484, %v482
      %v653 = vpack.c.b16 %v485, %v483
      %v654 = vpack.c.b16 %v488, %v486
      %v655 = vpack.c.b16 %v489, %v487
      %v656 = vpack.c.b16 %v492, %v490
      %v657 = vpack.c.b16 %v493, %v491
      %v658 = vpack.c.b16 %v496, %v494
      %v659 = vpack.c.b16 %v497, %v495
      %v660 = vpack.c.b16 %v500, %v498
      %v661 = vpack.c.b16 %v501, %v499
      %v662 = vpack.c.b16 %v504, %v502
      %v663 = vpack.c.b16 %v505, %v503
      %v664 = vpack.c.b16 %v508, %v506
      %v665 = vpack.c.b16 %v509, %v507
      %v666 = vpack.c.b16 %v512, %v510
      %v667 = vpack.c.b16 %v513, %v511
      %v668 = vpack.c.b16 %v516, %v514
      %v669 = vpack.c.b16 %v517, %v515
      %v670 = vpack.c.b16 %v520, %v518
      %v671 = vpack.c.b16 %v521, %v519
      %v672 = vpack.c.b16 %v524, %v522
      %v673 = vpack.c.b16 %v525, %v523
      %v674 = vpack.c.b16 %v528, %v526
      %v675 = vpack.c.b16 %v529, %v527
      %v676 = vpack.c.b16 %v532, %v530
      %v677 = vpack.c.b16 %v533, %v531
      %v678 = vpack.c.b16 %v536, %v534
      %v679 = vpack.c.b16 %v537, %v535
      %v680 = vpack.c.b16 %v540, %v538
      %v681 = vpack.c.b16 %v541, %v539
      %v682 = vpack.c.b16 %v544, %v542
      %v683 = vpack.c.b16 %v545, %v543
      %v684 = vpack.c.b16 %v548, %v546
      %v685 = vpack.c.b16 %v549, %v547
      %v686 = vpack.c.b16 %v552, %v550
      %v687 = vpack.c.b16 %v553, %v551
      %v688 = vpack.c.b16 %v556, %v554
      %v689 = vpack.c.b16 %v557, %v555
      %v690 = vpack.c.b16 %v560, %v558
      %v691 = vpack.c.b16 %v561, %v559
      %v692 = vpack.c.b16 %v564, %v562
      %v693 = vpack.c.b16 %v565, %v563
      %v694 = vpack.c.b16 %v568, %v566
      %v695 = vpack.c.b16 %v569, %v567
      %v696 = vpack.c.b16 %v572, %v570
      %v697 = vpack.c.b16 %v573, %v571
      %v698 = vpack.c.b16 %v576, %v574
      %v699 = vpack.c.b16 %v577, %v575
      %v700 = vpack.c.b16 %v580, %v578
      %v701 = vpack.c.b16 %v581, %v579
      %v702 = vpack.c.b16 %v584, %v582
      %v703 = vpack.c.b16 %v585, %v583
      %v704 = vpack.c.b16 %v588, %v586
      %v705 = vpack.c.b16 %v589, %v587
      %v706 = vpack.c.b16 %v592, %v590
      %v707 = vpack.c.b16 %v593, %v591
      %v708 = vpack.c.b16 %v596, %v594
      %v709 = vpack.c.b16 %v597, %v595
      %v710 = vpack.c.b16 %v600, %v598
      %v711 = vpack.c.b16 %v601, %v599
      %v712 = vpack.c.b16 %v604, %v602
      %v713 = vpack.c.b16 %v605, %v603
      %v714 = vpack.c.b16 %v608, %v606
      %v715 = vpack.c.b16 %v609, %v607
      %v716 = vpack.c.b16 %v612, %v610
      %v717 = vpack.c.b16 %v613, %v611
      %v718 = vpack.c.b16 %v616, %v614
      %v719 = vpack.c.b16 %v617, %v615
      %v720 = vpack.c.b16 %v620, %v618
      %v721 = vpack.c.b16 %v621, %v619
      %v722 = vpack.c.b16 %v624, %v622
      %v723 = vpack.c.b16 %v625, %v623
      %v724 = vpack.c.b16 %v628, %v626
      %v725 = vpack.c.b16 %v629, %v627
      %822 = vmatprep.subr.bf16.mxu0 %v631
      %823 = vmatpush1.bf16.xpose.msra.mxu0 %v630
      %824 = vmatprep.subr.bf16.mxu0 %v633
      %825 = vmatpush1.bf16.xpose.msra.mxu0 %v632
      %826 = vmatprep.subr.bf16.mxu0 %v635
      %827 = vmatpush1.bf16.xpose.msra.mxu0 %v634
      %828 = vmatprep.subr.bf16.mxu0 %v637
      %829 = vmatpush1.bf16.xpose.msra.mxu0 %v636
      %830 = vmatprep.subr.bf16.mxu0 %v639
      %831 = vmatpush1.bf16.xpose.msra.mxu0 %v638
      %832 = vmatprep.subr.bf16.mxu0 %v641
      %833 = vmatpush1.bf16.xpose.msra.mxu0 %v640
      %834 = vmatprep.subr.bf16.mxu0 %v643
      %835 = vmatpush1.bf16.xpose.msra.mxu0 %v642
      %836 = vmatprep.subr.bf16.mxu0 %v645
      %837 = vmatpush1.bf16.xpose.msra.mxu0 %v644
      %838 = vmatprep.subr.bf16.mxu0 %v647
      %839 = vmatpush1.bf16.xpose.msra.mxu0 %v646
      %840 = vmatprep.subr.bf16.mxu0 %v649
      %841 = vmatpush1.bf16.xpose.msra.mxu0 %v648
      %842 = vmatprep.subr.bf16.mxu0 %v651
      %843 = vmatpush1.bf16.xpose.msra.mxu0 %v650
      %844 = vmatprep.subr.bf16.mxu0 %v653
      %845 = vmatpush1.bf16.xpose.msra.mxu0 %v652
      %846 = vmatprep.subr.bf16.mxu0 %v655
      %847 = vmatpush1.bf16.xpose.msra.mxu0 %v654
      %848 = vmatprep.subr.bf16.mxu0 %v657
      %849 = vmatpush1.bf16.xpose.msra.mxu0 %v656
      %850 = vmatprep.subr.bf16.mxu0 %v659
      %851 = vmatpush1.bf16.xpose.msra.mxu0 %v658
      %852 = vmatprep.subr.bf16.mxu0 %v661
      %853 = vmatpush1.bf16.xpose.msra.mxu0 %v660
      %854 = vmatprep.mubr.bf16.mxu0 %v339
      %855 = vmatmul.mubr.bf16.gmra.mrb[0].mxu0 %v338
      %v856 = vpop.f32.mrb[0].mxu0
      %v857 = vadd.f32 0.0, %v856
      %v858 = vpop.f32.mrb[0].mxu0
      %v859 = vadd.f32 0.0, %v858
      %v860 = vpop.f32.mrb[0].mxu0
      %v861 = vadd.f32 0.0, %v860
      %v862 = vpop.f32.mrb[0].mxu0
      %v863 = vadd.f32 0.0, %v862
      %864 = vdwg.mxu0
      %865 = vmatprep.subr.bf16.mxu0 %v663
      %866 = vmatpush1.bf16.xpose.msra.mxu0 %v662
      %867 = vmatprep.subr.bf16.mxu0 %v665
      %868 = vmatpush1.bf16.xpose.msra.mxu0 %v664
      %869 = vmatprep.subr.bf16.mxu0 %v667
      %870 = vmatpush1.bf16.xpose.msra.mxu0 %v666
      %871 = vmatprep.subr.bf16.mxu0 %v669
      %872 = vmatpush1.bf16.xpose.msra.mxu0 %v668
      %873 = vmatprep.subr.bf16.mxu0 %v671
      %874 = vmatpush1.bf16.xpose.msra.mxu0 %v670
      %875 = vmatprep.subr.bf16.mxu0 %v673
      %876 = vmatpush1.bf16.xpose.msra.mxu0 %v672
      %877 = vmatprep.subr.bf16.mxu0 %v675
      %878 = vmatpush1.bf16.xpose.msra.mxu0 %v674
      %879 = vmatprep.subr.bf16.mxu0 %v677
      %880 = vmatpush1.bf16.xpose.msra.mxu0 %v676
      %881 = vmatprep.subr.bf16.mxu0 %v679
      %882 = vmatpush1.bf16.xpose.msra.mxu0 %v678
      %883 = vmatprep.subr.bf16.mxu0 %v681
      %884 = vmatpush1.bf16.xpose.msra.mxu0 %v680
      %885 = vmatprep.subr.bf16.mxu0 %v683
      %886 = vmatpush1.bf16.xpose.msra.mxu0 %v682
      %887 = vmatprep.subr.bf16.mxu0 %v685
      %888 = vmatpush1.bf16.xpose.msra.mxu0 %v684
      %889 = vmatprep.subr.bf16.mxu0 %v687
      %890 = vmatpush1.bf16.xpose.msra.mxu0 %v686
      %891 = vmatprep.subr.bf16.mxu0 %v689
      %892 = vmatpush1.bf16.xpose.msra.mxu0 %v688
      %893 = vmatprep.subr.bf16.mxu0 %v691
      %894 = vmatpush1.bf16.xpose.msra.mxu0 %v690
      %895 = vmatprep.subr.bf16.mxu0 %v693
      %896 = vmatpush1.bf16.xpose.msra.mxu0 %v692
      %897 = vmatprep.mubr.bf16.mxu0 %v339
      %898 = vmatmul.mubr.bf16.gmra.mrb[0].mxu0 %v338
      %v899 = vpop.f32.mrb[0].mxu0
      %v900 = vadd.f32 0.0, %v899
      %v901 = vpop.f32.mrb[0].mxu0
      %v902 = vadd.f32 0.0, %v901
      %v903 = vpop.f32.mrb[0].mxu0
      %v904 = vadd.f32 0.0, %v903
      %v905 = vpop.f32.mrb[0].mxu0
      %v906 = vadd.f32 0.0, %v905
      %907 = vdwg.mxu0
      %908 = vmatprep.subr.bf16.mxu0 %v695
      %909 = vmatpush1.bf16.xpose.msra.mxu0 %v694
      %910 = vmatprep.subr.bf16.mxu0 %v697
      %911 = vmatpush1.bf16.xpose.msra.mxu0 %v696
      %912 = vmatprep.subr.bf16.mxu0 %v699
      %913 = vmatpush1.bf16.xpose.msra.mxu0 %v698
      %914 = vmatprep.subr.bf16.mxu0 %v701
      %915 = vmatpush1.bf16.xpose.msra.mxu0 %v700
      %916 = vmatprep.subr.bf16.mxu0 %v703
      %917 = vmatpush1.bf16.xpose.msra.mxu0 %v702
      %918 = vmatprep.subr.bf16.mxu0 %v705
      %919 = vmatpush1.bf16.xpose.msra.mxu0 %v704
      %920 = vmatprep.subr.bf16.mxu0 %v707
      %921 = vmatpush1.bf16.xpose.msra.mxu0 %v706
      %922 = vmatprep.subr.bf16.mxu0 %v709
      %923 = vmatpush1.bf16.xpose.msra.mxu0 %v708
      %924 = vmatprep.subr.bf16.mxu0 %v711
      %925 = vmatpush1.bf16.xpose.msra.mxu0 %v710
      %926 = vmatprep.subr.bf16.mxu0 %v713
      %927 = vmatpush1.bf16.xpose.msra.mxu0 %v712
      %928 = vmatprep.subr.bf16.mxu0 %v715
      %929 = vmatpush1.bf16.xpose.msra.mxu0 %v714
      %930 = vmatprep.subr.bf16.mxu0 %v717
      %931 = vmatpush1.bf16.xpose.msra.mxu0 %v716
      %932 = vmatprep.subr.bf16.mxu0 %v719
      %933 = vmatpush1.bf16.xpose.msra.mxu0 %v718
      %934 = vmatprep.subr.bf16.mxu0 %v721
      %935 = vmatpush1.bf16.xpose.msra.mxu0 %v720
      %936 = vmatprep.subr.bf16.mxu0 %v723
      %937 = vmatpush1.bf16.xpose.msra.mxu0 %v722
      %938 = vmatprep.subr.bf16.mxu0 %v725
      %939 = vmatpush1.bf16.xpose.msra.mxu0 %v724
      %940 = vmatprep.mubr.bf16.mxu0 %v339
      %941 = vmatmul.mubr.bf16.gmra.mrb[0].mxu0 %v338
      %v942 = vpop.f32.mrb[0].mxu0
      %v943 = vadd.f32 0.0, %v942
      %v944 = vpop.f32.mrb[0].mxu0
      %v945 = vadd.f32 0.0, %v944
      %v946 = vpop.f32.mrb[0].mxu0
      %v947 = vadd.f32 0.0, %v946
      %v948 = vpop.f32.mrb[0].mxu0
      %v949 = vadd.f32 0.0, %v948
      %950 = vdwg.mxu0
      %v951 = vpack.c.bf16 %v857, %v857
      %v952 = vpack.c.bf16 %v900, %v900
      %v953 = vpack.c.bf16 %v943, %v943
      %v954 = vld [vmem:[%s2] sm:$0xff]
      %v955 = vld [vmem:[%s2 + $0x8] sm:$0xff]
      %v956 = vld [vmem:[%s2 + $0x10] sm:$0xff]
      %v957 = vld [vmem:[%s2 + $0x18] sm:$0xff]
      %v958 = vld [vmem:[%s2 + $0x20] sm:$0xff]
      %v959 = vld [vmem:[%s2 + $0x28] sm:$0xff]
      %v960 = vld [vmem:[%s2 + $0x30] sm:$0xff]
      %v961 = vld [vmem:[%s2 + $0x38] sm:$0xff]
      %962 = vxpose.xlu0.c.b16.start [1/8] %v951, 128
      %963 = vxpose.xlu0.c.b16.cont [2/8] 0, 128
      %964 = vxpose.xlu0.c.b16.cont [3/8] 0, 128
      %965 = vxpose.xlu0.c.b16.cont [4/8] 0, 128
      %966 = vxpose.xlu0.c.b16.cont [5/8] 0, 128
      %967 = vxpose.xlu0.c.b16.cont [6/8] 0, 128
      %968 = vxpose.xlu0.c.b16.cont [7/8] 0, 128
      %969 = vxpose.xlu0.c.b16.end [8/8] 0, 128
      %v970 = vpop.trf.xlu0
      %v971 = vpop.trf.xlu0
      %v972 = vpop.trf.xlu0
      %v973 = vpop.trf.xlu0
      %v974 = vpop.trf.xlu0
      %v975 = vpop.trf.xlu0
      %v976 = vpop.trf.xlu0
      %v977 = vpop.trf.xlu0
      %vm978 = vcmask 64512
      %v980 = vsel %vm978, %v970, 0
      %v983 = vsel %vm978, %v971, 0
      %v986 = vsel %vm978, %v972, 0
      %v989 = vsel %vm978, %v973, 0
      %vm991 = vcmask 1043456
      %v993 = vsel %vm991, %v952, 0
      %995 = vmatprep.subr.bf16.mxu0 0
      %996 = vmatpush1.bf16.msra.mxu0 %v993
      %997 = vmatprep.subr.bf16.mxu0 0
      %998 = vmatpush1.bf16.msra.mxu0 0
      %999 = vmatprep.subr.bf16.mxu0 0
      %1000 = vmatpush1.bf16.msra.mxu0 0
      %1001 = vmatprep.subr.bf16.mxu0 0
      %1002 = vmatpush1.bf16.msra.mxu0 0
      %1003 = vmatprep.subr.bf16.mxu0 0
      %1004 = vmatpush1.bf16.msra.mxu0 0
      %1005 = vmatprep.subr.bf16.mxu0 0
      %1006 = vmatpush1.bf16.msra.mxu0 0
      %1007 = vmatprep.subr.bf16.mxu0 0
      %1008 = vmatpush1.bf16.msra.mxu0 0
      %1009 = vmatprep.subr.bf16.mxu0 0
      %1010 = vmatpush1.bf16.msra.mxu0 0
      %1011 = vmatprep.subr.bf16.mxu0 0
      %1012 = vmatpush1.bf16.msra.mxu0 0
      %1013 = vmatprep.subr.bf16.mxu0 0
      %1014 = vmatpush1.bf16.msra.mxu0 0
      %1015 = vmatprep.subr.bf16.mxu0 0
      %1016 = vmatpush1.bf16.msra.mxu0 0
      %1017 = vmatprep.subr.bf16.mxu0 0
      %1018 = vmatpush1.bf16.msra.mxu0 0
      %1019 = vmatprep.subr.bf16.mxu0 0
      %1020 = vmatpush1.bf16.msra.mxu0 0
      %1021 = vmatprep.subr.bf16.mxu0 0
      %1022 = vmatpush1.bf16.msra.mxu0 0
      %1023 = vmatprep.subr.bf16.mxu0 0
      %1024 = vmatpush1.bf16.msra.mxu0 0
      %1025 = vmatprep.subr.bf16.mxu0 0
      %1026 = vmatpush1.bf16.msra.mxu0 0
      %1027 = vmatprep.mubr.bf16.mxu0 0
      %1028 = vmatmul.mubr.bf16.gmra.mrb[0].mxu0 %v980
      %v1029 = vpop.f32.mrb[0].mxu0
      %v1030 = vadd.f32 %v954, %v1029
      %v1031 = vpop.f32.mrb[0].mxu0
      %v1032 = vpop.f32.mrb[0].mxu0
      %v1033 = vadd.f32 %v955, %v1032
      %v1034 = vpop.f32.mrb[0].mxu0
      %1035 = vmatprep.mubr.bf16.mxu0 0
      %1036 = vmatmul.mubr.bf16.gmra.mrb[0].mxu0 %v983
      %v1037 = vpop.f32.mrb[0].mxu0
      %v1038 = vadd.f32 %v956, %v1037
      %v1039 = vpop.f32.mrb[0].mxu0
      %v1040 = vpop.f32.mrb[0].mxu0
      %v1041 = vadd.f32 %v957, %v1040
      %v1042 = vpop.f32.mrb[0].mxu0
      %1043 = vmatprep.mubr.bf16.mxu0 0
      %1044 = vmatmul.mubr.bf16.gmra.mrb[0].mxu0 %v986
      %v1045 = vpop.f32.mrb[0].mxu0
      %v1046 = vadd.f32 %v958, %v1045
      %v1047 = vpop.f32.mrb[0].mxu0
      %v1048 = vpop.f32.mrb[0].mxu0
      %v1049 = vadd.f32 %v959, %v1048
      %v1050 = vpop.f32.mrb[0].mxu0
      %1051 = vmatprep.mubr.bf16.mxu0 0
      %1052 = vmatmul.mubr.bf16.gmra.mrb[0].mxu0 %v989
      %v1053 = vpop.f32.mrb[0].mxu0
      %v1054 = vadd.f32 %v960, %v1053
      %v1055 = vpop.f32.mrb[0].mxu0
      %v1056 = vpop.f32.mrb[0].mxu0
      %v1057 = vadd.f32 %v961, %v1056
      %v1058 = vpop.f32.mrb[0].mxu0
      %1059 = vdwg.mxu0
      %vm1060 = vcmask 523264
      %v1061 = vsel %vm1060, %v1030, -inf
      %1062 = vmax.xlane.f32.xlu0 %v1061
      %v1063 = vpop.xlane.xlu0 %1062
      %v1064 = vsel %vm1060, %v1033, -inf
      %1065 = vmax.xlane.f32.xlu0 %v1064
      %v1066 = vpop.xlane.xlu0 %1065
      %v1067 = vsel %vm1060, %v1038, -inf
      %1068 = vmax.xlane.f32.xlu0 %v1067
      %v1069 = vpop.xlane.xlu0 %1068
      %v1070 = vsel %vm1060, %v1041, -inf
      %1071 = vmax.xlane.f32.xlu0 %v1070
      %v1072 = vpop.xlane.xlu0 %1071
      %v1073 = vsel %vm1060, %v1046, -inf
      %1074 = vmax.xlane.f32.xlu0 %v1073
      %v1075 = vpop.xlane.xlu0 %1074
      %v1076 = vsel %vm1060, %v1049, -inf
      %1077 = vmax.xlane.f32.xlu0 %v1076
      %v1078 = vpop.xlane.xlu0 %1077
      %v1079 = vsel %vm1060, %v1054, -inf
      %1080 = vmax.xlane.f32.xlu0 %v1079
      %v1081 = vpop.xlane.xlu0 %1080
      %v1082 = vsel %vm1060, %v1057, -inf
      %1083 = vmax.xlane.f32.xlu0 %v1082
      %v1084 = vpop.xlane.xlu0 %1083
      %v1085 = vsub.f32 %v1030, %v1063
      %v1086 = vsub.f32 %v1033, %v1066
      %v1087 = vsub.f32 %v1038, %v1069
      %v1088 = vsub.f32 %v1041, %v1072
      %v1089 = vsub.f32 %v1046, %v1075
      %v1090 = vsub.f32 %v1049, %v1078
      %v1091 = vsub.f32 %v1054, %v1081
      %v1092 = vsub.f32 %v1057, %v1084
      %v1093 = vmul.f32 %v1085, 1.442695
      %v1094 = vpow.pop %v1093
      %v1095 = vmul.f32 %v1086, 1.442695
      %v1096 = vpow.pop %v1095
      %v1097 = vmul.f32 %v1087, 1.442695
      %v1098 = vpow.pop %v1097
      %v1099 = vmul.f32 %v1088, 1.442695
      %v1100 = vpow.pop %v1099
      %v1101 = vmul.f32 %v1089, 1.442695
      %v1102 = vpow.pop %v1101
      %v1103 = vmul.f32 %v1090, 1.442695
      %v1104 = vpow.pop %v1103
      %v1105 = vmul.f32 %v1091, 1.442695
      %v1106 = vpow.pop %v1105
      %v1107 = vmul.f32 %v1092, 1.442695
      %v1108 = vpow.pop %v1107
      %v1109 = vsel %vm1060, %v1094, 0.0
      %1110 = vadd.xlane.f32.xlu0 %v1109
      %v1111 = vpop.xlane.xlu0 %1110
      %v1112 = vsel %vm1060, %v1096, 0.0
      %1113 = vadd.xlane.f32.xlu0 %v1112
      %v1114 = vpop.xlane.xlu0 %1113
      %v1115 = vsel %vm1060, %v1098, 0.0
      %1116 = vadd.xlane.f32.xlu0 %v1115
      %v1117 = vpop.xlane.xlu0 %1116
      %v1118 = vsel %vm1060, %v1100, 0.0
      %1119 = vadd.xlane.f32.xlu0 %v1118
      %v1120 = vpop.xlane.xlu0 %1119
      %v1121 = vsel %vm1060, %v1102, 0.0
      %1122 = vadd.xlane.f32.xlu0 %v1121
      %v1123 = vpop.xlane.xlu0 %1122
      %v1124 = vsel %vm1060, %v1104, 0.0
      %1125 = vadd.xlane.f32.xlu0 %v1124
      %v1126 = vpop.xlane.xlu0 %1125
      %v1127 = vsel %vm1060, %v1106, 0.0
      %1128 = vadd.xlane.f32.xlu0 %v1127
      %v1129 = vpop.xlane.xlu0 %1128
      %v1130 = vsel %vm1060, %v1108, 0.0
      %1131 = vadd.xlane.f32.xlu0 %v1130
      %v1132 = vpop.xlane.xlu0 %1131
      %v1133 = vrcp.pop %v1111
      %v1134 = vrcp.pop %v1114
      %v1135 = vrcp.pop %v1117
      %v1136 = vrcp.pop %v1120
      %v1137 = vrcp.pop %v1123
      %v1138 = vrcp.pop %v1126
      %v1139 = vrcp.pop %v1129
      %v1140 = vrcp.pop %v1132
      %v1141 = vmul.f32 %v1094, %v1133
      %v1142 = vmul.f32 %v1096, %v1134
      %v1143 = vmul.f32 %v1098, %v1135
      %v1144 = vmul.f32 %v1100, %v1136
      %v1145 = vmul.f32 %v1102, %v1137
      %v1146 = vmul.f32 %v1104, %v1138
      %v1147 = vmul.f32 %v1106, %v1139
      %v1148 = vmul.f32 %v1108, %v1140
      %v1149 = vpack.c.bf16 %v1142, %v1141
      %v1150 = vpack.c.bf16 %v1144, %v1143
      %v1151 = vpack.c.bf16 %v1146, %v1145
      %v1152 = vpack.c.bf16 %v1148, %v1147
      %v1154 = vsel %vm1060, %v953, 0
      %v1157 = vsel %vm1060, %v1149, 0
      %v1160 = vsel %vm1060, %v1150, 0
      %v1163 = vsel %vm1060, %v1151, 0
      %v1166 = vsel %vm1060, %v1152, 0
      %1168 = vmatprep.subr.bf16.mxu0 0
      %1169 = vmatpush1.bf16.xpose.msra.mxu0 %v1157
      %1170 = vmatprep.subr.bf16.mxu0 0
      %1171 = vmatpush1.bf16.xpose.msra.mxu0 %v1160
      %1172 = vmatprep.subr.bf16.mxu0 0
      %1173 = vmatpush1.bf16.xpose.msra.mxu0 %v1163
      %1174 = vmatprep.subr.bf16.mxu0 0
      %1175 = vmatpush1.bf16.xpose.msra.mxu0 %v1166
      %1176 = vmatprep.subr.bf16.mxu0 0
      %1177 = vmatpush1.bf16.xpose.msra.mxu0 0
      %1178 = vmatprep.subr.bf16.mxu0 0
      %1179 = vmatpush1.bf16.xpose.msra.mxu0 0
      %1180 = vmatprep.subr.bf16.mxu0 0
      %1181 = vmatpush1.bf16.xpose.msra.mxu0 0
      %1182 = vmatprep.subr.bf16.mxu0 0
      %1183 = vmatpush1.bf16.xpose.msra.mxu0 0
      %1184 = vmatprep.subr.bf16.mxu0 0
      %1185 = vmatpush1.bf16.xpose.msra.mxu0 0
      %1186 = vmatprep.subr.bf16.mxu0 0
      %1187 = vmatpush1.bf16.xpose.msra.mxu0 0
      %1188 = vmatprep.subr.bf16.mxu0 0
      %1189 = vmatpush1.bf16.xpose.msra.mxu0 0
      %1190 = vmatprep.subr.bf16.mxu0 0
      %1191 = vmatpush1.bf16.xpose.msra.mxu0 0
      %1192 = vmatprep.subr.bf16.mxu0 0
      %1193 = vmatpush1.bf16.xpose.msra.mxu0 0
      %1194 = vmatprep.subr.bf16.mxu0 0
      %1195 = vmatpush1.bf16.xpose.msra.mxu0 0
      %1196 = vmatprep.subr.bf16.mxu0 0
      %1197 = vmatpush1.bf16.xpose.msra.mxu0 0
      %1198 = vmatprep.subr.bf16.mxu0 0
      %1199 = vmatpush1.bf16.xpose.msra.mxu0 0
      %1200 = vmatprep.mubr.bf16.mxu0 0
      %1201 = vmatmul.mubr.bf16.gmra.mrb[0].mxu0 %v1154
      %v1202 = vpop.f32.mrb[0].mxu0
      %v1203 = vadd.f32 0.0, %v1202
      %v1204 = vpop.f32.mrb[0].mxu0
      %v1205 = vpop.f32.mrb[0].mxu0
      %v1206 = vpop.f32.mrb[0].mxu0
      %1207 = vdwg.mxu0
      %v1208 = vld [vmem:[%s3] sm:$0xff]
      %1210 = vset.pattern.permute.xlu0 0
      %1211 = vperm.xlu0 %1210, %v1208
      %v1212 = vpop.permute.xlu0 %1211
      %v1214 = vmul.f32 %v1203, %v1212
      %v1215 = vld [vmem:[%s4] sm:$0xff]
      %1217 = vset.pattern.permute.xlu0 0
      %1218 = vperm.xlu0 %1217, %v1215
      %v1219 = vpop.permute.xlu0 %1218
      %v1221 = vadd.f32 %v1214, %v1219
      %1222 = vst.msk [vmem:[%s231] sm:$0xff] %vm1060, %v1221
      %s1223 = scalar_lea.vmem %s2, 64
      %v1224 = vld [vmem:[%s1223] sm:$0xff]
      %v1225 = vld [vmem:[%s1223 + $0x8] sm:$0xff]
      %v1226 = vld [vmem:[%s1223 + $0x10] sm:$0xff]
      %v1227 = vld [vmem:[%s1223 + $0x18] sm:$0xff]
      %v1228 = vld [vmem:[%s1223 + $0x20] sm:$0xff]
      %v1229 = vld [vmem:[%s1223 + $0x28] sm:$0xff]
      %v1230 = vld [vmem:[%s1223 + $0x30] sm:$0xff]
      %v1231 = vld [vmem:[%s1223 + $0x38] sm:$0xff]
      %1233 = vrot.lane.b32.xlu0 %v951, 64
      %v1234 = vpop.permute.xlu0 %1233
      %1236 = vxpose.xlu0.c.b16.start [1/8] %v1234, 128
      %1237 = vxpose.xlu0.c.b16.cont [2/8] 0, 128
      %1238 = vxpose.xlu0.c.b16.cont [3/8] 0, 128
      %1239 = vxpose.xlu0.c.b16.cont [4/8] 0, 128
      %1240 = vxpose.xlu0.c.b16.cont [5/8] 0, 128
      %1241 = vxpose.xlu0.c.b16.cont [6/8] 0, 128
      %1242 = vxpose.xlu0.c.b16.cont [7/8] 0, 128
      %1243 = vxpose.xlu0.c.b16.end [8/8] 0, 128
      %v1244 = vpop.trf.xlu0
      %v1245 = vpop.trf.xlu0
      %v1246 = vpop.trf.xlu0
      %v1247 = vpop.trf.xlu0
      %v1248 = vpop.trf.xlu0
      %v1249 = vpop.trf.xlu0
      %v1250 = vpop.trf.xlu0
      %v1251 = vpop.trf.xlu0
      %1253 = vrot.lane.b32.xlu0 %v952, 64
      %v1254 = vpop.permute.xlu0 %1253
      %v1256 = vsel %vm978, %v1244, 0
      %v1259 = vsel %vm978, %v1245, 0
      %v1262 = vsel %vm978, %v1246, 0
      %v1265 = vsel %vm978, %v1247, 0
      %v1268 = vsel %vm991, %v1254, 0
      %1270 = vmatprep.subr.bf16.mxu0 0
      %1271 = vmatpush1.bf16.msra.mxu0 %v1268
      %1272 = vmatprep.subr.bf16.mxu0 0
      %1273 = vmatpush1.bf16.msra.mxu0 0
      %1274 = vmatprep.subr.bf16.mxu0 0
      %1275 = vmatpush1.bf16.msra.mxu0 0
      %1276 = vmatprep.subr.bf16.mxu0 0
      %1277 = vmatpush1.bf16.msra.mxu0 0
      %1278 = vmatprep.subr.bf16.mxu0 0
      %1279 = vmatpush1.bf16.msra.mxu0 0
      %1280 = vmatprep.subr.bf16.mxu0 0
      %1281 = vmatpush1.bf16.msra.mxu0 0
      %1282 = vmatprep.subr.bf16.mxu0 0
      %1283 = vmatpush1.bf16.msra.mxu0 0
      %1284 = vmatprep.subr.bf16.mxu0 0
      %1285 = vmatpush1.bf16.msra.mxu0 0
      %1286 = vmatprep.subr.bf16.mxu0 0
      %1287 = vmatpush1.bf16.msra.mxu0 0
      %1288 = vmatprep.subr.bf16.mxu0 0
      %1289 = vmatpush1.bf16.msra.mxu0 0
      %1290 = vmatprep.subr.bf16.mxu0 0
      %1291 = vmatpush1.bf16.msra.mxu0 0
      %1292 = vmatprep.subr.bf16.mxu0 0
      %1293 = vmatpush1.bf16.msra.mxu0 0
      %1294 = vmatprep.subr.bf16.mxu0 0
      %1295 = vmatpush1.bf16.msra.mxu0 0
      %1296 = vmatprep.subr.bf16.mxu0 0
      %1297 = vmatpush1.bf16.msra.mxu0 0
      %1298 = vmatprep.subr.bf16.mxu0 0
      %1299 = vmatpush1.bf16.msra.mxu0 0
      %1300 = vmatprep.subr.bf16.mxu0 0
      %1301 = vmatpush1.bf16.msra.mxu0 0
      %1302 = vmatprep.mubr.bf16.mxu0 0
      %1303 = vmatmul.mubr.bf16.gmra.mrb[0].mxu0 %v1256
      %v1304 = vpop.f32.mrb[0].mxu0
      %v1305 = vadd.f32 %v1224, %v1304
      %v1306 = vpop.f32.mrb[0].mxu0
      %v1307 = vpop.f32.mrb[0].mxu0
      %v1308 = vadd.f32 %v1225, %v1307
      %v1309 = vpop.f32.mrb[0].mxu0
      %1310 = vmatprep.mubr.bf16.mxu0 0
      %1311 = vmatmul.mubr.bf16.gmra.mrb[0].mxu0 %v1259
      %v1312 = vpop.f32.mrb[0].mxu0
      %v1313 = vadd.f32 %v1226, %v1312
      %v1314 = vpop.f32.mrb[0].mxu0
      %v1315 = vpop.f32.mrb[0].mxu0
      %v1316 = vadd.f32 %v1227, %v1315
      %v1317 = vpop.f32.mrb[0].mxu0
      %1318 = vmatprep.mubr.bf16.mxu0 0
      %1319 = vmatmul.mubr.bf16.gmra.mrb[0].mxu0 %v1262
      %v1320 = vpop.f32.mrb[0].mxu0
      %v1321 = vadd.f32 %v1228, %v1320
      %v1322 = vpop.f32.mrb[0].mxu0
      %v1323 = vpop.f32.mrb[0].mxu0
      %v1324 = vadd.f32 %v1229, %v1323
      %v1325 = vpop.f32.mrb[0].mxu0
      %1326 = vmatprep.mubr.bf16.mxu0 0
      %1327 = vmatmul.mubr.bf16.gmra.mrb[0].mxu0 %v1265
      %v1328 = vpop.f32.mrb[0].mxu0
      %v1329 = vadd.f32 %v1230, %v1328
      %v1330 = vpop.f32.mrb[0].mxu0
      %v1331 = vpop.f32.mrb[0].mxu0
      %v1332 = vadd.f32 %v1231, %v1331
      %v1333 = vpop.f32.mrb[0].mxu0
      %1334 = vdwg.mxu0
      %v1335 = vsel %vm1060, %v1305, -inf
      %1336 = vmax.xlane.f32.xlu0 %v1335
      %v1337 = vpop.xlane.xlu0 %1336
      %v1338 = vsel %vm1060, %v1308, -inf
      %1339 = vmax.xlane.f32.xlu0 %v1338
      %v1340 = vpop.xlane.xlu0 %1339
      %v1341 = vsel %vm1060, %v1313, -inf
      %1342 = vmax.xlane.f32.xlu0 %v1341
      %v1343 = vpop.xlane.xlu0 %1342
      %v1344 = vsel %vm1060, %v1316, -inf
      %1345 = vmax.xlane.f32.xlu0 %v1344
      %v1346 = vpop.xlane.xlu0 %1345
      %v1347 = vsel %vm1060, %v1321, -inf
      %1348 = vmax.xlane.f32.xlu0 %v1347
      %v1349 = vpop.xlane.xlu0 %1348
      %v1350 = vsel %vm1060, %v1324, -inf
      %1351 = vmax.xlane.f32.xlu0 %v1350
      %v1352 = vpop.xlane.xlu0 %1351
      %v1353 = vsel %vm1060, %v1329, -inf
      %1354 = vmax.xlane.f32.xlu0 %v1353
      %v1355 = vpop.xlane.xlu0 %1354
      %v1356 = vsel %vm1060, %v1332, -inf
      %1357 = vmax.xlane.f32.xlu0 %v1356
      %v1358 = vpop.xlane.xlu0 %1357
      %v1359 = vsub.f32 %v1305, %v1337
      %v1360 = vsub.f32 %v1308, %v1340
      %v1361 = vsub.f32 %v1313, %v1343
      %v1362 = vsub.f32 %v1316, %v1346
      %v1363 = vsub.f32 %v1321, %v1349
      %v1364 = vsub.f32 %v1324, %v1352
      %v1365 = vsub.f32 %v1329, %v1355
      %v1366 = vsub.f32 %v1332, %v1358
      %v1367 = vmul.f32 %v1359, 1.442695
      %v1368 = vpow.pop %v1367
      %v1369 = vmul.f32 %v1360, 1.442695
      %v1370 = vpow.pop %v1369
      %v1371 = vmul.f32 %v1361, 1.442695
      %v1372 = vpow.pop %v1371
      %v1373 = vmul.f32 %v1362, 1.442695
      %v1374 = vpow.pop %v1373
      %v1375 = vmul.f32 %v1363, 1.442695
      %v1376 = vpow.pop %v1375
      %v1377 = vmul.f32 %v1364, 1.442695
      %v1378 = vpow.pop %v1377
      %v1379 = vmul.f32 %v1365, 1.442695
      %v1380 = vpow.pop %v1379
      %v1381 = vmul.f32 %v1366, 1.442695
      %v1382 = vpow.pop %v1381
      %v1383 = vsel %vm1060, %v1368, 0.0
      %1384 = vadd.xlane.f32.xlu0 %v1383
      %v1385 = vpop.xlane.xlu0 %1384
      %v1386 = vsel %vm1060, %v1370, 0.0
      %1387 = vadd.xlane.f32.xlu0 %v1386
      %v1388 = vpop.xlane.xlu0 %1387
      %v1389 = vsel %vm1060, %v1372, 0.0
      %1390 = vadd.xlane.f32.xlu0 %v1389
      %v1391 = vpop.xlane.xlu0 %1390
      %v1392 = vsel %vm1060, %v1374, 0.0
      %1393 = vadd.xlane.f32.xlu0 %v1392
      %v1394 = vpop.xlane.xlu0 %1393
      %v1395 = vsel %vm1060, %v1376, 0.0
      %1396 = vadd.xlane.f32.xlu0 %v1395
      %v1397 = vpop.xlane.xlu0 %1396
      %v1398 = vsel %vm1060, %v1378, 0.0
      %1399 = vadd.xlane.f32.xlu0 %v1398
      %v1400 = vpop.xlane.xlu0 %1399
      %v1401 = vsel %vm1060, %v1380, 0.0
      %1402 = vadd.xlane.f32.xlu0 %v1401
      %v1403 = vpop.xlane.xlu0 %1402
      %v1404 = vsel %vm1060, %v1382, 0.0
      %1405 = vadd.xlane.f32.xlu0 %v1404
      %v1406 = vpop.xlane.xlu0 %1405
      %v1407 = vrcp.pop %v1385
      %v1408 = vrcp.pop %v1388
      %v1409 = vrcp.pop %v1391
      %v1410 = vrcp.pop %v1394
      %v1411 = vrcp.pop %v1397
      %v1412 = vrcp.pop %v1400
      %v1413 = vrcp.pop %v1403
      %v1414 = vrcp.pop %v1406
      %v1415 = vmul.f32 %v1368, %v1407
      %v1416 = vmul.f32 %v1370, %v1408
      %v1417 = vmul.f32 %v1372, %v1409
      %v1418 = vmul.f32 %v1374, %v1410
      %v1419 = vmul.f32 %v1376, %v1411
      %v1420 = vmul.f32 %v1378, %v1412
      %v1421 = vmul.f32 %v1380, %v1413
      %v1422 = vmul.f32 %v1382, %v1414
      %v1423 = vpack.c.bf16 %v1416, %v1415
      %v1424 = vpack.c.bf16 %v1418, %v1417
      %v1425 = vpack.c.bf16 %v1420, %v1419
      %v1426 = vpack.c.bf16 %v1422, %v1421
      %1428 = vrot.lane.b32.xlu0 %v953, 64
      %v1429 = vpop.permute.xlu0 %1428
      %v1431 = vsel %vm1060, %v1429, 0
      %v1434 = vsel %vm1060, %v1423, 0
      %v1437 = vsel %vm1060, %v1424, 0
      %v1440 = vsel %vm1060, %v1425, 0
      %v1443 = vsel %vm1060, %v1426, 0
      %1445 = vmatprep.subr.bf16.mxu0 0
      %1446 = vmatpush1.bf16.xpose.msra.mxu0 %v1434
      %1447 = vmatprep.subr.bf16.mxu0 0
      %1448 = vmatpush1.bf16.xpose.msra.mxu0 %v1437
      %1449 = vmatprep.subr.bf16.mxu0 0
      %1450 = vmatpush1.bf16.xpose.msra.mxu0 %v1440
      %1451 = vmatprep.subr.bf16.mxu0 0
      %1452 = vmatpush1.bf16.xpose.msra.mxu0 %v1443
      %1453 = vmatprep.subr.bf16.mxu0 0
      %1454 = vmatpush1.bf16.xpose.msra.mxu0 0
      %1455 = vmatprep.subr.bf16.mxu0 0
      %1456 = vmatpush1.bf16.xpose.msra.mxu0 0
      %1457 = vmatprep.subr.bf16.mxu0 0
      %1458 = vmatpush1.bf16.xpose.msra.mxu0 0
      %1459 = vmatprep.subr.bf16.mxu0 0
      %1460 = vmatpush1.bf16.xpose.msra.mxu0 0
      %1461 = vmatprep.subr.bf16.mxu0 0
      %1462 = vmatpush1.bf16.xpose.msra.mxu0 0
      %1463 = vmatprep.subr.bf16.mxu0 0
      %1464 = vmatpush1.bf16.xpose.msra.mxu0 0
      %1465 = vmatprep.subr.bf16.mxu0 0
      %1466 = vmatpush1.bf16.xpose.msra.mxu0 0
      %1467 = vmatprep.subr.bf16.mxu0 0
      %1468 = vmatpush1.bf16.xpose.msra.mxu0 0
      %1469 = vmatprep.subr.bf16.mxu0 0
      %1470 = vmatpush1.bf16.xpose.msra.mxu0 0
      %1471 = vmatprep.subr.bf16.mxu0 0
      %1472 = vmatpush1.bf16.xpose.msra.mxu0 0
      %1473 = vmatprep.subr.bf16.mxu0 0
      %1474 = vmatpush1.bf16.xpose.msra.mxu0 0
      %1475 = vmatprep.subr.bf16.mxu0 0
      %1476 = vmatpush1.bf16.xpose.msra.mxu0 0
      %1477 = vmatprep.mubr.bf16.mxu0 0
      %1478 = vmatmul.mubr.bf16.gmra.mrb[0].mxu0 %v1431
      %v1479 = vpop.f32.mrb[0].mxu0
      %v1480 = vadd.f32 0.0, %v1479
      %v1481 = vpop.f32.mrb[0].mxu0
      %v1482 = vpop.f32.mrb[0].mxu0
      %v1483 = vpop.f32.mrb[0].mxu0
      %1484 = vdwg.mxu0
      %v1485 = vld [vmem:[%s3 + $0x8] sm:$0xff]
      %1487 = vset.pattern.permute.xlu0 0
      %1488 = vperm.xlu0 %1487, %v1485
      %v1489 = vpop.permute.xlu0 %1488
      %v1491 = vmul.f32 %v1480, %v1489
      %v1492 = vld [vmem:[%s4 + $0x8] sm:$0xff]
      %1494 = vset.pattern.permute.xlu0 0
      %1495 = vperm.xlu0 %1494, %v1492
      %v1496 = vpop.permute.xlu0 %1495
      %v1498 = vadd.f32 %v1491, %v1496
      %1499 = vst.msk [vmem:[%s231 + $0x8] sm:$0xff] %vm1060, %v1498
      %v1500 = vpack.c.bf16 %v859, %v859
      %v1501 = vpack.c.bf16 %v902, %v902
      %v1502 = vpack.c.bf16 %v945, %v945
      %s1503 = scalar_lea.vmem %s2, 128
      %v1504 = vld [vmem:[%s1503] sm:$0xff]
      %v1505 = vld [vmem:[%s1503 + $0x8] sm:$0xff]
      %v1506 = vld [vmem:[%s1503 + $0x10] sm:$0xff]
      %v1507 = vld [vmem:[%s1503 + $0x18] sm:$0xff]
      %v1508 = vld [vmem:[%s1503 + $0x20] sm:$0xff]
      %v1509 = vld [vmem:[%s1503 + $0x28] sm:$0xff]
      %v1510 = vld [vmem:[%s1503 + $0x30] sm:$0xff]
      %v1511 = vld [vmem:[%s1503 + $0x38] sm:$0xff]
      %1512 = vxpose.xlu0.c.b16.start [1/8] %v1500, 128
      %1513 = vxpose.xlu0.c.b16.cont [2/8] 0, 128
      %1514 = vxpose.xlu0.c.b16.cont [3/8] 0, 128
      %1515 = vxpose.xlu0.c.b16.cont [4/8] 0, 128
      %1516 = vxpose.xlu0.c.b16.cont [5/8] 0, 128
      %1517 = vxpose.xlu0.c.b16.cont [6/8] 0, 128
      %1518 = vxpose.xlu0.c.b16.cont [7/8] 0, 128
      %1519 = vxpose.xlu0.c.b16.end [8/8] 0, 128
      %v1520 = vpop.trf.xlu0
      %v1521 = vpop.trf.xlu0
      %v1522 = vpop.trf.xlu0
      %v1523 = vpop.trf.xlu0
      %v1524 = vpop.trf.xlu0
      %v1525 = vpop.trf.xlu0
      %v1526 = vpop.trf.xlu0
      %v1527 = vpop.trf.xlu0
      %v1529 = vsel %vm978, %v1520, 0
      %v1532 = vsel %vm978, %v1521, 0
      %v1535 = vsel %vm978, %v1522, 0
      %v1538 = vsel %vm978, %v1523, 0
      %v1541 = vsel %vm991, %v1501, 0
      %1543 = vmatprep.subr.bf16.mxu0 0
      %1544 = vmatpush1.bf16.msra.mxu0 %v1541
      %1545 = vmatprep.subr.bf16.mxu0 0
      %1546 = vmatpush1.bf16.msra.mxu0 0
      %1547 = vmatprep.subr.bf16.mxu0 0
      %1548 = vmatpush1.bf16.msra.mxu0 0
      %1549 = vmatprep.subr.bf16.mxu0 0
      %1550 = vmatpush1.bf16.msra.mxu0 0
      %1551 = vmatprep.subr.bf16.mxu0 0
      %1552 = vmatpush1.bf16.msra.mxu0 0
      %1553 = vmatprep.subr.bf16.mxu0 0
      %1554 = vmatpush1.bf16.msra.mxu0 0
      %1555 = vmatprep.subr.bf16.mxu0 0
      %1556 = vmatpush1.bf16.msra.mxu0 0
      %1557 = vmatprep.subr.bf16.mxu0 0
      %1558 = vmatpush1.bf16.msra.mxu0 0
      %1559 = vmatprep.subr.bf16.mxu0 0
      %1560 = vmatpush1.bf16.msra.mxu0 0
      %1561 = vmatprep.subr.bf16.mxu0 0
      %1562 = vmatpush1.bf16.msra.mxu0 0
      %1563 = vmatprep.subr.bf16.mxu0 0
      %1564 = vmatpush1.bf16.msra.mxu0 0
      %1565 = vmatprep.subr.bf16.mxu0 0
      %1566 = vmatpush1.bf16.msra.mxu0 0
      %1567 = vmatprep.subr.bf16.mxu0 0
      %1568 = vmatpush1.bf16.msra.mxu0 0
      %1569 = vmatprep.subr.bf16.mxu0 0
      %1570 = vmatpush1.bf16.msra.mxu0 0
      %1571 = vmatprep.subr.bf16.mxu0 0
      %1572 = vmatpush1.bf16.msra.mxu0 0
      %1573 = vmatprep.subr.bf16.mxu0 0
      %1574 = vmatpush1.bf16.msra.mxu0 0
      %1575 = vmatprep.mubr.bf16.mxu0 0
      %1576 = vmatmul.mubr.bf16.gmra.mrb[0].mxu0 %v1529
      %v1577 = vpop.f32.mrb[0].mxu0
      %v1578 = vadd.f32 %v1504, %v1577
      %v1579 = vpop.f32.mrb[0].mxu0
      %v1580 = vpop.f32.mrb[0].mxu0
      %v1581 = vadd.f32 %v1505, %v1580
      %v1582 = vpop.f32.mrb[0].mxu0
      %1583 = vmatprep.mubr.bf16.mxu0 0
      %1584 = vmatmul.mubr.bf16.gmra.mrb[0].mxu0 %v1532
      %v1585 = vpop.f32.mrb[0].mxu0
      %v1586 = vadd.f32 %v1506, %v1585
      %v1587 = vpop.f32.mrb[0].mxu0
      %v1588 = vpop.f32.mrb[0].mxu0
      %v1589 = vadd.f32 %v1507, %v1588
      %v1590 = vpop.f32.mrb[0].mxu0
      %1591 = vmatprep.mubr.bf16.mxu0 0
      %1592 = vmatmul.mubr.bf16.gmra.mrb[0].mxu0 %v1535
      %v1593 = vpop.f32.mrb[0].mxu0
      %v1594 = vadd.f32 %v1508, %v1593
      %v1595 = vpop.f32.mrb[0].mxu0
      %v1596 = vpop.f32.mrb[0].mxu0
      %v1597 = vadd.f32 %v1509, %v1596
      %v1598 = vpop.f32.mrb[0].mxu0
      %1599 = vmatprep.mubr.bf16.mxu0 0
      %1600 = vmatmul.mubr.bf16.gmra.mrb[0].mxu0 %v1538
      %v1601 = vpop.f32.mrb[0].mxu0
      %v1602 = vadd.f32 %v1510, %v1601
      %v1603 = vpop.f32.mrb[0].mxu0
      %v1604 = vpop.f32.mrb[0].mxu0
      %v1605 = vadd.f32 %v1511, %v1604
      %v1606 = vpop.f32.mrb[0].mxu0
      %1607 = vdwg.mxu0
      %v1608 = vsel %vm1060, %v1578, -inf
      %1609 = vmax.xlane.f32.xlu0 %v1608
      %v1610 = vpop.xlane.xlu0 %1609
      %v1611 = vsel %vm1060, %v1581, -inf
      %1612 = vmax.xlane.f32.xlu0 %v1611
      %v1613 = vpop.xlane.xlu0 %1612
      %v1614 = vsel %vm1060, %v1586, -inf
      %1615 = vmax.xlane.f32.xlu0 %v1614
      %v1616 = vpop.xlane.xlu0 %1615
      %v1617 = vsel %vm1060, %v1589, -inf
      %1618 = vmax.xlane.f32.xlu0 %v1617
      %v1619 = vpop.xlane.xlu0 %1618
      %v1620 = vsel %vm1060, %v1594, -inf
      %1621 = vmax.xlane.f32.xlu0 %v1620
      %v1622 = vpop.xlane.xlu0 %1621
      %v1623 = vsel %vm1060, %v1597, -inf
      %1624 = vmax.xlane.f32.xlu0 %v1623
      %v1625 = vpop.xlane.xlu0 %1624
      %v1626 = vsel %vm1060, %v1602, -inf
      %1627 = vmax.xlane.f32.xlu0 %v1626
      %v1628 = vpop.xlane.xlu0 %1627
      %v1629 = vsel %vm1060, %v1605, -inf
      %1630 = vmax.xlane.f32.xlu0 %v1629
      %v1631 = vpop.xlane.xlu0 %1630
      %v1632 = vsub.f32 %v1578, %v1610
      %v1633 = vsub.f32 %v1581, %v1613
      %v1634 = vsub.f32 %v1586, %v1616
      %v1635 = vsub.f32 %v1589, %v1619
      %v1636 = vsub.f32 %v1594, %v1622
      %v1637 = vsub.f32 %v1597, %v1625
      %v1638 = vsub.f32 %v1602, %v1628
      %v1639 = vsub.f32 %v1605, %v1631
      %v1640 = vmul.f32 %v1632, 1.442695
      %v1641 = vpow.pop %v1640
      %v1642 = vmul.f32 %v1633, 1.442695
      %v1643 = vpow.pop %v1642
      %v1644 = vmul.f32 %v1634, 1.442695
      %v1645 = vpow.pop %v1644
      %v1646 = vmul.f32 %v1635, 1.442695
      %v1647 = vpow.pop %v1646
      %v1648 = vmul.f32 %v1636, 1.442695
      %v1649 = vpow.pop %v1648
      %v1650 = vmul.f32 %v1637, 1.442695
      %v1651 = vpow.pop %v1650
      %v1652 = vmul.f32 %v1638, 1.442695
      %v1653 = vpow.pop %v1652
      %v1654 = vmul.f32 %v1639, 1.442695
      %v1655 = vpow.pop %v1654
      %v1656 = vsel %vm1060, %v1641, 0.0
      %1657 = vadd.xlane.f32.xlu0 %v1656
      %v1658 = vpop.xlane.xlu0 %1657
      %v1659 = vsel %vm1060, %v1643, 0.0
      %1660 = vadd.xlane.f32.xlu0 %v1659
      %v1661 = vpop.xlane.xlu0 %1660
      %v1662 = vsel %vm1060, %v1645, 0.0
      %1663 = vadd.xlane.f32.xlu0 %v1662
      %v1664 = vpop.xlane.xlu0 %1663
      %v1665 = vsel %vm1060, %v1647, 0.0
      %1666 = vadd.xlane.f32.xlu0 %v1665
      %v1667 = vpop.xlane.xlu0 %1666
      %v1668 = vsel %vm1060, %v1649, 0.0
      %1669 = vadd.xlane.f32.xlu0 %v1668
      %v1670 = vpop.xlane.xlu0 %1669
      %v1671 = vsel %vm1060, %v1651, 0.0
      %1672 = vadd.xlane.f32.xlu0 %v1671
      %v1673 = vpop.xlane.xlu0 %1672
      %v1674 = vsel %vm1060, %v1653, 0.0
      %1675 = vadd.xlane.f32.xlu0 %v1674
      %v1676 = vpop.xlane.xlu0 %1675
      %v1677 = vsel %vm1060, %v1655, 0.0
      %1678 = vadd.xlane.f32.xlu0 %v1677
      %v1679 = vpop.xlane.xlu0 %1678
      %v1680 = vrcp.pop %v1658
      %v1681 = vrcp.pop %v1661
      %v1682 = vrcp.pop %v1664
      %v1683 = vrcp.pop %v1667
      %v1684 = vrcp.pop %v1670
      %v1685 = vrcp.pop %v1673
      %v1686 = vrcp.pop %v1676
      %v1687 = vrcp.pop %v1679
      %v1688 = vmul.f32 %v1641, %v1680
      %v1689 = vmul.f32 %v1643, %v1681
      %v1690 = vmul.f32 %v1645, %v1682
      %v1691 = vmul.f32 %v1647, %v1683
      %v1692 = vmul.f32 %v1649, %v1684
      %v1693 = vmul.f32 %v1651, %v1685
      %v1694 = vmul.f32 %v1653, %v1686
      %v1695 = vmul.f32 %v1655, %v1687
      %v1696 = vpack.c.bf16 %v1689, %v1688
      %v1697 = vpack.c.bf16 %v1691, %v1690
      %v1698 = vpack.c.bf16 %v1693, %v1692
      %v1699 = vpack.c.bf16 %v1695, %v1694
      %v1701 = vsel %vm1060, %v1502, 0
      %v1704 = vsel %vm1060, %v1696, 0
      %v1707 = vsel %vm1060, %v1697, 0
      %v1710 = vsel %vm1060, %v1698, 0
      %v1713 = vsel %vm1060, %v1699, 0
      %1715 = vmatprep.subr.bf16.mxu0 0
      %1716 = vmatpush1.bf16.xpose.msra.mxu0 %v1704
      %1717 = vmatprep.subr.bf16.mxu0 0
      %1718 = vmatpush1.bf16.xpose.msra.mxu0 %v1707
      %1719 = vmatprep.subr.bf16.mxu0 0
      %1720 = vmatpush1.bf16.xpose.msra.mxu0 %v1710
      %1721 = vmatprep.subr.bf16.mxu0 0
      %1722 = vmatpush1.bf16.xpose.msra.mxu0 %v1713
      %1723 = vmatprep.subr.bf16.mxu0 0
      %1724 = vmatpush1.bf16.xpose.msra.mxu0 0
      %1725 = vmatprep.subr.bf16.mxu0 0
      %1726 = vmatpush1.bf16.xpose.msra.mxu0 0
      %1727 = vmatprep.subr.bf16.mxu0 0
      %1728 = vmatpush1.bf16.xpose.msra.mxu0 0
      %1729 = vmatprep.subr.bf16.mxu0 0
      %1730 = vmatpush1.bf16.xpose.msra.mxu0 0
      %1731 = vmatprep.subr.bf16.mxu0 0
      %1732 = vmatpush1.bf16.xpose.msra.mxu0 0
      %1733 = vmatprep.subr.bf16.mxu0 0
      %1734 = vmatpush1.bf16.xpose.msra.mxu0 0
      %1735 = vmatprep.subr.bf16.mxu0 0
      %1736 = vmatpush1.bf16.xpose.msra.mxu0 0
      %1737 = vmatprep.subr.bf16.mxu0 0
      %1738 = vmatpush1.bf16.xpose.msra.mxu0 0
      %1739 = vmatprep.subr.bf16.mxu0 0
      %1740 = vmatpush1.bf16.xpose.msra.mxu0 0
      %1741 = vmatprep.subr.bf16.mxu0 0
      %1742 = vmatpush1.bf16.xpose.msra.mxu0 0
      %1743 = vmatprep.subr.bf16.mxu0 0
      %1744 = vmatpush1.bf16.xpose.msra.mxu0 0
      %1745 = vmatprep.subr.bf16.mxu0 0
      %1746 = vmatpush1.bf16.xpose.msra.mxu0 0
      %1747 = vmatprep.mubr.bf16.mxu0 0
      %1748 = vmatmul.mubr.bf16.gmra.mrb[0].mxu0 %v1701
      %v1749 = vpop.f32.mrb[0].mxu0
      %v1750 = vadd.f32 0.0, %v1749
      %v1751 = vpop.f32.mrb[0].mxu0
      %v1752 = vpop.f32.mrb[0].mxu0
      %v1753 = vpop.f32.mrb[0].mxu0
      %1754 = vdwg.mxu0
      %v1755 = vld [vmem:[%s3 + $0x10] sm:$0xff]
      %1757 = vset.pattern.permute.xlu0 0
      %1758 = vperm.xlu0 %1757, %v1755
      %v1759 = vpop.permute.xlu0 %1758
      %v1761 = vmul.f32 %v1750, %v1759
      %v1762 = vld [vmem:[%s4 + $0x10] sm:$0xff]
      %1764 = vset.pattern.permute.xlu0 0
      %1765 = vperm.xlu0 %1764, %v1762
      %v1766 = vpop.permute.xlu0 %1765
      %v1768 = vadd.f32 %v1761, %v1766
      %1769 = vst.msk [vmem:[%s231 + $0x10] sm:$0xff] %vm1060, %v1768
      %s1770 = scalar_lea.vmem %s2, 192
      %v1771 = vld [vmem:[%s1770] sm:$0xff]
      %v1772 = vld [vmem:[%s1770 + $0x8] sm:$0xff]
      %v1773 = vld [vmem:[%s1770 + $0x10] sm:$0xff]
      %v1774 = vld [vmem:[%s1770 + $0x18] sm:$0xff]
      %v1775 = vld [vmem:[%s1770 + $0x20] sm:$0xff]
      %v1776 = vld [vmem:[%s1770 + $0x28] sm:$0xff]
      %v1777 = vld [vmem:[%s1770 + $0x30] sm:$0xff]
      %v1778 = vld [vmem:[%s1770 + $0x38] sm:$0xff]
      %1780 = vrot.lane.b32.xlu0 %v1500, 64
      %v1781 = vpop.permute.xlu0 %1780
      %1783 = vxpose.xlu0.c.b16.start [1/8] %v1781, 128
      %1784 = vxpose.xlu0.c.b16.cont [2/8] 0, 128
      %1785 = vxpose.xlu0.c.b16.cont [3/8] 0, 128
      %1786 = vxpose.xlu0.c.b16.cont [4/8] 0, 128
      %1787 = vxpose.xlu0.c.b16.cont [5/8] 0, 128
      %1788 = vxpose.xlu0.c.b16.cont [6/8] 0, 128
      %1789 = vxpose.xlu0.c.b16.cont [7/8] 0, 128
      %1790 = vxpose.xlu0.c.b16.end [8/8] 0, 128
      %v1791 = vpop.trf.xlu0
      %v1792 = vpop.trf.xlu0
      %v1793 = vpop.trf.xlu0
      %v1794 = vpop.trf.xlu0
      %v1795 = vpop.trf.xlu0
      %v1796 = vpop.trf.xlu0
      %v1797 = vpop.trf.xlu0
      %v1798 = vpop.trf.xlu0
      %1800 = vrot.lane.b32.xlu0 %v1501, 64
      %v1801 = vpop.permute.xlu0 %1800
      %v1803 = vsel %vm978, %v1791, 0
      %v1806 = vsel %vm978, %v1792, 0
      %v1809 = vsel %vm978, %v1793, 0
      %v1812 = vsel %vm978, %v1794, 0
      %v1815 = vsel %vm991, %v1801, 0
      %1817 = vmatprep.subr.bf16.mxu0 0
      %1818 = vmatpush1.bf16.msra.mxu0 %v1815
      %1819 = vmatprep.subr.bf16.mxu0 0
      %1820 = vmatpush1.bf16.msra.mxu0 0
      %1821 = vmatprep.subr.bf16.mxu0 0
      %1822 = vmatpush1.bf16.msra.mxu0 0
      %1823 = vmatprep.subr.bf16.mxu0 0
      %1824 = vmatpush1.bf16.msra.mxu0 0
      %1825 = vmatprep.subr.bf16.mxu0 0
      %1826 = vmatpush1.bf16.msra.mxu0 0
      %1827 = vmatprep.subr.bf16.mxu0 0
      %1828 = vmatpush1.bf16.msra.mxu0 0
      %1829 = vmatprep.subr.bf16.mxu0 0
      %1830 = vmatpush1.bf16.msra.mxu0 0
      %1831 = vmatprep.subr.bf16.mxu0 0
      %1832 = vmatpush1.bf16.msra.mxu0 0
      %1833 = vmatprep.subr.bf16.mxu0 0
      %1834 = vmatpush1.bf16.msra.mxu0 0
      %1835 = vmatprep.subr.bf16.mxu0 0
      %1836 = vmatpush1.bf16.msra.mxu0 0
      %1837 = vmatprep.subr.bf16.mxu0 0
      %1838 = vmatpush1.bf16.msra.mxu0 0
      %1839 = vmatprep.subr.bf16.mxu0 0
      %1840 = vmatpush1.bf16.msra.mxu0 0
      %1841 = vmatprep.subr.bf16.mxu0 0
      %1842 = vmatpush1.bf16.msra.mxu0 0
      %1843 = vmatprep.subr.bf16.mxu0 0
      %1844 = vmatpush1.bf16.msra.mxu0 0
      %1845 = vmatprep.subr.bf16.mxu0 0
      %1846 = vmatpush1.bf16.msra.mxu0 0
      %1847 = vmatprep.subr.bf16.mxu0 0
      %1848 = vmatpush1.bf16.msra.mxu0 0
      %1849 = vmatprep.mubr.bf16.mxu0 0
      %1850 = vmatmul.mubr.bf16.gmra.mrb[0].mxu0 %v1803
      %v1851 = vpop.f32.mrb[0].mxu0
      %v1852 = vadd.f32 %v1771, %v1851
      %v1853 = vpop.f32.mrb[0].mxu0
      %v1854 = vpop.f32.mrb[0].mxu0
      %v1855 = vadd.f32 %v1772, %v1854
      %v1856 = vpop.f32.mrb[0].mxu0
      %1857 = vmatprep.mubr.bf16.mxu0 0
      %1858 = vmatmul.mubr.bf16.gmra.mrb[0].mxu0 %v1806
      %v1859 = vpop.f32.mrb[0].mxu0
      %v1860 = vadd.f32 %v1773, %v1859
      %v1861 = vpop.f32.mrb[0].mxu0
      %v1862 = vpop.f32.mrb[0].mxu0
      %v1863 = vadd.f32 %v1774, %v1862
      %v1864 = vpop.f32.mrb[0].mxu0
      %1865 = vmatprep.mubr.bf16.mxu0 0
      %1866 = vmatmul.mubr.bf16.gmra.mrb[0].mxu0 %v1809
      %v1867 = vpop.f32.mrb[0].mxu0
      %v1868 = vadd.f32 %v1775, %v1867
      %v1869 = vpop.f32.mrb[0].mxu0
      %v1870 = vpop.f32.mrb[0].mxu0
      %v1871 = vadd.f32 %v1776, %v1870
      %v1872 = vpop.f32.mrb[0].mxu0
      %1873 = vmatprep.mubr.bf16.mxu0 0
      %1874 = vmatmul.mubr.bf16.gmra.mrb[0].mxu0 %v1812
      %v1875 = vpop.f32.mrb[0].mxu0
      %v1876 = vadd.f32 %v1777, %v1875
      %v1877 = vpop.f32.mrb[0].mxu0
      %v1878 = vpop.f32.mrb[0].mxu0
      %v1879 = vadd.f32 %v1778, %v1878
      %v1880 = vpop.f32.mrb[0].mxu0
      %1881 = vdwg.mxu0
      %v1882 = vsel %vm1060, %v1852, -inf
      %1883 = vmax.xlane.f32.xlu0 %v1882
      %v1884 = vpop.xlane.xlu0 %1883
      %v1885 = vsel %vm1060, %v1855, -inf
      %1886 = vmax.xlane.f32.xlu0 %v1885
      %v1887 = vpop.xlane.xlu0 %1886
      %v1888 = vsel %vm1060, %v1860, -inf
      %1889 = vmax.xlane.f32.xlu0 %v1888
      %v1890 = vpop.xlane.xlu0 %1889
      %v1891 = vsel %vm1060, %v1863, -inf
      %1892 = vmax.xlane.f32.xlu0 %v1891
      %v1893 = vpop.xlane.xlu0 %1892
      %v1894 = vsel %vm1060, %v1868, -inf
      %1895 = vmax.xlane.f32.xlu0 %v1894
      %v1896 = vpop.xlane.xlu0 %1895
      %v1897 = vsel %vm1060, %v1871, -inf
      %1898 = vmax.xlane.f32.xlu0 %v1897
      %v1899 = vpop.xlane.xlu0 %1898
      %v1900 = vsel %vm1060, %v1876, -inf
      %1901 = vmax.xlane.f32.xlu0 %v1900
      %v1902 = vpop.xlane.xlu0 %1901
      %v1903 = vsel %vm1060, %v1879, -inf
      %1904 = vmax.xlane.f32.xlu0 %v1903
      %v1905 = vpop.xlane.xlu0 %1904
      %v1906 = vsub.f32 %v1852, %v1884
      %v1907 = vsub.f32 %v1855, %v1887
      %v1908 = vsub.f32 %v1860, %v1890
      %v1909 = vsub.f32 %v1863, %v1893
      %v1910 = vsub.f32 %v1868, %v1896
      %v1911 = vsub.f32 %v1871, %v1899
      %v1912 = vsub.f32 %v1876, %v1902
      %v1913 = vsub.f32 %v1879, %v1905
      %v1914 = vmul.f32 %v1906, 1.442695
      %v1915 = vpow.pop %v1914
      %v1916 = vmul.f32 %v1907, 1.442695
      %v1917 = vpow.pop %v1916
      %v1918 = vmul.f32 %v1908, 1.442695
      %v1919 = vpow.pop %v1918
      %v1920 = vmul.f32 %v1909, 1.442695
      %v1921 = vpow.pop %v1920
      %v1922 = vmul.f32 %v1910, 1.442695
      %v1923 = vpow.pop %v1922
      %v1924 = vmul.f32 %v1911, 1.442695
      %v1925 = vpow.pop %v1924
      %v1926 = vmul.f32 %v1912, 1.442695
      %v1927 = vpow.pop %v1926
      %v1928 = vmul.f32 %v1913, 1.442695
      %v1929 = vpow.pop %v1928
      %v1930 = vsel %vm1060, %v1915, 0.0
      %1931 = vadd.xlane.f32.xlu0 %v1930
      %v1932 = vpop.xlane.xlu0 %1931
      %v1933 = vsel %vm1060, %v1917, 0.0
      %1934 = vadd.xlane.f32.xlu0 %v1933
      %v1935 = vpop.xlane.xlu0 %1934
      %v1936 = vsel %vm1060, %v1919, 0.0
      %1937 = vadd.xlane.f32.xlu0 %v1936
      %v1938 = vpop.xlane.xlu0 %1937
      %v1939 = vsel %vm1060, %v1921, 0.0
      %1940 = vadd.xlane.f32.xlu0 %v1939
      %v1941 = vpop.xlane.xlu0 %1940
      %v1942 = vsel %vm1060, %v1923, 0.0
      %1943 = vadd.xlane.f32.xlu0 %v1942
      %v1944 = vpop.xlane.xlu0 %1943
      %v1945 = vsel %vm1060, %v1925, 0.0
      %1946 = vadd.xlane.f32.xlu0 %v1945
      %v1947 = vpop.xlane.xlu0 %1946
      %v1948 = vsel %vm1060, %v1927, 0.0
      %1949 = vadd.xlane.f32.xlu0 %v1948
      %v1950 = vpop.xlane.xlu0 %1949
      %v1951 = vsel %vm1060, %v1929, 0.0
      %1952 = vadd.xlane.f32.xlu0 %v1951
      %v1953 = vpop.xlane.xlu0 %1952
      %v1954 = vrcp.pop %v1932
      %v1955 = vrcp.pop %v1935
      %v1956 = vrcp.pop %v1938
      %v1957 = vrcp.pop %v1941
      %v1958 = vrcp.pop %v1944
      %v1959 = vrcp.pop %v1947
      %v1960 = vrcp.pop %v1950
      %v1961 = vrcp.pop %v1953
      %v1962 = vmul.f32 %v1915, %v1954
      %v1963 = vmul.f32 %v1917, %v1955
      %v1964 = vmul.f32 %v1919, %v1956
      %v1965 = vmul.f32 %v1921, %v1957
      %v1966 = vmul.f32 %v1923, %v1958
      %v1967 = vmul.f32 %v1925, %v1959
      %v1968 = vmul.f32 %v1927, %v1960
      %v1969 = vmul.f32 %v1929, %v1961
      %v1970 = vpack.c.bf16 %v1963, %v1962
      %v1971 = vpack.c.bf16 %v1965, %v1964
      %v1972 = vpack.c.bf16 %v1967, %v1966
      %v1973 = vpack.c.bf16 %v1969, %v1968
      %1975 = vrot.lane.b32.xlu0 %v1502, 64
      %v1976 = vpop.permute.xlu0 %1975
      %v1978 = vsel %vm1060, %v1976, 0
      %v1981 = vsel %vm1060, %v1970, 0
      %v1984 = vsel %vm1060, %v1971, 0
      %v1987 = vsel %vm1060, %v1972, 0
      %v1990 = vsel %vm1060, %v1973, 0
      %1992 = vmatprep.subr.bf16.mxu0 0
      %1993 = vmatpush1.bf16.xpose.msra.mxu0 %v1981
      %1994 = vmatprep.subr.bf16.mxu0 0
      %1995 = vmatpush1.bf16.xpose.msra.mxu0 %v1984
      %1996 = vmatprep.subr.bf16.mxu0 0
      %1997 = vmatpush1.bf16.xpose.msra.mxu0 %v1987
      %1998 = vmatprep.subr.bf16.mxu0 0
      %1999 = vmatpush1.bf16.xpose.msra.mxu0 %v1990
      %2000 = vmatprep.subr.bf16.mxu0 0
      %2001 = vmatpush1.bf16.xpose.msra.mxu0 0
      %2002 = vmatprep.subr.bf16.mxu0 0
      %2003 = vmatpush1.bf16.xpose.msra.mxu0 0
      %2004 = vmatprep.subr.bf16.mxu0 0
      %2005 = vmatpush1.bf16.xpose.msra.mxu0 0
      %2006 = vmatprep.subr.bf16.mxu0 0
      %2007 = vmatpush1.bf16.xpose.msra.mxu0 0
      %2008 = vmatprep.subr.bf16.mxu0 0
      %2009 = vmatpush1.bf16.xpose.msra.mxu0 0
      %2010 = vmatprep.subr.bf16.mxu0 0
      %2011 = vmatpush1.bf16.xpose.msra.mxu0 0
      %2012 = vmatprep.subr.bf16.mxu0 0
      %2013 = vmatpush1.bf16.xpose.msra.mxu0 0
      %2014 = vmatprep.subr.bf16.mxu0 0
      %2015 = vmatpush1.bf16.xpose.msra.mxu0 0
      %2016 = vmatprep.subr.bf16.mxu0 0
      %2017 = vmatpush1.bf16.xpose.msra.mxu0 0
      %2018 = vmatprep.subr.bf16.mxu0 0
      %2019 = vmatpush1.bf16.xpose.msra.mxu0 0
      %2020 = vmatprep.subr.bf16.mxu0 0
      %2021 = vmatpush1.bf16.xpose.msra.mxu0 0
      %2022 = vmatprep.subr.bf16.mxu0 0
      %2023 = vmatpush1.bf16.xpose.msra.mxu0 0
      %2024 = vmatprep.mubr.bf16.mxu0 0
      %2025 = vmatmul.mubr.bf16.gmra.mrb[0].mxu0 %v1978
      %v2026 = vpop.f32.mrb[0].mxu0
      %v2027 = vadd.f32 0.0, %v2026
      %v2028 = vpop.f32.mrb[0].mxu0
      %v2029 = vpop.f32.mrb[0].mxu0
      %v2030 = vpop.f32.mrb[0].mxu0
      %2031 = vdwg.mxu0
      %v2032 = vld [vmem:[%s3 + $0x18] sm:$0xff]
      %2034 = vset.pattern.permute.xlu0 0
      %2035 = vperm.xlu0 %2034, %v2032
      %v2036 = vpop.permute.xlu0 %2035
      %v2038 = vmul.f32 %v2027, %v2036
      %v2039 = vld [vmem:[%s4 + $0x18] sm:$0xff]
      %2041 = vset.pattern.permute.xlu0 0
      %2042 = vperm.xlu0 %2041, %v2039
      %v2043 = vpop.permute.xlu0 %2042
      %v2045 = vadd.f32 %v2038, %v2043
      %2046 = vst.msk [vmem:[%s231 + $0x18] sm:$0xff] %vm1060, %v2045
      %v2047 = vpack.c.bf16 %v861, %v861
      %v2048 = vpack.c.bf16 %v904, %v904
      %v2049 = vpack.c.bf16 %v947, %v947
      %v2050 = vld [vmem:[%s2] sm:$0xff]
      %v2051 = vld [vmem:[%s2 + $0x8] sm:$0xff]
      %v2052 = vld [vmem:[%s2 + $0x10] sm:$0xff]
      %v2053 = vld [vmem:[%s2 + $0x18] sm:$0xff]
      %v2054 = vld [vmem:[%s2 + $0x20] sm:$0xff]
      %v2055 = vld [vmem:[%s2 + $0x28] sm:$0xff]
      %v2056 = vld [vmem:[%s2 + $0x30] sm:$0xff]
      %v2057 = vld [vmem:[%s2 + $0x38] sm:$0xff]
      %2058 = vxpose.xlu0.c.b16.start [1/8] %v2047, 128
      %2059 = vxpose.xlu0.c.b16.cont [2/8] 0, 128
      %2060 = vxpose.xlu0.c.b16.cont [3/8] 0, 128
      %2061 = vxpose.xlu0.c.b16.cont [4/8] 0, 128
      %2062 = vxpose.xlu0.c.b16.cont [5/8] 0, 128
      %2063 = vxpose.xlu0.c.b16.cont [6/8] 0, 128
      %2064 = vxpose.xlu0.c.b16.cont [7/8] 0, 128
      %2065 = vxpose.xlu0.c.b16.end [8/8] 0, 128
      %v2066 = vpop.trf.xlu0
      %v2067 = vpop.trf.xlu0
      %v2068 = vpop.trf.xlu0
      %v2069 = vpop.trf.xlu0
      %v2070 = vpop.trf.xlu0
      %v2071 = vpop.trf.xlu0
      %v2072 = vpop.trf.xlu0
      %v2073 = vpop.trf.xlu0
      %v2075 = vsel %vm978, %v2066, 0
      %v2078 = vsel %vm978, %v2067, 0
      %v2081 = vsel %vm978, %v2068, 0
      %v2084 = vsel %vm978, %v2069, 0
      %v2087 = vsel %vm991, %v2048, 0
      %2089 = vmatprep.subr.bf16.mxu0 0
      %2090 = vmatpush1.bf16.msra.mxu0 %v2087
      %2091 = vmatprep.subr.bf16.mxu0 0
      %2092 = vmatpush1.bf16.msra.mxu0 0
      %2093 = vmatprep.subr.bf16.mxu0 0
      %2094 = vmatpush1.bf16.msra.mxu0 0
      %2095 = vmatprep.subr.bf16.mxu0 0
      %2096 = vmatpush1.bf16.msra.mxu0 0
      %2097 = vmatprep.subr.bf16.mxu0 0
      %2098 = vmatpush1.bf16.msra.mxu0 0
      %2099 = vmatprep.subr.bf16.mxu0 0
      %2100 = vmatpush1.bf16.msra.mxu0 0
      %2101 = vmatprep.subr.bf16.mxu0 0
      %2102 = vmatpush1.bf16.msra.mxu0 0
      %2103 = vmatprep.subr.bf16.mxu0 0
      %2104 = vmatpush1.bf16.msra.mxu0 0
      %2105 = vmatprep.subr.bf16.mxu0 0
      %2106 = vmatpush1.bf16.msra.mxu0 0
      %2107 = vmatprep.subr.bf16.mxu0 0
      %2108 = vmatpush1.bf16.msra.mxu0 0
      %2109 = vmatprep.subr.bf16.mxu0 0
      %2110 = vmatpush1.bf16.msra.mxu0 0
      %2111 = vmatprep.subr.bf16.mxu0 0
      %2112 = vmatpush1.bf16.msra.mxu0 0
      %2113 = vmatprep.subr.bf16.mxu0 0
      %2114 = vmatpush1.bf16.msra.mxu0 0
      %2115 = vmatprep.subr.bf16.mxu0 0
      %2116 = vmatpush1.bf16.msra.mxu0 0
      %2117 = vmatprep.subr.bf16.mxu0 0
      %2118 = vmatpush1.bf16.msra.mxu0 0
      %2119 = vmatprep.subr.bf16.mxu0 0
      %2120 = vmatpush1.bf16.msra.mxu0 0
      %2121 = vmatprep.mubr.bf16.mxu0 0
      %2122 = vmatmul.mubr.bf16.gmra.mrb[0].mxu0 %v2075
      %v2123 = vpop.f32.mrb[0].mxu0
      %v2124 = vadd.f32 %v2050, %v2123
      %v2125 = vpop.f32.mrb[0].mxu0
      %v2126 = vpop.f32.mrb[0].mxu0
      %v2127 = vadd.f32 %v2051, %v2126
      %v2128 = vpop.f32.mrb[0].mxu0
      %2129 = vmatprep.mubr.bf16.mxu0 0
      %2130 = vmatmul.mubr.bf16.gmra.mrb[0].mxu0 %v2078
      %v2131 = vpop.f32.mrb[0].mxu0
      %v2132 = vadd.f32 %v2052, %v2131
      %v2133 = vpop.f32.mrb[0].mxu0
      %v2134 = vpop.f32.mrb[0].mxu0
      %v2135 = vadd.f32 %v2053, %v2134
      %v2136 = vpop.f32.mrb[0].mxu0
      %2137 = vmatprep.mubr.bf16.mxu0 0
      %2138 = vmatmul.mubr.bf16.gmra.mrb[0].mxu0 %v2081
      %v2139 = vpop.f32.mrb[0].mxu0
      %v2140 = vadd.f32 %v2054, %v2139
      %v2141 = vpop.f32.mrb[0].mxu0
      %v2142 = vpop.f32.mrb[0].mxu0
      %v2143 = vadd.f32 %v2055, %v2142
      %v2144 = vpop.f32.mrb[0].mxu0
      %2145 = vmatprep.mubr.bf16.mxu0 0
      %2146 = vmatmul.mubr.bf16.gmra.mrb[0].mxu0 %v2084
      %v2147 = vpop.f32.mrb[0].mxu0
      %v2148 = vadd.f32 %v2056, %v2147
      %v2149 = vpop.f32.mrb[0].mxu0
      %v2150 = vpop.f32.mrb[0].mxu0
      %v2151 = vadd.f32 %v2057, %v2150
      %v2152 = vpop.f32.mrb[0].mxu0
      %2153 = vdwg.mxu0
      %v2154 = vsel %vm1060, %v2124, -inf
      %2155 = vmax.xlane.f32.xlu0 %v2154
      %v2156 = vpop.xlane.xlu0 %2155
      %v2157 = vsel %vm1060, %v2127, -inf
      %2158 = vmax.xlane.f32.xlu0 %v2157
      %v2159 = vpop.xlane.xlu0 %2158
      %v2160 = vsel %vm1060, %v2132, -inf
      %2161 = vmax.xlane.f32.xlu0 %v2160
      %v2162 = vpop.xlane.xlu0 %2161
      %v2163 = vsel %vm1060, %v2135, -inf
      %2164 = vmax.xlane.f32.xlu0 %v2163
      %v2165 = vpop.xlane.xlu0 %2164
      %v2166 = vsel %vm1060, %v2140, -inf
      %2167 = vmax.xlane.f32.xlu0 %v2166
      %v2168 = vpop.xlane.xlu0 %2167
      %v2169 = vsel %vm1060, %v2143, -inf
      %2170 = vmax.xlane.f32.xlu0 %v2169
      %v2171 = vpop.xlane.xlu0 %2170
      %v2172 = vsel %vm1060, %v2148, -inf
      %2173 = vmax.xlane.f32.xlu0 %v2172
      %v2174 = vpop.xlane.xlu0 %2173
      %v2175 = vsel %vm1060, %v2151, -inf
      %2176 = vmax.xlane.f32.xlu0 %v2175
      %v2177 = vpop.xlane.xlu0 %2176
      %v2178 = vsub.f32 %v2124, %v2156
      %v2179 = vsub.f32 %v2127, %v2159
      %v2180 = vsub.f32 %v2132, %v2162
      %v2181 = vsub.f32 %v2135, %v2165
      %v2182 = vsub.f32 %v2140, %v2168
      %v2183 = vsub.f32 %v2143, %v2171
      %v2184 = vsub.f32 %v2148, %v2174
      %v2185 = vsub.f32 %v2151, %v2177
      %v2186 = vmul.f32 %v2178, 1.442695
      %v2187 = vpow.pop %v2186
      %v2188 = vmul.f32 %v2179, 1.442695
      %v2189 = vpow.pop %v2188
      %v2190 = vmul.f32 %v2180, 1.442695
      %v2191 = vpow.pop %v2190
      %v2192 = vmul.f32 %v2181, 1.442695
      %v2193 = vpow.pop %v2192
      %v2194 = vmul.f32 %v2182, 1.442695
      %v2195 = vpow.pop %v2194
      %v2196 = vmul.f32 %v2183, 1.442695
      %v2197 = vpow.pop %v2196
      %v2198 = vmul.f32 %v2184, 1.442695
      %v2199 = vpow.pop %v2198
      %v2200 = vmul.f32 %v2185, 1.442695
      %v2201 = vpow.pop %v2200
      %v2202 = vsel %vm1060, %v2187, 0.0
      %2203 = vadd.xlane.f32.xlu0 %v2202
      %v2204 = vpop.xlane.xlu0 %2203
      %v2205 = vsel %vm1060, %v2189, 0.0
      %2206 = vadd.xlane.f32.xlu0 %v2205
      %v2207 = vpop.xlane.xlu0 %2206
      %v2208 = vsel %vm1060, %v2191, 0.0
      %2209 = vadd.xlane.f32.xlu0 %v2208
      %v2210 = vpop.xlane.xlu0 %2209
      %v2211 = vsel %vm1060, %v2193, 0.0
      %2212 = vadd.xlane.f32.xlu0 %v2211
      %v2213 = vpop.xlane.xlu0 %2212
      %v2214 = vsel %vm1060, %v2195, 0.0
      %2215 = vadd.xlane.f32.xlu0 %v2214
      %v2216 = vpop.xlane.xlu0 %2215
      %v2217 = vsel %vm1060, %v2197, 0.0
      %2218 = vadd.xlane.f32.xlu0 %v2217
      %v2219 = vpop.xlane.xlu0 %2218
      %v2220 = vsel %vm1060, %v2199, 0.0
      %2221 = vadd.xlane.f32.xlu0 %v2220
      %v2222 = vpop.xlane.xlu0 %2221
      %v2223 = vsel %vm1060, %v2201, 0.0
      %2224 = vadd.xlane.f32.xlu0 %v2223
      %v2225 = vpop.xlane.xlu0 %2224
      %v2226 = vrcp.pop %v2204
      %v2227 = vrcp.pop %v2207
      %v2228 = vrcp.pop %v2210
      %v2229 = vrcp.pop %v2213
      %v2230 = vrcp.pop %v2216
      %v2231 = vrcp.pop %v2219
      %v2232 = vrcp.pop %v2222
      %v2233 = vrcp.pop %v2225
      %v2234 = vmul.f32 %v2187, %v2226
      %v2235 = vmul.f32 %v2189, %v2227
      %v2236 = vmul.f32 %v2191, %v2228
      %v2237 = vmul.f32 %v2193, %v2229
      %v2238 = vmul.f32 %v2195, %v2230
      %v2239 = vmul.f32 %v2197, %v2231
      %v2240 = vmul.f32 %v2199, %v2232
      %v2241 = vmul.f32 %v2201, %v2233
      %v2242 = vpack.c.bf16 %v2235, %v2234
      %v2243 = vpack.c.bf16 %v2237, %v2236
      %v2244 = vpack.c.bf16 %v2239, %v2238
      %v2245 = vpack.c.bf16 %v2241, %v2240
      %v2247 = vsel %vm1060, %v2049, 0
      %v2250 = vsel %vm1060, %v2242, 0
      %v2253 = vsel %vm1060, %v2243, 0
      %v2256 = vsel %vm1060, %v2244, 0
      %v2259 = vsel %vm1060, %v2245, 0
      %2261 = vmatprep.subr.bf16.mxu0 0
      %2262 = vmatpush1.bf16.xpose.msra.mxu0 %v2250
      %2263 = vmatprep.subr.bf16.mxu0 0
      %2264 = vmatpush1.bf16.xpose.msra.mxu0 %v2253
      %2265 = vmatprep.subr.bf16.mxu0 0
      %2266 = vmatpush1.bf16.xpose.msra.mxu0 %v2256
      %2267 = vmatprep.subr.bf16.mxu0 0
      %2268 = vmatpush1.bf16.xpose.msra.mxu0 %v2259
      %2269 = vmatprep.subr.bf16.mxu0 0
      %2270 = vmatpush1.bf16.xpose.msra.mxu0 0
      %2271 = vmatprep.subr.bf16.mxu0 0
      %2272 = vmatpush1.bf16.xpose.msra.mxu0 0
      %2273 = vmatprep.subr.bf16.mxu0 0
      %2274 = vmatpush1.bf16.xpose.msra.mxu0 0
      %2275 = vmatprep.subr.bf16.mxu0 0
      %2276 = vmatpush1.bf16.xpose.msra.mxu0 0
      %2277 = vmatprep.subr.bf16.mxu0 0
      %2278 = vmatpush1.bf16.xpose.msra.mxu0 0
      %2279 = vmatprep.subr.bf16.mxu0 0
      %2280 = vmatpush1.bf16.xpose.msra.mxu0 0
      %2281 = vmatprep.subr.bf16.mxu0 0
      %2282 = vmatpush1.bf16.xpose.msra.mxu0 0
      %2283 = vmatprep.subr.bf16.mxu0 0
      %2284 = vmatpush1.bf16.xpose.msra.mxu0 0
      %2285 = vmatprep.subr.bf16.mxu0 0
      %2286 = vmatpush1.bf16.xpose.msra.mxu0 0
      %2287 = vmatprep.subr.bf16.mxu0 0
      %2288 = vmatpush1.bf16.xpose.msra.mxu0 0
      %2289 = vmatprep.subr.bf16.mxu0 0
      %2290 = vmatpush1.bf16.xpose.msra.mxu0 0
      %2291 = vmatprep.subr.bf16.mxu0 0
      %2292 = vmatpush1.bf16.xpose.msra.mxu0 0
      %2293 = vmatprep.mubr.bf16.mxu0 0
      %2294 = vmatmul.mubr.bf16.gmra.mrb[0].mxu0 %v2247
      %v2295 = vpop.f32.mrb[0].mxu0
      %v2296 = vadd.f32 0.0, %v2295
      %v2297 = vpop.f32.mrb[0].mxu0
      %v2298 = vpop.f32.mrb[0].mxu0
      %v2299 = vpop.f32.mrb[0].mxu0
      %2300 = vdwg.mxu0
      %v2301 = vld [vmem:[%s3] sm:$0xff]
      %2303 = vset.pattern.permute.xlu0 0
      %2304 = vperm.xlu0 %2303, %v2301
      %v2305 = vpop.permute.xlu0 %2304
      %v2307 = vmul.f32 %v2296, %v2305
      %v2308 = vld [vmem:[%s4] sm:$0xff]
      %2310 = vset.pattern.permute.xlu0 0
      %2311 = vperm.xlu0 %2310, %v2308
      %v2312 = vpop.permute.xlu0 %2311
      %v2314 = vadd.f32 %v2307, %v2312
      %s2315 = scalar_lea.vmem %s231, 32
      %2316 = vst.msk [vmem:[%s2315] sm:$0xff] %vm1060, %v2314
      %v2317 = vld [vmem:[%s1223] sm:$0xff]
      %v2318 = vld [vmem:[%s1223 + $0x8] sm:$0xff]
      %v2319 = vld [vmem:[%s1223 + $0x10] sm:$0xff]
      %v2320 = vld [vmem:[%s1223 + $0x18] sm:$0xff]
      %v2321 = vld [vmem:[%s1223 + $0x20] sm:$0xff]
      %v2322 = vld [vmem:[%s1223 + $0x28] sm:$0xff]
      %v2323 = vld [vmem:[%s1223 + $0x30] sm:$0xff]
      %v2324 = vld [vmem:[%s1223 + $0x38] sm:$0xff]
      %2326 = vrot.lane.b32.xlu0 %v2047, 64
      %v2327 = vpop.permute.xlu0 %2326
      %2329 = vxpose.xlu0.c.b16.start [1/8] %v2327, 128
      %2330 = vxpose.xlu0.c.b16.cont [2/8] 0, 128
      %2331 = vxpose.xlu0.c.b16.cont [3/8] 0, 128
      %2332 = vxpose.xlu0.c.b16.cont [4/8] 0, 128
      %2333 = vxpose.xlu0.c.b16.cont [5/8] 0, 128
      %2334 = vxpose.xlu0.c.b16.cont [6/8] 0, 128
      %2335 = vxpose.xlu0.c.b16.cont [7/8] 0, 128
      %2336 = vxpose.xlu0.c.b16.end [8/8] 0, 128
      %v2337 = vpop.trf.xlu0
      %v2338 = vpop.trf.xlu0
      %v2339 = vpop.trf.xlu0
      %v2340 = vpop.trf.xlu0
      %v2341 = vpop.trf.xlu0
      %v2342 = vpop.trf.xlu0
      %v2343 = vpop.trf.xlu0
      %v2344 = vpop.trf.xlu0
      %2346 = vrot.lane.b32.xlu0 %v2048, 64
      %v2347 = vpop.permute.xlu0 %2346
      %v2349 = vsel %vm978, %v2337, 0
      %v2352 = vsel %vm978, %v2338, 0
      %v2355 = vsel %vm978, %v2339, 0
      %v2358 = vsel %vm978, %v2340, 0
      %v2361 = vsel %vm991, %v2347, 0
      %2363 = vmatprep.subr.bf16.mxu0 0
      %2364 = vmatpush1.bf16.msra.mxu0 %v2361
      %2365 = vmatprep.subr.bf16.mxu0 0
      %2366 = vmatpush1.bf16.msra.mxu0 0
      %2367 = vmatprep.subr.bf16.mxu0 0
      %2368 = vmatpush1.bf16.msra.mxu0 0
      %2369 = vmatprep.subr.bf16.mxu0 0
      %2370 = vmatpush1.bf16.msra.mxu0 0
      %2371 = vmatprep.subr.bf16.mxu0 0
      %2372 = vmatpush1.bf16.msra.mxu0 0
      %2373 = vmatprep.subr.bf16.mxu0 0
      %2374 = vmatpush1.bf16.msra.mxu0 0
      %2375 = vmatprep.subr.bf16.mxu0 0
      %2376 = vmatpush1.bf16.msra.mxu0 0
      %2377 = vmatprep.subr.bf16.mxu0 0
      %2378 = vmatpush1.bf16.msra.mxu0 0
      %2379 = vmatprep.subr.bf16.mxu0 0
      %2380 = vmatpush1.bf16.msra.mxu0 0
      %2381 = vmatprep.subr.bf16.mxu0 0
      %2382 = vmatpush1.bf16.msra.mxu0 0
      %2383 = vmatprep.subr.bf16.mxu0 0
      %2384 = vmatpush1.bf16.msra.mxu0 0
      %2385 = vmatprep.subr.bf16.mxu0 0
      %2386 = vmatpush1.bf16.msra.mxu0 0
      %2387 = vmatprep.subr.bf16.mxu0 0
      %2388 = vmatpush1.bf16.msra.mxu0 0
      %2389 = vmatprep.subr.bf16.mxu0 0
      %2390 = vmatpush1.bf16.msra.mxu0 0
      %2391 = vmatprep.subr.bf16.mxu0 0
      %2392 = vmatpush1.bf16.msra.mxu0 0
      %2393 = vmatprep.subr.bf16.mxu0 0
      %2394 = vmatpush1.bf16.msra.mxu0 0
      %2395 = vmatprep.mubr.bf16.mxu0 0
      %2396 = vmatmul.mubr.bf16.gmra.mrb[0].mxu0 %v2349
      %v2397 = vpop.f32.mrb[0].mxu0
      %v2398 = vadd.f32 %v2317, %v2397
      %v2399 = vpop.f32.mrb[0].mxu0
      %v2400 = vpop.f32.mrb[0].mxu0
      %v2401 = vadd.f32 %v2318, %v2400
      %v2402 = vpop.f32.mrb[0].mxu0
      %2403 = vmatprep.mubr.bf16.mxu0 0
      %2404 = vmatmul.mubr.bf16.gmra.mrb[0].mxu0 %v2352
      %v2405 = vpop.f32.mrb[0].mxu0
      %v2406 = vadd.f32 %v2319, %v2405
      %v2407 = vpop.f32.mrb[0].mxu0
      %v2408 = vpop.f32.mrb[0].mxu0
      %v2409 = vadd.f32 %v2320, %v2408
      %v2410 = vpop.f32.mrb[0].mxu0
      %2411 = vmatprep.mubr.bf16.mxu0 0
      %2412 = vmatmul.mubr.bf16.gmra.mrb[0].mxu0 %v2355
      %v2413 = vpop.f32.mrb[0].mxu0
      %v2414 = vadd.f32 %v2321, %v2413
      %v2415 = vpop.f32.mrb[0].mxu0
      %v2416 = vpop.f32.mrb[0].mxu0
      %v2417 = vadd.f32 %v2322, %v2416
      %v2418 = vpop.f32.mrb[0].mxu0
      %2419 = vmatprep.mubr.bf16.mxu0 0
      %2420 = vmatmul.mubr.bf16.gmra.mrb[0].mxu0 %v2358
      %v2421 = vpop.f32.mrb[0].mxu0
      %v2422 = vadd.f32 %v2323, %v2421
      %v2423 = vpop.f32.mrb[0].mxu0
      %v2424 = vpop.f32.mrb[0].mxu0
      %v2425 = vadd.f32 %v2324, %v2424
      %v2426 = vpop.f32.mrb[0].mxu0
      %2427 = vdwg.mxu0
      %v2428 = vsel %vm1060, %v2398, -inf
      %2429 = vmax.xlane.f32.xlu0 %v2428
      %v2430 = vpop.xlane.xlu0 %2429
      %v2431 = vsel %vm1060, %v2401, -inf
      %2432 = vmax.xlane.f32.xlu0 %v2431
      %v2433 = vpop.xlane.xlu0 %2432
      %v2434 = vsel %vm1060, %v2406, -inf
      %2435 = vmax.xlane.f32.xlu0 %v2434
      %v2436 = vpop.xlane.xlu0 %2435
      %v2437 = vsel %vm1060, %v2409, -inf
      %2438 = vmax.xlane.f32.xlu0 %v2437
      %v2439 = vpop.xlane.xlu0 %2438
      %v2440 = vsel %vm1060, %v2414, -inf
      %2441 = vmax.xlane.f32.xlu0 %v2440
      %v2442 = vpop.xlane.xlu0 %2441
      %v2443 = vsel %vm1060, %v2417, -inf
      %2444 = vmax.xlane.f32.xlu0 %v2443
      %v2445 = vpop.xlane.xlu0 %2444
      %v2446 = vsel %vm1060, %v2422, -inf
      %2447 = vmax.xlane.f32.xlu0 %v2446
      %v2448 = vpop.xlane.xlu0 %2447
      %v2449 = vsel %vm1060, %v2425, -inf
      %2450 = vmax.xlane.f32.xlu0 %v2449
      %v2451 = vpop.xlane.xlu0 %2450
      %v2452 = vsub.f32 %v2398, %v2430
      %v2453 = vsub.f32 %v2401, %v2433
      %v2454 = vsub.f32 %v2406, %v2436
      %v2455 = vsub.f32 %v2409, %v2439
      %v2456 = vsub.f32 %v2414, %v2442
      %v2457 = vsub.f32 %v2417, %v2445
      %v2458 = vsub.f32 %v2422, %v2448
      %v2459 = vsub.f32 %v2425, %v2451
      %v2460 = vmul.f32 %v2452, 1.442695
      %v2461 = vpow.pop %v2460
      %v2462 = vmul.f32 %v2453, 1.442695
      %v2463 = vpow.pop %v2462
      %v2464 = vmul.f32 %v2454, 1.442695
      %v2465 = vpow.pop %v2464
      %v2466 = vmul.f32 %v2455, 1.442695
      %v2467 = vpow.pop %v2466
      %v2468 = vmul.f32 %v2456, 1.442695
      %v2469 = vpow.pop %v2468
      %v2470 = vmul.f32 %v2457, 1.442695
      %v2471 = vpow.pop %v2470
      %v2472 = vmul.f32 %v2458, 1.442695
      %v2473 = vpow.pop %v2472
      %v2474 = vmul.f32 %v2459, 1.442695
      %v2475 = vpow.pop %v2474
      %v2476 = vsel %vm1060, %v2461, 0.0
      %2477 = vadd.xlane.f32.xlu0 %v2476
      %v2478 = vpop.xlane.xlu0 %2477
      %v2479 = vsel %vm1060, %v2463, 0.0
      %2480 = vadd.xlane.f32.xlu0 %v2479
      %v2481 = vpop.xlane.xlu0 %2480
      %v2482 = vsel %vm1060, %v2465, 0.0
      %2483 = vadd.xlane.f32.xlu0 %v2482
      %v2484 = vpop.xlane.xlu0 %2483
      %v2485 = vsel %vm1060, %v2467, 0.0
      %2486 = vadd.xlane.f32.xlu0 %v2485
      %v2487 = vpop.xlane.xlu0 %2486
      %v2488 = vsel %vm1060, %v2469, 0.0
      %2489 = vadd.xlane.f32.xlu0 %v2488
      %v2490 = vpop.xlane.xlu0 %2489
      %v2491 = vsel %vm1060, %v2471, 0.0
      %2492 = vadd.xlane.f32.xlu0 %v2491
      %v2493 = vpop.xlane.xlu0 %2492
      %v2494 = vsel %vm1060, %v2473, 0.0
      %2495 = vadd.xlane.f32.xlu0 %v2494
      %v2496 = vpop.xlane.xlu0 %2495
      %v2497 = vsel %vm1060, %v2475, 0.0
      %2498 = vadd.xlane.f32.xlu0 %v2497
      %v2499 = vpop.xlane.xlu0 %2498
      %v2500 = vrcp.pop %v2478
      %v2501 = vrcp.pop %v2481
      %v2502 = vrcp.pop %v2484
      %v2503 = vrcp.pop %v2487
      %v2504 = vrcp.pop %v2490
      %v2505 = vrcp.pop %v2493
      %v2506 = vrcp.pop %v2496
      %v2507 = vrcp.pop %v2499
      %v2508 = vmul.f32 %v2461, %v2500
      %v2509 = vmul.f32 %v2463, %v2501
      %v2510 = vmul.f32 %v2465, %v2502
      %v2511 = vmul.f32 %v2467, %v2503
      %v2512 = vmul.f32 %v2469, %v2504
      %v2513 = vmul.f32 %v2471, %v2505
      %v2514 = vmul.f32 %v2473, %v2506
      %v2515 = vmul.f32 %v2475, %v2507
      %v2516 = vpack.c.bf16 %v2509, %v2508
      %v2517 = vpack.c.bf16 %v2511, %v2510
      %v2518 = vpack.c.bf16 %v2513, %v2512
      %v2519 = vpack.c.bf16 %v2515, %v2514
      %2521 = vrot.lane.b32.xlu0 %v2049, 64
      %v2522 = vpop.permute.xlu0 %2521
      %v2524 = vsel %vm1060, %v2522, 0
      %v2527 = vsel %vm1060, %v2516, 0
      %v2530 = vsel %vm1060, %v2517, 0
      %v2533 = vsel %vm1060, %v2518, 0
      %v2536 = vsel %vm1060, %v2519, 0
      %2538 = vmatprep.subr.bf16.mxu0 0
      %2539 = vmatpush1.bf16.xpose.msra.mxu0 %v2527
      %2540 = vmatprep.subr.bf16.mxu0 0
      %2541 = vmatpush1.bf16.xpose.msra.mxu0 %v2530
      %2542 = vmatprep.subr.bf16.mxu0 0
      %2543 = vmatpush1.bf16.xpose.msra.mxu0 %v2533
      %2544 = vmatprep.subr.bf16.mxu0 0
      %2545 = vmatpush1.bf16.xpose.msra.mxu0 %v2536
      %2546 = vmatprep.subr.bf16.mxu0 0
      %2547 = vmatpush1.bf16.xpose.msra.mxu0 0
      %2548 = vmatprep.subr.bf16.mxu0 0
      %2549 = vmatpush1.bf16.xpose.msra.mxu0 0
      %2550 = vmatprep.subr.bf16.mxu0 0
      %2551 = vmatpush1.bf16.xpose.msra.mxu0 0
      %2552 = vmatprep.subr.bf16.mxu0 0
      %2553 = vmatpush1.bf16.xpose.msra.mxu0 0
      %2554 = vmatprep.subr.bf16.mxu0 0
      %2555 = vmatpush1.bf16.xpose.msra.mxu0 0
      %2556 = vmatprep.subr.bf16.mxu0 0
      %2557 = vmatpush1.bf16.xpose.msra.mxu0 0
      %2558 = vmatprep.subr.bf16.mxu0 0
      %2559 = vmatpush1.bf16.xpose.msra.mxu0 0
      %2560 = vmatprep.subr.bf16.mxu0 0
      %2561 = vmatpush1.bf16.xpose.msra.mxu0 0
      %2562 = vmatprep.subr.bf16.mxu0 0
      %2563 = vmatpush1.bf16.xpose.msra.mxu0 0
      %2564 = vmatprep.subr.bf16.mxu0 0
      %2565 = vmatpush1.bf16.xpose.msra.mxu0 0
      %2566 = vmatprep.subr.bf16.mxu0 0
      %2567 = vmatpush1.bf16.xpose.msra.mxu0 0
      %2568 = vmatprep.subr.bf16.mxu0 0
      %2569 = vmatpush1.bf16.xpose.msra.mxu0 0
      %2570 = vmatprep.mubr.bf16.mxu0 0
      %2571 = vmatmul.mubr.bf16.gmra.mrb[0].mxu0 %v2524
      %v2572 = vpop.f32.mrb[0].mxu0
      %v2573 = vadd.f32 0.0, %v2572
      %v2574 = vpop.f32.mrb[0].mxu0
      %v2575 = vpop.f32.mrb[0].mxu0
      %v2576 = vpop.f32.mrb[0].mxu0
      %2577 = vdwg.mxu0
      %v2578 = vld [vmem:[%s3 + $0x8] sm:$0xff]
      %2580 = vset.pattern.permute.xlu0 0
      %2581 = vperm.xlu0 %2580, %v2578
      %v2582 = vpop.permute.xlu0 %2581
      %v2584 = vmul.f32 %v2573, %v2582
      %v2585 = vld [vmem:[%s4 + $0x8] sm:$0xff]
      %2587 = vset.pattern.permute.xlu0 0
      %2588 = vperm.xlu0 %2587, %v2585
      %v2589 = vpop.permute.xlu0 %2588
      %v2591 = vadd.f32 %v2584, %v2589
      %2592 = vst.msk [vmem:[%s2315 + $0x8] sm:$0xff] %vm1060, %v2591
      %v2593 = vpack.c.bf16 %v863, %v863
      %v2594 = vpack.c.bf16 %v906, %v906
      %v2595 = vpack.c.bf16 %v949, %v949
      %v2596 = vld [vmem:[%s1503] sm:$0xff]
      %v2597 = vld [vmem:[%s1503 + $0x8] sm:$0xff]
      %v2598 = vld [vmem:[%s1503 + $0x10] sm:$0xff]
      %v2599 = vld [vmem:[%s1503 + $0x18] sm:$0xff]
      %v2600 = vld [vmem:[%s1503 + $0x20] sm:$0xff]
      %v2601 = vld [vmem:[%s1503 + $0x28] sm:$0xff]
      %v2602 = vld [vmem:[%s1503 + $0x30] sm:$0xff]
      %v2603 = vld [vmem:[%s1503 + $0x38] sm:$0xff]
      %2604 = vxpose.xlu0.c.b16.start [1/8] %v2593, 128
      %2605 = vxpose.xlu0.c.b16.cont [2/8] 0, 128
      %2606 = vxpose.xlu0.c.b16.cont [3/8] 0, 128
      %2607 = vxpose.xlu0.c.b16.cont [4/8] 0, 128
      %2608 = vxpose.xlu0.c.b16.cont [5/8] 0, 128
      %2609 = vxpose.xlu0.c.b16.cont [6/8] 0, 128
      %2610 = vxpose.xlu0.c.b16.cont [7/8] 0, 128
      %2611 = vxpose.xlu0.c.b16.end [8/8] 0, 128
      %v2612 = vpop.trf.xlu0
      %v2613 = vpop.trf.xlu0
      %v2614 = vpop.trf.xlu0
      %v2615 = vpop.trf.xlu0
      %v2616 = vpop.trf.xlu0
      %v2617 = vpop.trf.xlu0
      %v2618 = vpop.trf.xlu0
      %v2619 = vpop.trf.xlu0
      %v2621 = vsel %vm978, %v2612, 0
      %v2624 = vsel %vm978, %v2613, 0
      %v2627 = vsel %vm978, %v2614, 0
      %v2630 = vsel %vm978, %v2615, 0
      %v2633 = vsel %vm991, %v2594, 0
      %2635 = vmatprep.subr.bf16.mxu0 0
      %2636 = vmatpush1.bf16.msra.mxu0 %v2633
      %2637 = vmatprep.subr.bf16.mxu0 0
      %2638 = vmatpush1.bf16.msra.mxu0 0
      %2639 = vmatprep.subr.bf16.mxu0 0
      %2640 = vmatpush1.bf16.msra.mxu0 0
      %2641 = vmatprep.subr.bf16.mxu0 0
      %2642 = vmatpush1.bf16.msra.mxu0 0
      %2643 = vmatprep.subr.bf16.mxu0 0
      %2644 = vmatpush1.bf16.msra.mxu0 0
      %2645 = vmatprep.subr.bf16.mxu0 0
      %2646 = vmatpush1.bf16.msra.mxu0 0
      %2647 = vmatprep.subr.bf16.mxu0 0
      %2648 = vmatpush1.bf16.msra.mxu0 0
      %2649 = vmatprep.subr.bf16.mxu0 0
      %2650 = vmatpush1.bf16.msra.mxu0 0
      %2651 = vmatprep.subr.bf16.mxu0 0
      %2652 = vmatpush1.bf16.msra.mxu0 0
      %2653 = vmatprep.subr.bf16.mxu0 0
      %2654 = vmatpush1.bf16.msra.mxu0 0
      %2655 = vmatprep.subr.bf16.mxu0 0
      %2656 = vmatpush1.bf16.msra.mxu0 0
      %2657 = vmatprep.subr.bf16.mxu0 0
      %2658 = vmatpush1.bf16.msra.mxu0 0
      %2659 = vmatprep.subr.bf16.mxu0 0
      %2660 = vmatpush1.bf16.msra.mxu0 0
      %2661 = vmatprep.subr.bf16.mxu0 0
      %2662 = vmatpush1.bf16.msra.mxu0 0
      %2663 = vmatprep.subr.bf16.mxu0 0
      %2664 = vmatpush1.bf16.msra.mxu0 0
      %2665 = vmatprep.subr.bf16.mxu0 0
      %2666 = vmatpush1.bf16.msra.mxu0 0
      %2667 = vmatprep.mubr.bf16.mxu0 0
      %2668 = vmatmul.mubr.bf16.gmra.mrb[0].mxu0 %v2621
      %v2669 = vpop.f32.mrb[0].mxu0
      %v2670 = vadd.f32 %v2596, %v2669
      %v2671 = vpop.f32.mrb[0].mxu0
      %v2672 = vpop.f32.mrb[0].mxu0
      %v2673 = vadd.f32 %v2597, %v2672
      %v2674 = vpop.f32.mrb[0].mxu0
      %2675 = vmatprep.mubr.bf16.mxu0 0
      %2676 = vmatmul.mubr.bf16.gmra.mrb[0].mxu0 %v2624
      %v2677 = vpop.f32.mrb[0].mxu0
      %v2678 = vadd.f32 %v2598, %v2677
      %v2679 = vpop.f32.mrb[0].mxu0
      %v2680 = vpop.f32.mrb[0].mxu0
      %v2681 = vadd.f32 %v2599, %v2680
      %v2682 = vpop.f32.mrb[0].mxu0
      %2683 = vmatprep.mubr.bf16.mxu0 0
      %2684 = vmatmul.mubr.bf16.gmra.mrb[0].mxu0 %v2627
      %v2685 = vpop.f32.mrb[0].mxu0
      %v2686 = vadd.f32 %v2600, %v2685
      %v2687 = vpop.f32.mrb[0].mxu0
      %v2688 = vpop.f32.mrb[0].mxu0
      %v2689 = vadd.f32 %v2601, %v2688
      %v2690 = vpop.f32.mrb[0].mxu0
      %2691 = vmatprep.mubr.bf16.mxu0 0
      %2692 = vmatmul.mubr.bf16.gmra.mrb[0].mxu0 %v2630
      %v2693 = vpop.f32.mrb[0].mxu0
      %v2694 = vadd.f32 %v2602, %v2693
      %v2695 = vpop.f32.mrb[0].mxu0
      %v2696 = vpop.f32.mrb[0].mxu0
      %v2697 = vadd.f32 %v2603, %v2696
      %v2698 = vpop.f32.mrb[0].mxu0
      %2699 = vdwg.mxu0
      %v2700 = vsel %vm1060, %v2670, -inf
      %2701 = vmax.xlane.f32.xlu0 %v2700
      %v2702 = vpop.xlane.xlu0 %2701
      %v2703 = vsel %vm1060, %v2673, -inf
      %2704 = vmax.xlane.f32.xlu0 %v2703
      %v2705 = vpop.xlane.xlu0 %2704
      %v2706 = vsel %vm1060, %v2678, -inf
      %2707 = vmax.xlane.f32.xlu0 %v2706
      %v2708 = vpop.xlane.xlu0 %2707
      %v2709 = vsel %vm1060, %v2681, -inf
      %2710 = vmax.xlane.f32.xlu0 %v2709
      %v2711 = vpop.xlane.xlu0 %2710
      %v2712 = vsel %vm1060, %v2686, -inf
      %2713 = vmax.xlane.f32.xlu0 %v2712
      %v2714 = vpop.xlane.xlu0 %2713
      %v2715 = vsel %vm1060, %v2689, -inf
      %2716 = vmax.xlane.f32.xlu0 %v2715
      %v2717 = vpop.xlane.xlu0 %2716
      %v2718 = vsel %vm1060, %v2694, -inf
      %2719 = vmax.xlane.f32.xlu0 %v2718
      %v2720 = vpop.xlane.xlu0 %2719
      %v2721 = vsel %vm1060, %v2697, -inf
      %2722 = vmax.xlane.f32.xlu0 %v2721
      %v2723 = vpop.xlane.xlu0 %2722
      %v2724 = vsub.f32 %v2670, %v2702
      %v2725 = vsub.f32 %v2673, %v2705
      %v2726 = vsub.f32 %v2678, %v2708
      %v2727 = vsub.f32 %v2681, %v2711
      %v2728 = vsub.f32 %v2686, %v2714
      %v2729 = vsub.f32 %v2689, %v2717
      %v2730 = vsub.f32 %v2694, %v2720
      %v2731 = vsub.f32 %v2697, %v2723
      %v2732 = vmul.f32 %v2724, 1.442695
      %v2733 = vpow.pop %v2732
      %v2734 = vmul.f32 %v2725, 1.442695
      %v2735 = vpow.pop %v2734
      %v2736 = vmul.f32 %v2726, 1.442695
      %v2737 = vpow.pop %v2736
      %v2738 = vmul.f32 %v2727, 1.442695
      %v2739 = vpow.pop %v2738
      %v2740 = vmul.f32 %v2728, 1.442695
      %v2741 = vpow.pop %v2740
      %v2742 = vmul.f32 %v2729, 1.442695
      %v2743 = vpow.pop %v2742
      %v2744 = vmul.f32 %v2730, 1.442695
      %v2745 = vpow.pop %v2744
      %v2746 = vmul.f32 %v2731, 1.442695
      %v2747 = vpow.pop %v2746
      %v2748 = vsel %vm1060, %v2733, 0.0
      %2749 = vadd.xlane.f32.xlu0 %v2748
      %v2750 = vpop.xlane.xlu0 %2749
      %v2751 = vsel %vm1060, %v2735, 0.0
      %2752 = vadd.xlane.f32.xlu0 %v2751
      %v2753 = vpop.xlane.xlu0 %2752
      %v2754 = vsel %vm1060, %v2737, 0.0
      %2755 = vadd.xlane.f32.xlu0 %v2754
      %v2756 = vpop.xlane.xlu0 %2755
      %v2757 = vsel %vm1060, %v2739, 0.0
      %2758 = vadd.xlane.f32.xlu0 %v2757
      %v2759 = vpop.xlane.xlu0 %2758
      %v2760 = vsel %vm1060, %v2741, 0.0
      %2761 = vadd.xlane.f32.xlu0 %v2760
      %v2762 = vpop.xlane.xlu0 %2761
      %v2763 = vsel %vm1060, %v2743, 0.0
      %2764 = vadd.xlane.f32.xlu0 %v2763
      %v2765 = vpop.xlane.xlu0 %2764
      %v2766 = vsel %vm1060, %v2745, 0.0
      %2767 = vadd.xlane.f32.xlu0 %v2766
      %v2768 = vpop.xlane.xlu0 %2767
      %v2769 = vsel %vm1060, %v2747, 0.0
      %2770 = vadd.xlane.f32.xlu0 %v2769
      %v2771 = vpop.xlane.xlu0 %2770
      %v2772 = vrcp.pop %v2750
      %v2773 = vrcp.pop %v2753
      %v2774 = vrcp.pop %v2756
      %v2775 = vrcp.pop %v2759
      %v2776 = vrcp.pop %v2762
      %v2777 = vrcp.pop %v2765
      %v2778 = vrcp.pop %v2768
      %v2779 = vrcp.pop %v2771
      %v2780 = vmul.f32 %v2733, %v2772
      %v2781 = vmul.f32 %v2735, %v2773
      %v2782 = vmul.f32 %v2737, %v2774
      %v2783 = vmul.f32 %v2739, %v2775
      %v2784 = vmul.f32 %v2741, %v2776
      %v2785 = vmul.f32 %v2743, %v2777
      %v2786 = vmul.f32 %v2745, %v2778
      %v2787 = vmul.f32 %v2747, %v2779
      %v2788 = vpack.c.bf16 %v2781, %v2780
      %v2789 = vpack.c.bf16 %v2783, %v2782
      %v2790 = vpack.c.bf16 %v2785, %v2784
      %v2791 = vpack.c.bf16 %v2787, %v2786
      %v2793 = vsel %vm1060, %v2595, 0
      %v2796 = vsel %vm1060, %v2788, 0
      %v2799 = vsel %vm1060, %v2789, 0
      %v2802 = vsel %vm1060, %v2790, 0
      %v2805 = vsel %vm1060, %v2791, 0
      %2807 = vmatprep.subr.bf16.mxu0 0
      %2808 = vmatpush1.bf16.xpose.msra.mxu0 %v2796
      %2809 = vmatprep.subr.bf16.mxu0 0
      %2810 = vmatpush1.bf16.xpose.msra.mxu0 %v2799
      %2811 = vmatprep.subr.bf16.mxu0 0
      %2812 = vmatpush1.bf16.xpose.msra.mxu0 %v2802
      %2813 = vmatprep.subr.bf16.mxu0 0
      %2814 = vmatpush1.bf16.xpose.msra.mxu0 %v2805
      %2815 = vmatprep.subr.bf16.mxu0 0
      %2816 = vmatpush1.bf16.xpose.msra.mxu0 0
      %2817 = vmatprep.subr.bf16.mxu0 0
      %2818 = vmatpush1.bf16.xpose.msra.mxu0 0
      %2819 = vmatprep.subr.bf16.mxu0 0
      %2820 = vmatpush1.bf16.xpose.msra.mxu0 0
      %2821 = vmatprep.subr.bf16.mxu0 0
      %2822 = vmatpush1.bf16.xpose.msra.mxu0 0
      %2823 = vmatprep.subr.bf16.mxu0 0
      %2824 = vmatpush1.bf16.xpose.msra.mxu0 0
      %2825 = vmatprep.subr.bf16.mxu0 0
      %2826 = vmatpush1.bf16.xpose.msra.mxu0 0
      %2827 = vmatprep.subr.bf16.mxu0 0
      %2828 = vmatpush1.bf16.xpose.msra.mxu0 0
      %2829 = vmatprep.subr.bf16.mxu0 0
      %2830 = vmatpush1.bf16.xpose.msra.mxu0 0
      %2831 = vmatprep.subr.bf16.mxu0 0
      %2832 = vmatpush1.bf16.xpose.msra.mxu0 0
      %2833 = vmatprep.subr.bf16.mxu0 0
      %2834 = vmatpush1.bf16.xpose.msra.mxu0 0
      %2835 = vmatprep.subr.bf16.mxu0 0
      %2836 = vmatpush1.bf16.xpose.msra.mxu0 0
      %2837 = vmatprep.subr.bf16.mxu0 0
      %2838 = vmatpush1.bf16.xpose.msra.mxu0 0
      %2839 = vmatprep.mubr.bf16.mxu0 0
      %2840 = vmatmul.mubr.bf16.gmra.mrb[0].mxu0 %v2793
      %v2841 = vpop.f32.mrb[0].mxu0
      %v2842 = vadd.f32 0.0, %v2841
      %v2843 = vpop.f32.mrb[0].mxu0
      %v2844 = vpop.f32.mrb[0].mxu0
      %v2845 = vpop.f32.mrb[0].mxu0
      %2846 = vdwg.mxu0
      %v2847 = vld [vmem:[%s3 + $0x10] sm:$0xff]
      %2849 = vset.pattern.permute.xlu0 0
      %2850 = vperm.xlu0 %2849, %v2847
      %v2851 = vpop.permute.xlu0 %2850
      %v2853 = vmul.f32 %v2842, %v2851
      %v2854 = vld [vmem:[%s4 + $0x10] sm:$0xff]
      %2856 = vset.pattern.permute.xlu0 0
      %2857 = vperm.xlu0 %2856, %v2854
      %v2858 = vpop.permute.xlu0 %2857
      %v2860 = vadd.f32 %v2853, %v2858
      %2861 = vst.msk [vmem:[%s2315 + $0x10] sm:$0xff] %vm1060, %v2860
      %v2862 = vld [vmem:[%s1770] sm:$0xff]
      %v2863 = vld [vmem:[%s1770 + $0x8] sm:$0xff]
      %v2864 = vld [vmem:[%s1770 + $0x10] sm:$0xff]
      %v2865 = vld [vmem:[%s1770 + $0x18] sm:$0xff]
      %v2866 = vld [vmem:[%s1770 + $0x20] sm:$0xff]
      %v2867 = vld [vmem:[%s1770 + $0x28] sm:$0xff]
      %v2868 = vld [vmem:[%s1770 + $0x30] sm:$0xff]
      %v2869 = vld [vmem:[%s1770 + $0x38] sm:$0xff]
      %2871 = vrot.lane.b32.xlu0 %v2593, 64
      %v2872 = vpop.permute.xlu0 %2871
      %2874 = vxpose.xlu0.c.b16.start [1/8] %v2872, 128
      %2875 = vxpose.xlu0.c.b16.cont [2/8] 0, 128
      %2876 = vxpose.xlu0.c.b16.cont [3/8] 0, 128
      %2877 = vxpose.xlu0.c.b16.cont [4/8] 0, 128
      %2878 = vxpose.xlu0.c.b16.cont [5/8] 0, 128
      %2879 = vxpose.xlu0.c.b16.cont [6/8] 0, 128
      %2880 = vxpose.xlu0.c.b16.cont [7/8] 0, 128
      %2881 = vxpose.xlu0.c.b16.end [8/8] 0, 128
      %v2882 = vpop.trf.xlu0
      %v2883 = vpop.trf.xlu0
      %v2884 = vpop.trf.xlu0
      %v2885 = vpop.trf.xlu0
      %v2886 = vpop.trf.xlu0
      %v2887 = vpop.trf.xlu0
      %v2888 = vpop.trf.xlu0
      %v2889 = vpop.trf.xlu0
      %2891 = vrot.lane.b32.xlu0 %v2594, 64
      %v2892 = vpop.permute.xlu0 %2891
      %v2894 = vsel %vm978, %v2882, 0
      %v2897 = vsel %vm978, %v2883, 0
      %v2900 = vsel %vm978, %v2884, 0
      %v2903 = vsel %vm978, %v2885, 0
      %v2906 = vsel %vm991, %v2892, 0
      %2908 = vmatprep.subr.bf16.mxu0 0
      %2909 = vmatpush1.bf16.msra.mxu0 %v2906
      %2910 = vmatprep.subr.bf16.mxu0 0
      %2911 = vmatpush1.bf16.msra.mxu0 0
      %2912 = vmatprep.subr.bf16.mxu0 0
      %2913 = vmatpush1.bf16.msra.mxu0 0
      %2914 = vmatprep.subr.bf16.mxu0 0
      %2915 = vmatpush1.bf16.msra.mxu0 0
      %2916 = vmatprep.subr.bf16.mxu0 0
      %2917 = vmatpush1.bf16.msra.mxu0 0
      %2918 = vmatprep.subr.bf16.mxu0 0
      %2919 = vmatpush1.bf16.msra.mxu0 0
      %2920 = vmatprep.subr.bf16.mxu0 0
      %2921 = vmatpush1.bf16.msra.mxu0 0
      %2922 = vmatprep.subr.bf16.mxu0 0
      %2923 = vmatpush1.bf16.msra.mxu0 0
      %2924 = vmatprep.subr.bf16.mxu0 0
      %2925 = vmatpush1.bf16.msra.mxu0 0
      %2926 = vmatprep.subr.bf16.mxu0 0
      %2927 = vmatpush1.bf16.msra.mxu0 0
      %2928 = vmatprep.subr.bf16.mxu0 0
      %2929 = vmatpush1.bf16.msra.mxu0 0
      %2930 = vmatprep.subr.bf16.mxu0 0
      %2931 = vmatpush1.bf16.msra.mxu0 0
      %2932 = vmatprep.subr.bf16.mxu0 0
      %2933 = vmatpush1.bf16.msra.mxu0 0
      %2934 = vmatprep.subr.bf16.mxu0 0
      %2935 = vmatpush1.bf16.msra.mxu0 0
      %2936 = vmatprep.subr.bf16.mxu0 0
      %2937 = vmatpush1.bf16.msra.mxu0 0
      %2938 = vmatprep.subr.bf16.mxu0 0
      %2939 = vmatpush1.bf16.msra.mxu0 0
      %2940 = vmatprep.mubr.bf16.mxu0 0
      %2941 = vmatmul.mubr.bf16.gmra.mrb[0].mxu0 %v2894
      %v2942 = vpop.f32.mrb[0].mxu0
      %v2943 = vadd.f32 %v2862, %v2942
      %v2944 = vpop.f32.mrb[0].mxu0
      %v2945 = vpop.f32.mrb[0].mxu0
      %v2946 = vadd.f32 %v2863, %v2945
      %v2947 = vpop.f32.mrb[0].mxu0
      %2948 = vmatprep.mubr.bf16.mxu0 0
      %2949 = vmatmul.mubr.bf16.gmra.mrb[0].mxu0 %v2897
      %v2950 = vpop.f32.mrb[0].mxu0
      %v2951 = vadd.f32 %v2864, %v2950
      %v2952 = vpop.f32.mrb[0].mxu0
      %v2953 = vpop.f32.mrb[0].mxu0
      %v2954 = vadd.f32 %v2865, %v2953
      %v2955 = vpop.f32.mrb[0].mxu0
      %2956 = vmatprep.mubr.bf16.mxu0 0
      %2957 = vmatmul.mubr.bf16.gmra.mrb[0].mxu0 %v2900
      %v2958 = vpop.f32.mrb[0].mxu0
      %v2959 = vadd.f32 %v2866, %v2958
      %v2960 = vpop.f32.mrb[0].mxu0
      %v2961 = vpop.f32.mrb[0].mxu0
      %v2962 = vadd.f32 %v2867, %v2961
      %v2963 = vpop.f32.mrb[0].mxu0
      %2964 = vmatprep.mubr.bf16.mxu0 0
      %2965 = vmatmul.mubr.bf16.gmra.mrb[0].mxu0 %v2903
      %v2966 = vpop.f32.mrb[0].mxu0
      %v2967 = vadd.f32 %v2868, %v2966
      %v2968 = vpop.f32.mrb[0].mxu0
      %v2969 = vpop.f32.mrb[0].mxu0
      %v2970 = vadd.f32 %v2869, %v2969
      %v2971 = vpop.f32.mrb[0].mxu0
      %2972 = vdwg.mxu0
      %v2973 = vsel %vm1060, %v2943, -inf
      %2974 = vmax.xlane.f32.xlu0 %v2973
      %v2975 = vpop.xlane.xlu0 %2974
      %v2976 = vsel %vm1060, %v2946, -inf
      %2977 = vmax.xlane.f32.xlu0 %v2976
      %v2978 = vpop.xlane.xlu0 %2977
      %v2979 = vsel %vm1060, %v2951, -inf
      %2980 = vmax.xlane.f32.xlu0 %v2979
      %v2981 = vpop.xlane.xlu0 %2980
      %v2982 = vsel %vm1060, %v2954, -inf
      %2983 = vmax.xlane.f32.xlu0 %v2982
      %v2984 = vpop.xlane.xlu0 %2983
      %v2985 = vsel %vm1060, %v2959, -inf
      %2986 = vmax.xlane.f32.xlu0 %v2985
      %v2987 = vpop.xlane.xlu0 %2986
      %v2988 = vsel %vm1060, %v2962, -inf
      %2989 = vmax.xlane.f32.xlu0 %v2988
      %v2990 = vpop.xlane.xlu0 %2989
      %v2991 = vsel %vm1060, %v2967, -inf
      %2992 = vmax.xlane.f32.xlu0 %v2991
      %v2993 = vpop.xlane.xlu0 %2992
      %v2994 = vsel %vm1060, %v2970, -inf
      %2995 = vmax.xlane.f32.xlu0 %v2994
      %v2996 = vpop.xlane.xlu0 %2995
      %v2997 = vsub.f32 %v2943, %v2975
      %v2998 = vsub.f32 %v2946, %v2978
      %v2999 = vsub.f32 %v2951, %v2981
      %v3000 = vsub.f32 %v2954, %v2984
      %v3001 = vsub.f32 %v2959, %v2987
      %v3002 = vsub.f32 %v2962, %v2990
      %v3003 = vsub.f32 %v2967, %v2993
      %v3004 = vsub.f32 %v2970, %v2996
      %v3005 = vmul.f32 %v2997, 1.442695
      %v3006 = vpow.pop %v3005
      %v3007 = vmul.f32 %v2998, 1.442695
      %v3008 = vpow.pop %v3007
      %v3009 = vmul.f32 %v2999, 1.442695
      %v3010 = vpow.pop %v3009
      %v3011 = vmul.f32 %v3000, 1.442695
      %v3012 = vpow.pop %v3011
      %v3013 = vmul.f32 %v3001, 1.442695
      %v3014 = vpow.pop %v3013
      %v3015 = vmul.f32 %v3002, 1.442695
      %v3016 = vpow.pop %v3015
      %v3017 = vmul.f32 %v3003, 1.442695
      %v3018 = vpow.pop %v3017
      %v3019 = vmul.f32 %v3004, 1.442695
      %v3020 = vpow.pop %v3019
      %v3021 = vsel %vm1060, %v3006, 0.0
      %3022 = vadd.xlane.f32.xlu0 %v3021
      %v3023 = vpop.xlane.xlu0 %3022
      %v3024 = vsel %vm1060, %v3008, 0.0
      %3025 = vadd.xlane.f32.xlu0 %v3024
      %v3026 = vpop.xlane.xlu0 %3025
      %v3027 = vsel %vm1060, %v3010, 0.0
      %3028 = vadd.xlane.f32.xlu0 %v3027
      %v3029 = vpop.xlane.xlu0 %3028
      %v3030 = vsel %vm1060, %v3012, 0.0
      %3031 = vadd.xlane.f32.xlu0 %v3030
      %v3032 = vpop.xlane.xlu0 %3031
      %v3033 = vsel %vm1060, %v3014, 0.0
      %3034 = vadd.xlane.f32.xlu0 %v3033
      %v3035 = vpop.xlane.xlu0 %3034
      %v3036 = vsel %vm1060, %v3016, 0.0
      %3037 = vadd.xlane.f32.xlu0 %v3036
      %v3038 = vpop.xlane.xlu0 %3037
      %v3039 = vsel %vm1060, %v3018, 0.0
      %3040 = vadd.xlane.f32.xlu0 %v3039
      %v3041 = vpop.xlane.xlu0 %3040
      %v3042 = vsel %vm1060, %v3020, 0.0
      %3043 = vadd.xlane.f32.xlu0 %v3042
      %v3044 = vpop.xlane.xlu0 %3043
      %v3045 = vrcp.pop %v3023
      %v3046 = vrcp.pop %v3026
      %v3047 = vrcp.pop %v3029
      %v3048 = vrcp.pop %v3032
      %v3049 = vrcp.pop %v3035
      %v3050 = vrcp.pop %v3038
      %v3051 = vrcp.pop %v3041
      %v3052 = vrcp.pop %v3044
      %v3053 = vmul.f32 %v3006, %v3045
      %v3054 = vmul.f32 %v3008, %v3046
      %v3055 = vmul.f32 %v3010, %v3047
      %v3056 = vmul.f32 %v3012, %v3048
      %v3057 = vmul.f32 %v3014, %v3049
      %v3058 = vmul.f32 %v3016, %v3050
      %v3059 = vmul.f32 %v3018, %v3051
      %v3060 = vmul.f32 %v3020, %v3052
      %v3061 = vpack.c.bf16 %v3054, %v3053
      %v3062 = vpack.c.bf16 %v3056, %v3055
      %v3063 = vpack.c.bf16 %v3058, %v3057
      %v3064 = vpack.c.bf16 %v3060, %v3059
      %3066 = vrot.lane.b32.xlu0 %v2595, 64
      %v3067 = vpop.permute.xlu0 %3066
      %v3069 = vsel %vm1060, %v3067, 0
      %v3072 = vsel %vm1060, %v3061, 0
      %v3075 = vsel %vm1060, %v3062, 0
      %v3078 = vsel %vm1060, %v3063, 0
      %v3081 = vsel %vm1060, %v3064, 0
      %3083 = vmatprep.subr.bf16.mxu0 0
      %3084 = vmatpush1.bf16.xpose.msra.mxu0 %v3072
      %3085 = vmatprep.subr.bf16.mxu0 0
      %3086 = vmatpush1.bf16.xpose.msra.mxu0 %v3075
      %3087 = vmatprep.subr.bf16.mxu0 0
      %3088 = vmatpush1.bf16.xpose.msra.mxu0 %v3078
      %3089 = vmatprep.subr.bf16.mxu0 0
      %3090 = vmatpush1.bf16.xpose.msra.mxu0 %v3081
      %3091 = vmatprep.subr.bf16.mxu0 0
      %3092 = vmatpush1.bf16.xpose.msra.mxu0 0
      %3093 = vmatprep.subr.bf16.mxu0 0
      %3094 = vmatpush1.bf16.xpose.msra.mxu0 0
      %3095 = vmatprep.subr.bf16.mxu0 0
      %3096 = vmatpush1.bf16.xpose.msra.mxu0 0
      %3097 = vmatprep.subr.bf16.mxu0 0
      %3098 = vmatpush1.bf16.xpose.msra.mxu0 0
      %3099 = vmatprep.subr.bf16.mxu0 0
      %3100 = vmatpush1.bf16.xpose.msra.mxu0 0
      %3101 = vmatprep.subr.bf16.mxu0 0
      %3102 = vmatpush1.bf16.xpose.msra.mxu0 0
      %3103 = vmatprep.subr.bf16.mxu0 0
      %3104 = vmatpush1.bf16.xpose.msra.mxu0 0
      %3105 = vmatprep.subr.bf16.mxu0 0
      %3106 = vmatpush1.bf16.xpose.msra.mxu0 0
      %3107 = vmatprep.subr.bf16.mxu0 0
      %3108 = vmatpush1.bf16.xpose.msra.mxu0 0
      %3109 = vmatprep.subr.bf16.mxu0 0
      %3110 = vmatpush1.bf16.xpose.msra.mxu0 0
      %3111 = vmatprep.subr.bf16.mxu0 0
      %3112 = vmatpush1.bf16.xpose.msra.mxu0 0
      %3113 = vmatprep.subr.bf16.mxu0 0
      %3114 = vmatpush1.bf16.xpose.msra.mxu0 0
      %3115 = vmatprep.mubr.bf16.mxu0 0
      %3116 = vmatmul.mubr.bf16.gmra.mrb[0].mxu0 %v3069
      %v3117 = vpop.f32.mrb[0].mxu0
      %v3118 = vadd.f32 0.0, %v3117
      %v3119 = vpop.f32.mrb[0].mxu0
      %v3120 = vpop.f32.mrb[0].mxu0
      %v3121 = vpop.f32.mrb[0].mxu0
      %3122 = vdwg.mxu0
      %v3123 = vld [vmem:[%s3 + $0x18] sm:$0xff]
      %3125 = vset.pattern.permute.xlu0 0
      %3126 = vperm.xlu0 %3125, %v3123
      %v3127 = vpop.permute.xlu0 %3126
      %v3129 = vmul.f32 %v3118, %v3127
      %v3130 = vld [vmem:[%s4 + $0x18] sm:$0xff]
      %3132 = vset.pattern.permute.xlu0 0
      %3133 = vperm.xlu0 %3132, %v3130
      %v3134 = vpop.permute.xlu0 %3133
      %v3136 = vadd.f32 %v3129, %v3134
      %3137 = vst.msk [vmem:[%s2315 + $0x18] sm:$0xff] %vm1060, %v3136
      %s3138 = smul.u32 2, %s16
      %p3139 = scmp.lt.s32.totalorder %s3138, 3
      %s3140 = scalar_select %p3139, %s3138, 3
      %s3141 = smul.addr %s3140, 4
      %s3142 = smul.addr %s3141, 8
      %s3143 = scalar_lea.vmem %s5, %s3142
      // Predicated region
      $region41: #{window_attention_conv2qkv.1} parent=39 // pred_check
        %p3144 = pneg %p144
      $region42: #{window_attention_conv2qkv.1} parent=39 // pred_check_branch
        %3146 = sbr.rel (%p3144) target = $region44
      $region43: #{window_attention_conv2qkv.1} parent=39 // pred_region
        %s3147 = smul.u32 2, %s16
      $region44: #{window_attention_conv2qkv.1} parent=39 // pred_fallthru
        _
    $region40: #{window_attention_conv2qkv.1} parent=5 // pred_fallthru
      _
    %p3148 = scmp.le.s32.totalorder 2, %s11
    // Predicated region
    $region45: #{window_attention_conv2qkv.1} parent=5 // pred_check
      %p3149 = pneg %p3148
    $region46: #{window_attention_conv2qkv.1} parent=5 // pred_check_branch
      %3151 = sbr.rel (%p3149) target = $region48
    $region47: #{window_attention_conv2qkv.1} parent=5 // pred_region
      %s3152 = ssub.s32 %s11, 2
      // Predicated region
      $region49: #{window_attention_conv2qkv.1} parent=47 // pred_check
        %p3153 = pneg %p150
      $region50: #{window_attention_conv2qkv.1} parent=47 // pred_check_branch
        %3155 = sbr.rel (%p3153) target = $region52
      $region51: #{window_attention_conv2qkv.1} parent=47 // pred_region
        %s3156 = smul.u32 2, %s17
        %p3157 = scmp.lt.s32.totalorder %s3156, 3
        %s3158 = scalar_select %p3157, %s3156, 3
        %s3159 = smul.addr %s3158, 4
        %s3160 = smul.addr %s3159, 8
        %s3161 = scalar_lea.vmem %s5, %s3160
      $region52: #{window_attention_conv2qkv.1} parent=47 // pred_fallthru
        _
    $region48: #{window_attention_conv2qkv.1} parent=5 // pred_fallthru
      _
  $region6: #{window_attention_conv2qkv.1} parent=0 // loop_footer
    %s15 = sadd.s32 1, %s11
  $region7: #{window_attention_conv2qkv.1} parent=0 // loop_footer_branch
    %10 = sbr.rel target = $region3
  $region8: #{window_attention_conv2qkv.1} parent=0 // loop_exit
    _

</llo_original>
